<compile_context>
chip_gen: v6e
topology: v6e:2x2x1
jax: 0.10.0
libtpu: 0.0.40
codegen_flags: <defaults>
</compile_context>

<pallas_src>
import functools

import jax
import jax.numpy as jnp
from jax.experimental import pallas as pl
from jax.experimental.pallas import tpu as pltpu


def _sigmoid_via_tanh(x):
    # sigmoid(x) == 0.5 * tanh(0.5 * x) + 0.5  ->  exactly one EUP transcendental per
    # element group (avoids a possible exp + reciprocal lowering of jax.nn.sigmoid).
    return 0.5 * jnp.tanh(0.5 * x) + 0.5


# ----------------------------- Pallas kernel ------------------------------- #

def _make_kernel(num_layers, hidden_pad, seq_len, tile_b, compute_dtype):
    Hp, S, TB = hidden_pad, seq_len, tile_b
    cdt = compute_dtype

    def kernel(x_ref, mask_ref, wih0_ref, bin0_ref, whh0_ref, bhh0n_ref, *rest):
        # rest = [(W_top_l, W_bot_l, b_fused_l) for l=1..L-1] + [W_head, b_head, out, gt0]
        nfl = num_layers - 1
        fused = [(rest[3 * i], rest[3 * i + 1], rest[3 * i + 2]) for i in range(nfl)]
        whead_ref, bhead_ref, out_ref, gt0_ref = rest[3 * nfl:]

        # --- hoisted layer-0 input projection: ONE (S*TB, D) x (D, 3Hp) MXU matmul ---
        # (r/z bias slots already contain bih+bhh; n slot contains bih_n only)
        gt0_ref[...] = (
            jnp.dot(x_ref[...].astype(cdt), wih0_ref[...],
                    preferred_element_type=jnp.float32)
            + bin0_ref[...])

        h_init = tuple(jnp.zeros((TB, Hp), jnp.float32) for _ in range(num_layers))
        acc_init = jnp.zeros((TB, Hp), jnp.float32)

        def step(t, carry):
            hs, acc = carry
            m = mask_ref[t]                                    # (TB, Hp), pre-/t_max
            row = pl.multiple_of(t * TB, TB)                   # TB==8 -> sublane aligned
            gi = gt0_ref[pl.ds(row, TB), :]                    # (TB, 3Hp), unmasked loads

            # ---- layer 0: only the recurrent half remains on the serial path ----
            gh = jnp.dot(hs[0].astype(cdt), whh0_ref[...],
                         preferred_element_type=jnp.float32) + bhh0n_ref[...]
            rz = _sigmoid_via_tanh(gi[:, :2 * Hp] + gh[:, :2 * Hp])   # one EUP group
            r, z = rz[:, :Hp], rz[:, Hp:]
            n = jnp.tanh(gi[:, 2 * Hp:] + r * gh[:, 2 * Hp:])
            h = (1.0 - z) * n + z * hs[0]
            new_hs = [h]

            # ---- layers 1..L-1: two K=Hp dots per step (no per-step concat) ----
            for l in range(1, num_layers):
                w_top_ref, w_bot_ref, bf_ref = fused[l - 1]
                h_prev = hs[l]
                g = (jnp.dot(h.astype(cdt), w_top_ref[...],
                             preferred_element_type=jnp.float32)
                     + jnp.dot(h_prev.astype(cdt), w_bot_ref[...],
                               preferred_element_type=jnp.float32)
                     + bf_ref[...])
                rz = _sigmoid_via_tanh(g[:, :2 * Hp])
                r, z = rz[:, :Hp], rz[:, Hp:]
                n = jnp.tanh(g[:, 2 * Hp:3 * Hp] + r * g[:, 3 * Hp:])
                h = (1.0 - z) * n + z * h_prev
                new_hs.append(h)

            # masked accumulation of top-layer output (mask already folded with 1/t_max)
            acc = acc + m * h
            return tuple(new_hs), acc

        _, acc = jax.lax.fori_loop(0, S, step, (h_init, acc_init), unroll=True)

        # ---- folded proj1 -> proj2 -> final head: single matmul, 128-lane-dense store ----
        out_ref[...] = (jnp.dot(acc.astype(cdt), whead_ref[...],
                                preferred_element_type=jnp.float32) + bhead_ref[...])

    return kernel


# ------------------------------ JAX wrapper -------------------------------- #

def ehr_rnn_forward(x_cat, x_cont, s_len, params, *, hidden_dim, num_layers, n_class,
                    hidden_pad=128, batch_tile=8, compute_dtype=jnp.bfloat16):
    H, Hp = hidden_dim, hidden_pad
    B, S, _ = x_cat.shape
    cdt = compute_dtype
    NC = 128                                   # lane-dense output width (n_class cols live)
    TB = batch_tile
    assert TB % 8 == 0, "batch tile must be sublane-aligned"
    Bp = ((B + TB - 1) // TB) * TB
    nbt = Bp // TB

    # --- glue: time-major embedding gather + feature concat (plain JAX) ---
    x_cat_tm = jnp.transpose(x_cat, (1, 0, 2))                           # (S, B, 4)
    embeds = [params["emb"][i][x_cat_tm[..., i]] for i in range(len(params["emb"]))]
    x_cont_tm = jnp.transpose(x_cont, (1, 0, 2)).astype(jnp.float32)     # (S, B, 2)
    x_tm = jnp.concatenate(embeds + [x_cont_tm], axis=-1)                # (S, B, D)
    D = x_tm.shape[-1]
    x_tm = jnp.pad(x_tm, ((0, 0), (0, Bp - B), (0, 0)))                  # (S, Bp, D)
    # group per batch tile, time-major flat inside the tile -> no in-kernel reshape
    x_tiles = (x_tm.reshape(S, nbt, TB, D)
                   .transpose(1, 0, 2, 3)
                   .reshape(nbt, S * TB, D))                             # (nbt, S*TB, D)

    # masked-mean mask: pre-divided by t_max and pre-broadcast to Hp lanes
    t_max = jnp.maximum(jnp.max(s_len), 1).astype(jnp.float32)           # /0 guard
    mask = (jnp.arange(S)[:, None] < s_len[None, :]).astype(jnp.float32) / t_max
    mask = jnp.pad(mask, ((0, 0), (0, Bp - B)))
    mask = jnp.broadcast_to(mask[:, :, None], (S, Bp, Hp))               # (S, Bp, Hp)

    # --- glue: gate-aligned (128-lane slots), pre-transposed weight packing, bf16 cast ---
    def pad_cols(w):    # (K, H) -> (K, Hp)
        return jnp.pad(w, ((0, 0), (0, Hp - H)))

    def pad_gate(w):    # (K, H) -> (Hp, Hp)   (pad contraction rows and gate cols)
        return jnp.pad(w, ((0, Hp - w.shape[0]), (0, Hp - H)))

    def pad_b(b):       # (H,) -> (Hp,)
        return jnp.pad(b, (0, Hp - H))

    def gates(w):       # (3H, K) -> 3 transposed per-gate blocks (K, H)
        return [w[g * H:(g + 1) * H, :].T for g in range(3)]

    Wih0, Whh0, bih0, bhh0 = params["gru"][0]
    gi_r, gi_z, gi_n = gates(Wih0)                     # (D, H)
    gh_r, gh_z, gh_n = gates(Whh0)                     # (H, H)
    wih0_pad = jnp.concatenate([pad_cols(gi_r), pad_cols(gi_z), pad_cols(gi_n)],
                               axis=1).astype(cdt)                       # (D, 3Hp)
    bin0 = jnp.concatenate([pad_b(bih0[:H] + bhh0[:H]),
                            pad_b(bih0[H:2 * H] + bhh0[H:2 * H]),
                            pad_b(bih0[2 * H:])]).reshape(1, -1)         # (1, 3Hp) f32
    whh0_pad = jnp.concatenate([pad_gate(gh_r), pad_gate(gh_z), pad_gate(gh_n)],
                               axis=1).astype(cdt)                       # (Hp, 3Hp)
    bhh0n = jnp.concatenate([jnp.zeros((2 * Hp,), jnp.float32),
                             pad_b(bhh0[2 * H:])]).reshape(1, -1)        # (1, 3Hp) f32

    fused_args = []
    for l in range(1, num_layers):
        Wih, Whh, bih, bhh = params["gru"][l]
        i_r, i_z, i_n = gates(Wih)
        h_r, h_z, h_n = gates(Whh)
        zero = jnp.zeros((Hp, Hp), jnp.float32)
        # 4 gate slots: [r(in+h), z(in+h), n_from_input, n_from_hidden], split top/bot
        w_top = jnp.concatenate([pad_gate(i_r), pad_gate(i_z), pad_gate(i_n), zero],
                                axis=1).astype(cdt)                      # (Hp, 4Hp)
        w_bot = jnp.concatenate([pad_gate(h_r), pad_gate(h_z), zero, pad_gate(h_n)],
                                axis=1).astype(cdt)                      # (Hp, 4Hp)
        b_fused = jnp.concatenate([pad_b(bih[:H] + bhh[:H]),
                                   pad_b(bih[H:2 * H] + bhh[H:2 * H]),
                                   pad_b(bih[2 * H:]),
                                   pad_b(bhh[2 * H:])]).reshape(1, -1)   # (1, 4Hp) f32
        fused_args += [w_top, w_bot, b_fused]

    # --- fold proj1 -> proj2 -> final into one head (no nonlinearity between them) ---
    W1, b1 = params["W1"], params["b1"]
    W2, b2 = params["W2"], params["b2"]
    Wf, bf = params["Wf"], params["bf"]
    w_head = W1.T @ W2.T @ Wf.T                                          # (H, n_class) f32
    b_head = (b1 @ W2.T @ Wf.T + b2 @ Wf.T + bf)                         # (n_class,)
    w_head_pad = jnp.pad(w_head, ((0, Hp - H), (0, NC - n_class))).astype(cdt)  # (Hp, 128)
    b_head_pad = jnp.pad(b_head, (0, NC - n_class)).reshape(1, -1)       # (1, 128) f32

    args = [x_tiles, mask, wih0_pad, bin0, whh0_pad, bhh0n, *fused_args,
            w_head_pad, b_head_pad]

    # --- BlockSpecs: batch-tiled x/mask/out, weights whole-array VMEM-resident ---
    vmem = pl.BlockSpec(memory_space=pltpu.MemorySpace.VMEM)
    in_specs = ([pl.BlockSpec((None, S * TB, D), lambda i: (i, 0, 0)),   # x tile (S*TB, D)
                 pl.BlockSpec((S, TB, Hp), lambda i: (0, i, 0))]         # mask tile
                + [vmem] * (len(args) - 2))
    out_specs = pl.BlockSpec((TB, NC), lambda i: (i, 0))

    # VMEM budget: resident weights + double-buffered batch tiles + gt0 scratch + headroom.
    weight_bytes = sum(int(a.size) * a.dtype.itemsize for a in args[2:])
    tile_bytes = 2 * (S * TB * D * 4 + S * TB * Hp * 4 + TB * NC * 4)
    scratch_bytes = S * TB * 3 * Hp * 4
    vmem_limit = max(int(1.5 * (weight_bytes + tile_bytes + scratch_bytes)) + (2 << 20),
                     32 << 20)
    vmem_limit = min(vmem_limit, 56 << 20)        # stay under v7x's 64 MiB physical VMEM

    kernel = _make_kernel(num_layers, Hp, S, TB, cdt)

    out = pl.pallas_call(
        kernel,
        out_shape=jax.ShapeDtypeStruct((Bp, NC), jnp.float32),
        grid_spec=pltpu.PrefetchScalarGridSpec(
            num_scalar_prefetch=0,
            grid=(nbt,),
            in_specs=in_specs,
            out_specs=out_specs,
            scratch_shapes=[pltpu.VMEM((S * TB, 3 * Hp), jnp.float32)]),
        compiler_params=pltpu.CompilerParams(
            dimension_semantics=("parallel",),
            vmem_limit_bytes=vmem_limit),
    )(*args)
    return out[:B, :n_class]


# ----------------------- pure-JAX reference (for check) -------------------- #

def reference_forward(x_cat, x_cont, s_len, params, *, hidden_dim, num_layers):
    H = hidden_dim
    embeds = [params["emb"][i][x_cat[:, :, i]] for i in range(len(params["emb"]))]
    x = jnp.concatenate(embeds + [x_cont.astype(jnp.float32)], axis=2)
    B, S, D = x.shape
    hs = [jnp.zeros((B, H), jnp.float32) for _ in range(num_layers)]
    outs = []
    for t in range(S):
        inp = x[:, t, :]
        for l in range(num_layers):
            Wih, Whh, bih, bhh = params["gru"][l]
            gi = inp @ Wih.T + bih
            gh = hs[l] @ Whh.T + bhh
            r = jax.nn.sigmoid(gi[:, :H] + gh[:, :H])
            z = jax.nn.sigmoid(gi[:, H:2 * H] + gh[:, H:2 * H])
            n = jnp.tanh(gi[:, 2 * H:] + r * gh[:, 2 * H:])
            hs[l] = (1.0 - z) * n + z * hs[l]
            inp = hs[l]
        outs.append(inp)
    out = jnp.stack(outs, axis=1)                              # (B, S, H)
    mask = (jnp.arange(S)[None, :] < s_len[:, None]).astype(jnp.float32)[:, :, None]
    mean = jnp.sum(out * mask, axis=1) / jnp.max(s_len).astype(jnp.float32)
    p1 = mean @ params["W1"].T + params["b1"]
    p2 = p1 @ params["W2"].T + params["b2"]
    return p2 @ params["Wf"].T + params["bf"]


# --------------------------------- main ------------------------------------ #

if __name__ == "__main__":
    # Small config consistent with the module's forward.
    embedding_sizes = [6, 11, 4816, 1116]
    embed_dim = 8
    hidden_dim = 32
    num_layers = 2
    n_class = 4
    B, S = 2, 8
    input_size = embed_dim * len(embedding_sizes) + 2

    key = jax.random.PRNGKey(0)
    ks = iter(jax.random.split(key, 64))

    # Deterministic parameter init (synthetic; not a checkpoint load).
    params = {"emb": [], "gru": []}
    for cat in embedding_sizes:
        tbl = jax.random.normal(next(ks), (cat, embed_dim), jnp.float32)
        tbl = tbl.at[0].set(0.0)   # padding_idx = 0
        params["emb"].append(tbl)

    k = 1.0 / jnp.sqrt(jnp.float32(hidden_dim))
    for l in range(num_layers):
        in_l = input_size if l == 0 else hidden_dim
        Wih = jax.random.uniform(next(ks), (3 * hidden_dim, in_l), jnp.float32, -k, k)
        Whh = jax.random.uniform(next(ks), (3 * hidden_dim, hidden_dim), jnp.float32, -k, k)
        bih = jax.random.uniform(next(ks), (3 * hidden_dim,), jnp.float32, -k, k)
        bhh = jax.random.uniform(next(ks), (3 * hidden_dim,), jnp.float32, -k, k)
        params["gru"].append((Wih, Whh, bih, bhh))

    params["W1"] = jax.random.uniform(next(ks), (hidden_dim // 2, hidden_dim), jnp.float32, -k, k)
    params["b1"] = jax.random.uniform(next(ks), (hidden_dim // 2,), jnp.float32, -k, k)
    params["W2"] = jax.random.uniform(next(ks), (hidden_dim // 4, hidden_dim // 2), jnp.float32, -k, k)
    params["b2"] = jax.random.uniform(next(ks), (hidden_dim // 4,), jnp.float32, -k, k)
    params["Wf"] = jax.random.uniform(next(ks), (n_class, hidden_dim // 4), jnp.float32, -k, k)
    params["bf"] = jax.random.uniform(next(ks), (n_class,), jnp.float32, -k, k)

    # Deterministic inputs.
    x_cat = jnp.stack(
        [jax.random.randint(next(ks), (B, S), 0, c, jnp.int32) for c in embedding_sizes],
        axis=-1)                                               # (B, S, 4)
    x_cont = jax.random.normal(next(ks), (B, S, 2), jnp.float32)
    s_len = jnp.array([S, 5], dtype=jnp.int32)                 # valid lengths per batch

    ref = reference_forward(x_cat, x_cont, s_len, params,
                            hidden_dim=hidden_dim, num_layers=num_layers)

    # f32 compute path: tight check of kernel structure / semantics.
    fwd32 = functools.partial(ehr_rnn_forward, hidden_dim=hidden_dim,
                              num_layers=num_layers, n_class=n_class,
                              compute_dtype=jnp.float32)
    out32 = jax.block_until_ready(jax.jit(fwd32)(x_cat, x_cont, s_len, params))
    assert out32.shape == (B, n_class)
    assert jnp.allclose(out32, ref, rtol=1e-3, atol=1e-3)

    # bf16 MXU-operand path (production default): looser tolerance vs the f32 reference.
    fwd16 = functools.partial(ehr_rnn_forward, hidden_dim=hidden_dim,
                              num_layers=num_layers, n_class=n_class,
                              compute_dtype=jnp.bfloat16)
    out16 = jax.block_until_ready(jax.jit(fwd16)(x_cat, x_cont, s_len, params))
    assert out16.shape == (B, n_class)
    assert jnp.allclose(out16, ref, rtol=5e-2, atol=5e-2)

    print("KERNEL_OK")
</pallas_src>

<mosaic_0001>
module attributes {stable_mosaic.version = 11 : i64} {
  func.func @kernel(%arg0: i32, %arg1: memref<1x64x34xf32, #tpu.memory_space<vmem>>, %arg2: memref<8x8x128xf32, #tpu.memory_space<vmem>>, %arg3: memref<34x384xf32, #tpu.memory_space<vmem>>, %arg4: memref<1x384xf32, #tpu.memory_space<vmem>>, %arg5: memref<128x384xf32, #tpu.memory_space<vmem>>, %arg6: memref<1x384xf32, #tpu.memory_space<vmem>>, %arg7: memref<128x512xf32, #tpu.memory_space<vmem>>, %arg8: memref<128x512xf32, #tpu.memory_space<vmem>>, %arg9: memref<1x512xf32, #tpu.memory_space<vmem>>, %arg10: memref<128x128xf32, #tpu.memory_space<vmem>>, %arg11: memref<1x128xf32, #tpu.memory_space<vmem>>, %arg12: memref<8x128xf32, #tpu.memory_space<vmem>>, %arg13: memref<64x384xf32, #tpu.memory_space<vmem>>) attributes {dimension_semantics = [#tpu.dimension_semantics<parallel>], iteration_bounds = array<i64: 1>, scalar_prefetch = 0 : i64, scratch_operands = 1 : i64, tpu.core_type = #tpu.core_type<tc>, window_params = [{transform_indices = @transform_0, window_bounds = array<i64: 1, 64, 34>}, {transform_indices = @transform_1, window_bounds = array<i64: 8, 8, 128>}, {pipeline_mode = #tpu.pipeline_mode<synchronous>, transform_indices = @transform_2, window_bounds = array<i64: 34, 384>}, {pipeline_mode = #tpu.pipeline_mode<synchronous>, transform_indices = @transform_3, window_bounds = array<i64: 1, 384>}, {pipeline_mode = #tpu.pipeline_mode<synchronous>, transform_indices = @transform_4, window_bounds = array<i64: 128, 384>}, {pipeline_mode = #tpu.pipeline_mode<synchronous>, transform_indices = @transform_5, window_bounds = array<i64: 1, 384>}, {pipeline_mode = #tpu.pipeline_mode<synchronous>, transform_indices = @transform_6, window_bounds = array<i64: 128, 512>}, {pipeline_mode = #tpu.pipeline_mode<synchronous>, transform_indices = @transform_7, window_bounds = array<i64: 128, 512>}, {pipeline_mode = #tpu.pipeline_mode<synchronous>, transform_indices = @transform_8, window_bounds = array<i64: 1, 512>}, {pipeline_mode = #tpu.pipeline_mode<synchronous>, transform_indices = @transform_9, window_bounds = array<i64: 128, 128>}, {pipeline_mode = #tpu.pipeline_mode<synchronous>, transform_indices = @transform_10, window_bounds = array<i64: 1, 128>}, {transform_indices = @transform_11, window_bounds = array<i64: 8, 128>}]} {
    %c0 = arith.constant 0 : index
    %c0_0 = arith.constant 0 : index
    %c0_1 = arith.constant 0 : index
    %0 = vector.load %arg1[%c0, %c0_0, %c0_1] : memref<1x64x34xf32, #tpu.memory_space<vmem>>, vector<1x64x34xf32>
    %1 = vector.shape_cast %0 : vector<1x64x34xf32> to vector<64x34xf32>
    %c0_2 = arith.constant 0 : index
    %c0_3 = arith.constant 0 : index
    %2 = vector.load %arg3[%c0_2, %c0_3] : memref<34x384xf32, #tpu.memory_space<vmem>>, vector<34x384xf32>
    %cst = arith.constant dense<0.000000e+00> : vector<64x384xf32>
    %3 = tpu.matmul %1, %2, %cst {dimension_numbers = #tpu.dot_dimension_numbers<[1], [0], [0], [1], [0, 0, 1, 1], [], []>} : vector<64x34xf32>, vector<34x384xf32>, vector<64x384xf32> -> vector<64x384xf32>
    %c0_4 = arith.constant 0 : index
    %c0_5 = arith.constant 0 : index
    %4 = vector.load %arg4[%c0_4, %c0_5] : memref<1x384xf32, #tpu.memory_space<vmem>>, vector<1x384xf32>
    %5 = vector.broadcast %4 : vector<1x384xf32> to vector<64x384xf32>
    %6 = arith.addf %3, %5 : vector<64x384xf32>
    %c0_6 = arith.constant 0 : index
    %c0_7 = arith.constant 0 : index
    %7 = vector.load %arg13[%c0_6, %c0_7] : memref<64x384xf32, #tpu.memory_space<vmem>>, vector<64x384xf32>
    tpu.vector_store %arg13[%c0_6, %c0_7], %6 {strides = array<i32>} : memref<64x384xf32, #tpu.memory_space<vmem>>, vector<64x384xf32>,
    %cst_8 = arith.constant 0.000000e+00 : f32
    %8 = vector.broadcast %cst_8 : f32 to vector<8x128xf32>
    %cst_9 = arith.constant 0.000000e+00 : f32
    %9 = vector.broadcast %cst_9 : f32 to vector<8x128xf32>
    %cst_10 = arith.constant 0.000000e+00 : f32
    %10 = vector.broadcast %cst_10 : f32 to vector<8x128xf32>
    %c0_i32 = arith.constant 0 : i32
    %11 = arith.index_cast %c0_i32 : i32 to index
    %c0_11 = arith.constant 0 : index
    %c0_12 = arith.constant 0 : index
    %12 = vector.load %arg2[%11, %c0_11, %c0_12] : memref<8x8x128xf32, #tpu.memory_space<vmem>>, vector<1x8x128xf32>
    %13 = vector.shape_cast %12 : vector<1x8x128xf32> to vector<8x128xf32>
    %c8_i32 = arith.constant 8 : i32
    %14 = arith.muli %c0_i32, %c8_i32 : i32
    %15 = tpu.assume_multiple %14, 8 : i32
    %16 = arith.index_cast %15 : i32 to index
    %c0_13 = arith.constant 0 : index
    %17 = vector.load %arg13[%16, %c0_13] : memref<64x384xf32, #tpu.memory_space<vmem>>, vector<8x384xf32>
    %c0_14 = arith.constant 0 : index
    %c0_15 = arith.constant 0 : index
    %18 = vector.load %arg5[%c0_14, %c0_15] : memref<128x384xf32, #tpu.memory_space<vmem>>, vector<128x384xf32>
    %cst_16 = arith.constant dense<0.000000e+00> : vector<8x384xf32>
    %19 = tpu.matmul %8, %18, %cst_16 {dimension_numbers = #tpu.dot_dimension_numbers<[1], [0], [0], [1], [0, 0, 1, 1], [], []>} : vector<8x128xf32>, vector<128x384xf32>, vector<8x384xf32> -> vector<8x384xf32>
    %c0_17 = arith.constant 0 : index
    %c0_18 = arith.constant 0 : index
    %20 = vector.load %arg6[%c0_17, %c0_18] : memref<1x384xf32, #tpu.memory_space<vmem>>, vector<1x384xf32>
    %21 = vector.broadcast %20 : vector<1x384xf32> to vector<8x384xf32>
    %22 = arith.addf %19, %21 : vector<8x384xf32>
    %23 = vector.extract_strided_slice %17 {offsets = [0, 0], sizes = [8, 256], strides = [1, 1]} : vector<8x384xf32> to vector<8x256xf32>
    %24 = vector.extract_strided_slice %22 {offsets = [0, 0], sizes = [8, 256], strides = [1, 1]} : vector<8x384xf32> to vector<8x256xf32>
    %25 = arith.addf %23, %24 : vector<8x256xf32>
    %cst_19 = arith.constant 5.000000e-01 : f32
    %26 = vector.broadcast %cst_19 : f32 to vector<8x256xf32>
    %27 = arith.mulf %26, %25 : vector<8x256xf32>
    %28 = math.tanh %27 : vector<8x256xf32>
    %cst_20 = arith.constant 5.000000e-01 : f32
    %29 = vector.broadcast %cst_20 : f32 to vector<8x256xf32>
    %30 = arith.mulf %29, %28 : vector<8x256xf32>
    %cst_21 = arith.constant 5.000000e-01 : f32
    %31 = vector.broadcast %cst_21 : f32 to vector<8x256xf32>
    %32 = arith.addf %30, %31 : vector<8x256xf32>
    %33 = vector.extract_strided_slice %32 {offsets = [0, 0], sizes = [8, 128], strides = [1, 1]} : vector<8x256xf32> to vector<8x128xf32>
    %34 = vector.extract_strided_slice %32 {offsets = [0, 128], sizes = [8, 128], strides = [1, 1]} : vector<8x256xf32> to vector<8x128xf32>
    %35 = vector.extract_strided_slice %17 {offsets = [0, 256], sizes = [8, 128], strides = [1, 1]} : vector<8x384xf32> to vector<8x128xf32>
    %36 = vector.extract_strided_slice %22 {offsets = [0, 256], sizes = [8, 128], strides = [1, 1]} : vector<8x384xf32> to vector<8x128xf32>
    %37 = arith.mulf %33, %36 : vector<8x128xf32>
    %38 = arith.addf %35, %37 : vector<8x128xf32>
    %39 = math.tanh %38 : vector<8x128xf32>
    %cst_22 = arith.constant 1.000000e+00 : f32
    %40 = vector.broadcast %cst_22 : f32 to vector<8x128xf32>
    %41 = arith.subf %40, %34 : vector<8x128xf32>
    %42 = arith.mulf %41, %39 : vector<8x128xf32>
    %43 = arith.mulf %34, %8 : vector<8x128xf32>
    %44 = arith.addf %42, %43 : vector<8x128xf32>
    %c0_23 = arith.constant 0 : index
    %c0_24 = arith.constant 0 : index
    %45 = vector.load %arg7[%c0_23, %c0_24] : memref<128x512xf32, #tpu.memory_space<vmem>>, vector<128x512xf32>
    %cst_25 = arith.constant dense<0.000000e+00> : vector<8x512xf32>
    %46 = tpu.matmul %44, %45, %cst_25 {dimension_numbers = #tpu.dot_dimension_numbers<[1], [0], [0], [1], [0, 0, 1, 1], [], []>} : vector<8x128xf32>, vector<128x512xf32>, vector<8x512xf32> -> vector<8x512xf32>
    %c0_26 = arith.constant 0 : index
    %c0_27 = arith.constant 0 : index
    %47 = vector.load %arg8[%c0_26, %c0_27] : memref<128x512xf32, #tpu.memory_space<vmem>>, vector<128x512xf32>
    %cst_28 = arith.constant dense<0.000000e+00> : vector<8x512xf32>
    %48 = tpu.matmul %9, %47, %cst_28 {dimension_numbers = #tpu.dot_dimension_numbers<[1], [0], [0], [1], [0, 0, 1, 1], [], []>} : vector<8x128xf32>, vector<128x512xf32>, vector<8x512xf32> -> vector<8x512xf32>
    %49 = arith.addf %46, %48 : vector<8x512xf32>
    %c0_29 = arith.constant 0 : index
    %c0_30 = arith.constant 0 : index
    %50 = vector.load %arg9[%c0_29, %c0_30] : memref<1x512xf32, #tpu.memory_space<vmem>>, vector<1x512xf32>
    %51 = vector.broadcast %50 : vector<1x512xf32> to vector<8x512xf32>
    %52 = arith.addf %49, %51 : vector<8x512xf32>
    %53 = vector.extract_strided_slice %52 {offsets = [0, 0], sizes = [8, 256], strides = [1, 1]} : vector<8x512xf32> to vector<8x256xf32>
    %cst_31 = arith.constant 5.000000e-01 : f32
    %54 = vector.broadcast %cst_31 : f32 to vector<8x256xf32>
    %55 = arith.mulf %54, %53 : vector<8x256xf32>
    %56 = math.tanh %55 : vector<8x256xf32>
    %cst_32 = arith.constant 5.000000e-01 : f32
    %57 = vector.broadcast %cst_32 : f32 to vector<8x256xf32>
    %58 = arith.mulf %57, %56 : vector<8x256xf32>
    %cst_33 = arith.constant 5.000000e-01 : f32
    %59 = vector.broadcast %cst_33 : f32 to vector<8x256xf32>
    %60 = arith.addf %58, %59 : vector<8x256xf32>
    %61 = vector.extract_strided_slice %60 {offsets = [0, 0], sizes = [8, 128], strides = [1, 1]} : vector<8x256xf32> to vector<8x128xf32>
    %62 = vector.extract_strided_slice %60 {offsets = [0, 128], sizes = [8, 128], strides = [1, 1]} : vector<8x256xf32> to vector<8x128xf32>
    %63 = vector.extract_strided_slice %52 {offsets = [0, 256], sizes = [8, 128], strides = [1, 1]} : vector<8x512xf32> to vector<8x128xf32>
    %64 = vector.extract_strided_slice %52 {offsets = [0, 384], sizes = [8, 128], strides = [1, 1]} : vector<8x512xf32> to vector<8x128xf32>
    %65 = arith.mulf %61, %64 : vector<8x128xf32>
    %66 = arith.addf %63, %65 : vector<8x128xf32>
    %67 = math.tanh %66 : vector<8x128xf32>
    %cst_34 = arith.constant 1.000000e+00 : f32
    %68 = vector.broadcast %cst_34 : f32 to vector<8x128xf32>
    %69 = arith.subf %68, %62 : vector<8x128xf32>
    %70 = arith.mulf %69, %67 : vector<8x128xf32>
    %71 = arith.mulf %62, %9 : vector<8x128xf32>
    %72 = arith.addf %70, %71 : vector<8x128xf32>
    %73 = arith.mulf %13, %72 : vector<8x128xf32>
    %74 = arith.addf %10, %73 : vector<8x128xf32>
    %c1_i32 = arith.constant 1 : i32
    %75 = arith.index_cast %c1_i32 : i32 to index
    %c0_35 = arith.constant 0 : index
    %c0_36 = arith.constant 0 : index
    %76 = vector.load %arg2[%75, %c0_35, %c0_36] : memref<8x8x128xf32, #tpu.memory_space<vmem>>, vector<1x8x128xf32>
    %77 = vector.shape_cast %76 : vector<1x8x128xf32> to vector<8x128xf32>
    %c8_i32_37 = arith.constant 8 : i32
    %78 = arith.muli %c1_i32, %c8_i32_37 : i32
    %79 = tpu.assume_multiple %78, 8 : i32
    %80 = arith.index_cast %79 : i32 to index
    %c0_38 = arith.constant 0 : index
    %81 = vector.load %arg13[%80, %c0_38] : memref<64x384xf32, #tpu.memory_space<vmem>>, vector<8x384xf32>
    %c0_39 = arith.constant 0 : index
    %c0_40 = arith.constant 0 : index
    %82 = vector.load %arg5[%c0_39, %c0_40] : memref<128x384xf32, #tpu.memory_space<vmem>>, vector<128x384xf32>
    %cst_41 = arith.constant dense<0.000000e+00> : vector<8x384xf32>
    %83 = tpu.matmul %44, %82, %cst_41 {dimension_numbers = #tpu.dot_dimension_numbers<[1], [0], [0], [1], [0, 0, 1, 1], [], []>} : vector<8x128xf32>, vector<128x384xf32>, vector<8x384xf32> -> vector<8x384xf32>
    %c0_42 = arith.constant 0 : index
    %c0_43 = arith.constant 0 : index
    %84 = vector.load %arg6[%c0_42, %c0_43] : memref<1x384xf32, #tpu.memory_space<vmem>>, vector<1x384xf32>
    %85 = vector.broadcast %84 : vector<1x384xf32> to vector<8x384xf32>
    %86 = arith.addf %83, %85 : vector<8x384xf32>
    %87 = vector.extract_strided_slice %81 {offsets = [0, 0], sizes = [8, 256], strides = [1, 1]} : vector<8x384xf32> to vector<8x256xf32>
    %88 = vector.extract_strided_slice %86 {offsets = [0, 0], sizes = [8, 256], strides = [1, 1]} : vector<8x384xf32> to vector<8x256xf32>
    %89 = arith.addf %87, %88 : vector<8x256xf32>
    %cst_44 = arith.constant 5.000000e-01 : f32
    %90 = vector.broadcast %cst_44 : f32 to vector<8x256xf32>
    %91 = arith.mulf %90, %89 : vector<8x256xf32>
    %92 = math.tanh %91 : vector<8x256xf32>
    %cst_45 = arith.constant 5.000000e-01 : f32
    %93 = vector.broadcast %cst_45 : f32 to vector<8x256xf32>
    %94 = arith.mulf %93, %92 : vector<8x256xf32>
    %cst_46 = arith.constant 5.000000e-01 : f32
    %95 = vector.broadcast %cst_46 : f32 to vector<8x256xf32>
    %96 = arith.addf %94, %95 : vector<8x256xf32>
    %97 = vector.extract_strided_slice %96 {offsets = [0, 0], sizes = [8, 128], strides = [1, 1]} : vector<8x256xf32> to vector<8x128xf32>
    %98 = vector.extract_strided_slice %96 {offsets = [0, 128], sizes = [8, 128], strides = [1, 1]} : vector<8x256xf32> to vector<8x128xf32>
    %99 = vector.extract_strided_slice %81 {offsets = [0, 256], sizes = [8, 128], strides = [1, 1]} : vector<8x384xf32> to vector<8x128xf32>
    %100 = vector.extract_strided_slice %86 {offsets = [0, 256], sizes = [8, 128], strides = [1, 1]} : vector<8x384xf32> to vector<8x128xf32>
    %101 = arith.mulf %97, %100 : vector<8x128xf32>
    %102 = arith.addf %99, %101 : vector<8x128xf32>
    %103 = math.tanh %102 : vector<8x128xf32>
    %cst_47 = arith.constant 1.000000e+00 : f32
    %104 = vector.broadcast %cst_47 : f32 to vector<8x128xf32>
    %105 = arith.subf %104, %98 : vector<8x128xf32>
    %106 = arith.mulf %105, %103 : vector<8x128xf32>
    %107 = arith.mulf %98, %44 : vector<8x128xf32>
    %108 = arith.addf %106, %107 : vector<8x128xf32>
    %c0_48 = arith.constant 0 : index
    %c0_49 = arith.constant 0 : index
    %109 = vector.load %arg7[%c0_48, %c0_49] : memref<128x512xf32, #tpu.memory_space<vmem>>, vector<128x512xf32>
    %cst_50 = arith.constant dense<0.000000e+00> : vector<8x512xf32>
    %110 = tpu.matmul %108, %109, %cst_50 {dimension_numbers = #tpu.dot_dimension_numbers<[1], [0], [0], [1], [0, 0, 1, 1], [], []>} : vector<8x128xf32>, vector<128x512xf32>, vector<8x512xf32> -> vector<8x512xf32>
    %c0_51 = arith.constant 0 : index
    %c0_52 = arith.constant 0 : index
    %111 = vector.load %arg8[%c0_51, %c0_52] : memref<128x512xf32, #tpu.memory_space<vmem>>, vector<128x512xf32>
    %cst_53 = arith.constant dense<0.000000e+00> : vector<8x512xf32>
    %112 = tpu.matmul %72, %111, %cst_53 {dimension_numbers = #tpu.dot_dimension_numbers<[1], [0], [0], [1], [0, 0, 1, 1], [], []>} : vector<8x128xf32>, vector<128x512xf32>, vector<8x512xf32> -> vector<8x512xf32>
    %113 = arith.addf %110, %112 : vector<8x512xf32>
    %c0_54 = arith.constant 0 : index
    %c0_55 = arith.constant 0 : index
    %114 = vector.load %arg9[%c0_54, %c0_55] : memref<1x512xf32, #tpu.memory_space<vmem>>, vector<1x512xf32>
    %115 = vector.broadcast %114 : vector<1x512xf32> to vector<8x512xf32>
    %116 = arith.addf %113, %115 : vector<8x512xf32>
    %117 = vector.extract_strided_slice %116 {offsets = [0, 0], sizes = [8, 256], strides = [1, 1]} : vector<8x512xf32> to vector<8x256xf32>
    %cst_56 = arith.constant 5.000000e-01 : f32
    %118 = vector.broadcast %cst_56 : f32 to vector<8x256xf32>
    %119 = arith.mulf %118, %117 : vector<8x256xf32>
    %120 = math.tanh %119 : vector<8x256xf32>
    %cst_57 = arith.constant 5.000000e-01 : f32
    %121 = vector.broadcast %cst_57 : f32 to vector<8x256xf32>
    %122 = arith.mulf %121, %120 : vector<8x256xf32>
    %cst_58 = arith.constant 5.000000e-01 : f32
    %123 = vector.broadcast %cst_58 : f32 to vector<8x256xf32>
    %124 = arith.addf %122, %123 : vector<8x256xf32>
    %125 = vector.extract_strided_slice %124 {offsets = [0, 0], sizes = [8, 128], strides = [1, 1]} : vector<8x256xf32> to vector<8x128xf32>
    %126 = vector.extract_strided_slice %124 {offsets = [0, 128], sizes = [8, 128], strides = [1, 1]} : vector<8x256xf32> to vector<8x128xf32>
    %127 = vector.extract_strided_slice %116 {offsets = [0, 256], sizes = [8, 128], strides = [1, 1]} : vector<8x512xf32> to vector<8x128xf32>
    %128 = vector.extract_strided_slice %116 {offsets = [0, 384], sizes = [8, 128], strides = [1, 1]} : vector<8x512xf32> to vector<8x128xf32>
    %129 = arith.mulf %125, %128 : vector<8x128xf32>
    %130 = arith.addf %127, %129 : vector<8x128xf32>
    %131 = math.tanh %130 : vector<8x128xf32>
    %cst_59 = arith.constant 1.000000e+00 : f32
    %132 = vector.broadcast %cst_59 : f32 to vector<8x128xf32>
    %133 = arith.subf %132, %126 : vector<8x128xf32>
    %134 = arith.mulf %133, %131 : vector<8x128xf32>
    %135 = arith.mulf %126, %72 : vector<8x128xf32>
    %136 = arith.addf %134, %135 : vector<8x128xf32>
    %137 = arith.mulf %77, %136 : vector<8x128xf32>
    %138 = arith.addf %74, %137 : vector<8x128xf32>
    %c2_i32 = arith.constant 2 : i32
    %139 = arith.index_cast %c2_i32 : i32 to index
    %c0_60 = arith.constant 0 : index
    %c0_61 = arith.constant 0 : index
    %140 = vector.load %arg2[%139, %c0_60, %c0_61] : memref<8x8x128xf32, #tpu.memory_space<vmem>>, vector<1x8x128xf32>
    %141 = vector.shape_cast %140 : vector<1x8x128xf32> to vector<8x128xf32>
    %c8_i32_62 = arith.constant 8 : i32
    %142 = arith.muli %c2_i32, %c8_i32_62 : i32
    %143 = tpu.assume_multiple %142, 8 : i32
    %144 = arith.index_cast %143 : i32 to index
    %c0_63 = arith.constant 0 : index
    %145 = vector.load %arg13[%144, %c0_63] : memref<64x384xf32, #tpu.memory_space<vmem>>, vector<8x384xf32>
    %c0_64 = arith.constant 0 : index
    %c0_65 = arith.constant 0 : index
    %146 = vector.load %arg5[%c0_64, %c0_65] : memref<128x384xf32, #tpu.memory_space<vmem>>, vector<128x384xf32>
    %cst_66 = arith.constant dense<0.000000e+00> : vector<8x384xf32>
    %147 = tpu.matmul %108, %146, %cst_66 {dimension_numbers = #tpu.dot_dimension_numbers<[1], [0], [0], [1], [0, 0, 1, 1], [], []>} : vector<8x128xf32>, vector<128x384xf32>, vector<8x384xf32> -> vector<8x384xf32>
    %c0_67 = arith.constant 0 : index
    %c0_68 = arith.constant 0 : index
    %148 = vector.load %arg6[%c0_67, %c0_68] : memref<1x384xf32, #tpu.memory_space<vmem>>, vector<1x384xf32>
    %149 = vector.broadcast %148 : vector<1x384xf32> to vector<8x384xf32>
    %150 = arith.addf %147, %149 : vector<8x384xf32>
    %151 = vector.extract_strided_slice %145 {offsets = [0, 0], sizes = [8, 256], strides = [1, 1]} : vector<8x384xf32> to vector<8x256xf32>
    %152 = vector.extract_strided_slice %150 {offsets = [0, 0], sizes = [8, 256], strides = [1, 1]} : vector<8x384xf32> to vector<8x256xf32>
    %153 = arith.addf %151, %152 : vector<8x256xf32>
    %cst_69 = arith.constant 5.000000e-01 : f32
    %154 = vector.broadcast %cst_69 : f32 to vector<8x256xf32>
    %155 = arith.mulf %154, %153 : vector<8x256xf32>
    %156 = math.tanh %155 : vector<8x256xf32>
    %cst_70 = arith.constant 5.000000e-01 : f32
    %157 = vector.broadcast %cst_70 : f32 to vector<8x256xf32>
    %158 = arith.mulf %157, %156 : vector<8x256xf32>
    %cst_71 = arith.constant 5.000000e-01 : f32
    %159 = vector.broadcast %cst_71 : f32 to vector<8x256xf32>
    %160 = arith.addf %158, %159 : vector<8x256xf32>
    %161 = vector.extract_strided_slice %160 {offsets = [0, 0], sizes = [8, 128], strides = [1, 1]} : vector<8x256xf32> to vector<8x128xf32>
    %162 = vector.extract_strided_slice %160 {offsets = [0, 128], sizes = [8, 128], strides = [1, 1]} : vector<8x256xf32> to vector<8x128xf32>
    %163 = vector.extract_strided_slice %145 {offsets = [0, 256], sizes = [8, 128], strides = [1, 1]} : vector<8x384xf32> to vector<8x128xf32>
    %164 = vector.extract_strided_slice %150 {offsets = [0, 256], sizes = [8, 128], strides = [1, 1]} : vector<8x384xf32> to vector<8x128xf32>
    %165 = arith.mulf %161, %164 : vector<8x128xf32>
    %166 = arith.addf %163, %165 : vector<8x128xf32>
    %167 = math.tanh %166 : vector<8x128xf32>
    %cst_72 = arith.constant 1.000000e+00 : f32
    %168 = vector.broadcast %cst_72 : f32 to vector<8x128xf32>
    %169 = arith.subf %168, %162 : vector<8x128xf32>
    %170 = arith.mulf %169, %167 : vector<8x128xf32>
    %171 = arith.mulf %162, %108 : vector<8x128xf32>
    %172 = arith.addf %170, %171 : vector<8x128xf32>
    %c0_73 = arith.constant 0 : index
    %c0_74 = arith.constant 0 : index
    %173 = vector.load %arg7[%c0_73, %c0_74] : memref<128x512xf32, #tpu.memory_space<vmem>>, vector<128x512xf32>
    %cst_75 = arith.constant dense<0.000000e+00> : vector<8x512xf32>
    %174 = tpu.matmul %172, %173, %cst_75 {dimension_numbers = #tpu.dot_dimension_numbers<[1], [0], [0], [1], [0, 0, 1, 1], [], []>} : vector<8x128xf32>, vector<128x512xf32>, vector<8x512xf32> -> vector<8x512xf32>
    %c0_76 = arith.constant 0 : index
    %c0_77 = arith.constant 0 : index
    %175 = vector.load %arg8[%c0_76, %c0_77] : memref<128x512xf32, #tpu.memory_space<vmem>>, vector<128x512xf32>
    %cst_78 = arith.constant dense<0.000000e+00> : vector<8x512xf32>
    %176 = tpu.matmul %136, %175, %cst_78 {dimension_numbers = #tpu.dot_dimension_numbers<[1], [0], [0], [1], [0, 0, 1, 1], [], []>} : vector<8x128xf32>, vector<128x512xf32>, vector<8x512xf32> -> vector<8x512xf32>
    %177 = arith.addf %174, %176 : vector<8x512xf32>
    %c0_79 = arith.constant 0 : index
    %c0_80 = arith.constant 0 : index
    %178 = vector.load %arg9[%c0_79, %c0_80] : memref<1x512xf32, #tpu.memory_space<vmem>>, vector<1x512xf32>
    %179 = vector.broadcast %178 : vector<1x512xf32> to vector<8x512xf32>
    %180 = arith.addf %177, %179 : vector<8x512xf32>
    %181 = vector.extract_strided_slice %180 {offsets = [0, 0], sizes = [8, 256], strides = [1, 1]} : vector<8x512xf32> to vector<8x256xf32>
    %cst_81 = arith.constant 5.000000e-01 : f32
    %182 = vector.broadcast %cst_81 : f32 to vector<8x256xf32>
    %183 = arith.mulf %182, %181 : vector<8x256xf32>
    %184 = math.tanh %183 : vector<8x256xf32>
    %cst_82 = arith.constant 5.000000e-01 : f32
    %185 = vector.broadcast %cst_82 : f32 to vector<8x256xf32>
    %186 = arith.mulf %185, %184 : vector<8x256xf32>
    %cst_83 = arith.constant 5.000000e-01 : f32
    %187 = vector.broadcast %cst_83 : f32 to vector<8x256xf32>
    %188 = arith.addf %186, %187 : vector<8x256xf32>
    %189 = vector.extract_strided_slice %188 {offsets = [0, 0], sizes = [8, 128], strides = [1, 1]} : vector<8x256xf32> to vector<8x128xf32>
    %190 = vector.extract_strided_slice %188 {offsets = [0, 128], sizes = [8, 128], strides = [1, 1]} : vector<8x256xf32> to vector<8x128xf32>
    %191 = vector.extract_strided_slice %180 {offsets = [0, 256], sizes = [8, 128], strides = [1, 1]} : vector<8x512xf32> to vector<8x128xf32>
    %192 = vector.extract_strided_slice %180 {offsets = [0, 384], sizes = [8, 128], strides = [1, 1]} : vector<8x512xf32> to vector<8x128xf32>
    %193 = arith.mulf %189, %192 : vector<8x128xf32>
    %194 = arith.addf %191, %193 : vector<8x128xf32>
    %195 = math.tanh %194 : vector<8x128xf32>
    %cst_84 = arith.constant 1.000000e+00 : f32
    %196 = vector.broadcast %cst_84 : f32 to vector<8x128xf32>
    %197 = arith.subf %196, %190 : vector<8x128xf32>
    %198 = arith.mulf %197, %195 : vector<8x128xf32>
    %199 = arith.mulf %190, %136 : vector<8x128xf32>
    %200 = arith.addf %198, %199 : vector<8x128xf32>
    %201 = arith.mulf %141, %200 : vector<8x128xf32>
    %202 = arith.addf %138, %201 : vector<8x128xf32>
    %c3_i32 = arith.constant 3 : i32
    %203 = arith.index_cast %c3_i32 : i32 to index
    %c0_85 = arith.constant 0 : index
    %c0_86 = arith.constant 0 : index
    %204 = vector.load %arg2[%203, %c0_85, %c0_86] : memref<8x8x128xf32, #tpu.memory_space<vmem>>, vector<1x8x128xf32>
    %205 = vector.shape_cast %204 : vector<1x8x128xf32> to vector<8x128xf32>
    %c8_i32_87 = arith.constant 8 : i32
    %206 = arith.muli %c3_i32, %c8_i32_87 : i32
    %207 = tpu.assume_multiple %206, 8 : i32
    %208 = arith.index_cast %207 : i32 to index
    %c0_88 = arith.constant 0 : index
    %209 = vector.load %arg13[%208, %c0_88] : memref<64x384xf32, #tpu.memory_space<vmem>>, vector<8x384xf32>
    %c0_89 = arith.constant 0 : index
    %c0_90 = arith.constant 0 : index
    %210 = vector.load %arg5[%c0_89, %c0_90] : memref<128x384xf32, #tpu.memory_space<vmem>>, vector<128x384xf32>
    %cst_91 = arith.constant dense<0.000000e+00> : vector<8x384xf32>
    %211 = tpu.matmul %172, %210, %cst_91 {dimension_numbers = #tpu.dot_dimension_numbers<[1], [0], [0], [1], [0, 0, 1, 1], [], []>} : vector<8x128xf32>, vector<128x384xf32>, vector<8x384xf32> -> vector<8x384xf32>
    %c0_92 = arith.constant 0 : index
    %c0_93 = arith.constant 0 : index
    %212 = vector.load %arg6[%c0_92, %c0_93] : memref<1x384xf32, #tpu.memory_space<vmem>>, vector<1x384xf32>
    %213 = vector.broadcast %212 : vector<1x384xf32> to vector<8x384xf32>
    %214 = arith.addf %211, %213 : vector<8x384xf32>
    %215 = vector.extract_strided_slice %209 {offsets = [0, 0], sizes = [8, 256], strides = [1, 1]} : vector<8x384xf32> to vector<8x256xf32>
    %216 = vector.extract_strided_slice %214 {offsets = [0, 0], sizes = [8, 256], strides = [1, 1]} : vector<8x384xf32> to vector<8x256xf32>
    %217 = arith.addf %215, %216 : vector<8x256xf32>
    %cst_94 = arith.constant 5.000000e-01 : f32
    %218 = vector.broadcast %cst_94 : f32 to vector<8x256xf32>
    %219 = arith.mulf %218, %217 : vector<8x256xf32>
    %220 = math.tanh %219 : vector<8x256xf32>
    %cst_95 = arith.constant 5.000000e-01 : f32
    %221 = vector.broadcast %cst_95 : f32 to vector<8x256xf32>
    %222 = arith.mulf %221, %220 : vector<8x256xf32>
    %cst_96 = arith.constant 5.000000e-01 : f32
    %223 = vector.broadcast %cst_96 : f32 to vector<8x256xf32>
    %224 = arith.addf %222, %223 : vector<8x256xf32>
    %225 = vector.extract_strided_slice %224 {offsets = [0, 0], sizes = [8, 128], strides = [1, 1]} : vector<8x256xf32> to vector<8x128xf32>
    %226 = vector.extract_strided_slice %224 {offsets = [0, 128], sizes = [8, 128], strides = [1, 1]} : vector<8x256xf32> to vector<8x128xf32>
    %227 = vector.extract_strided_slice %209 {offsets = [0, 256], sizes = [8, 128], strides = [1, 1]} : vector<8x384xf32> to vector<8x128xf32>
    %228 = vector.extract_strided_slice %214 {offsets = [0, 256], sizes = [8, 128], strides = [1, 1]} : vector<8x384xf32> to vector<8x128xf32>
    %229 = arith.mulf %225, %228 : vector<8x128xf32>
    %230 = arith.addf %227, %229 : vector<8x128xf32>
    %231 = math.tanh %230 : vector<8x128xf32>
    %cst_97 = arith.constant 1.000000e+00 : f32
    %232 = vector.broadcast %cst_97 : f32 to vector<8x128xf32>
    %233 = arith.subf %232, %226 : vector<8x128xf32>
    %234 = arith.mulf %233, %231 : vector<8x128xf32>
    %235 = arith.mulf %226, %172 : vector<8x128xf32>
    %236 = arith.addf %234, %235 : vector<8x128xf32>
    %c0_98 = arith.constant 0 : index
    %c0_99 = arith.constant 0 : index
    %237 = vector.load %arg7[%c0_98, %c0_99] : memref<128x512xf32, #tpu.memory_space<vmem>>, vector<128x512xf32>
    %cst_100 = arith.constant dense<0.000000e+00> : vector<8x512xf32>
    %238 = tpu.matmul %236, %237, %cst_100 {dimension_numbers = #tpu.dot_dimension_numbers<[1], [0], [0], [1], [0, 0, 1, 1], [], []>} : vector<8x128xf32>, vector<128x512xf32>, vector<8x512xf32> -> vector<8x512xf32>
    %c0_101 = arith.constant 0 : index
    %c0_102 = arith.constant 0 : index
    %239 = vector.load %arg8[%c0_101, %c0_102] : memref<128x512xf32, #tpu.memory_space<vmem>>, vector<128x512xf32>
    %cst_103 = arith.constant dense<0.000000e+00> : vector<8x512xf32>
    %240 = tpu.matmul %200, %239, %cst_103 {dimension_numbers = #tpu.dot_dimension_numbers<[1], [0], [0], [1], [0, 0, 1, 1], [], []>} : vector<8x128xf32>, vector<128x512xf32>, vector<8x512xf32> -> vector<8x512xf32>
    %241 = arith.addf %238, %240 : vector<8x512xf32>
    %c0_104 = arith.constant 0 : index
    %c0_105 = arith.constant 0 : index
    %242 = vector.load %arg9[%c0_104, %c0_105] : memref<1x512xf32, #tpu.memory_space<vmem>>, vector<1x512xf32>
    %243 = vector.broadcast %242 : vector<1x512xf32> to vector<8x512xf32>
    %244 = arith.addf %241, %243 : vector<8x512xf32>
    %245 = vector.extract_strided_slice %244 {offsets = [0, 0], sizes = [8, 256], strides = [1, 1]} : vector<8x512xf32> to vector<8x256xf32>
    %cst_106 = arith.constant 5.000000e-01 : f32
    %246 = vector.broadcast %cst_106 : f32 to vector<8x256xf32>
    %247 = arith.mulf %246, %245 : vector<8x256xf32>
    %248 = math.tanh %247 : vector<8x256xf32>
    %cst_107 = arith.constant 5.000000e-01 : f32
    %249 = vector.broadcast %cst_107 : f32 to vector<8x256xf32>
    %250 = arith.mulf %249, %248 : vector<8x256xf32>
    %cst_108 = arith.constant 5.000000e-01 : f32
    %251 = vector.broadcast %cst_108 : f32 to vector<8x256xf32>
    %252 = arith.addf %250, %251 : vector<8x256xf32>
    %253 = vector.extract_strided_slice %252 {offsets = [0, 0], sizes = [8, 128], strides = [1, 1]} : vector<8x256xf32> to vector<8x128xf32>
    %254 = vector.extract_strided_slice %252 {offsets = [0, 128], sizes = [8, 128], strides = [1, 1]} : vector<8x256xf32> to vector<8x128xf32>
    %255 = vector.extract_strided_slice %244 {offsets = [0, 256], sizes = [8, 128], strides = [1, 1]} : vector<8x512xf32> to vector<8x128xf32>
    %256 = vector.extract_strided_slice %244 {offsets = [0, 384], sizes = [8, 128], strides = [1, 1]} : vector<8x512xf32> to vector<8x128xf32>
    %257 = arith.mulf %253, %256 : vector<8x128xf32>
    %258 = arith.addf %255, %257 : vector<8x128xf32>
    %259 = math.tanh %258 : vector<8x128xf32>
    %cst_109 = arith.constant 1.000000e+00 : f32
    %260 = vector.broadcast %cst_109 : f32 to vector<8x128xf32>
    %261 = arith.subf %260, %254 : vector<8x128xf32>
    %262 = arith.mulf %261, %259 : vector<8x128xf32>
    %263 = arith.mulf %254, %200 : vector<8x128xf32>
    %264 = arith.addf %262, %263 : vector<8x128xf32>
    %265 = arith.mulf %205, %264 : vector<8x128xf32>
    %266 = arith.addf %202, %265 : vector<8x128xf32>
    %c4_i32 = arith.constant 4 : i32
    %267 = arith.index_cast %c4_i32 : i32 to index
    %c0_110 = arith.constant 0 : index
    %c0_111 = arith.constant 0 : index
    %268 = vector.load %arg2[%267, %c0_110, %c0_111] : memref<8x8x128xf32, #tpu.memory_space<vmem>>, vector<1x8x128xf32>
    %269 = vector.shape_cast %268 : vector<1x8x128xf32> to vector<8x128xf32>
    %c8_i32_112 = arith.constant 8 : i32
    %270 = arith.muli %c4_i32, %c8_i32_112 : i32
    %271 = tpu.assume_multiple %270, 8 : i32
    %272 = arith.index_cast %271 : i32 to index
    %c0_113 = arith.constant 0 : index
    %273 = vector.load %arg13[%272, %c0_113] : memref<64x384xf32, #tpu.memory_space<vmem>>, vector<8x384xf32>
    %c0_114 = arith.constant 0 : index
    %c0_115 = arith.constant 0 : index
    %274 = vector.load %arg5[%c0_114, %c0_115] : memref<128x384xf32, #tpu.memory_space<vmem>>, vector<128x384xf32>
    %cst_116 = arith.constant dense<0.000000e+00> : vector<8x384xf32>
    %275 = tpu.matmul %236, %274, %cst_116 {dimension_numbers = #tpu.dot_dimension_numbers<[1], [0], [0], [1], [0, 0, 1, 1], [], []>} : vector<8x128xf32>, vector<128x384xf32>, vector<8x384xf32> -> vector<8x384xf32>
    %c0_117 = arith.constant 0 : index
    %c0_118 = arith.constant 0 : index
    %276 = vector.load %arg6[%c0_117, %c0_118] : memref<1x384xf32, #tpu.memory_space<vmem>>, vector<1x384xf32>
    %277 = vector.broadcast %276 : vector<1x384xf32> to vector<8x384xf32>
    %278 = arith.addf %275, %277 : vector<8x384xf32>
    %279 = vector.extract_strided_slice %273 {offsets = [0, 0], sizes = [8, 256], strides = [1, 1]} : vector<8x384xf32> to vector<8x256xf32>
    %280 = vector.extract_strided_slice %278 {offsets = [0, 0], sizes = [8, 256], strides = [1, 1]} : vector<8x384xf32> to vector<8x256xf32>
    %281 = arith.addf %279, %280 : vector<8x256xf32>
    %cst_119 = arith.constant 5.000000e-01 : f32
    %282 = vector.broadcast %cst_119 : f32 to vector<8x256xf32>
    %283 = arith.mulf %282, %281 : vector<8x256xf32>
    %284 = math.tanh %283 : vector<8x256xf32>
    %cst_120 = arith.constant 5.000000e-01 : f32
    %285 = vector.broadcast %cst_120 : f32 to vector<8x256xf32>
    %286 = arith.mulf %285, %284 : vector<8x256xf32>
    %cst_121 = arith.constant 5.000000e-01 : f32
    %287 = vector.broadcast %cst_121 : f32 to vector<8x256xf32>
    %288 = arith.addf %286, %287 : vector<8x256xf32>
    %289 = vector.extract_strided_slice %288 {offsets = [0, 0], sizes = [8, 128], strides = [1, 1]} : vector<8x256xf32> to vector<8x128xf32>
    %290 = vector.extract_strided_slice %288 {offsets = [0, 128], sizes = [8, 128], strides = [1, 1]} : vector<8x256xf32> to vector<8x128xf32>
    %291 = vector.extract_strided_slice %273 {offsets = [0, 256], sizes = [8, 128], strides = [1, 1]} : vector<8x384xf32> to vector<8x128xf32>
    %292 = vector.extract_strided_slice %278 {offsets = [0, 256], sizes = [8, 128], strides = [1, 1]} : vector<8x384xf32> to vector<8x128xf32>
    %293 = arith.mulf %289, %292 : vector<8x128xf32>
    %294 = arith.addf %291, %293 : vector<8x128xf32>
    %295 = math.tanh %294 : vector<8x128xf32>
    %cst_122 = arith.constant 1.000000e+00 : f32
    %296 = vector.broadcast %cst_122 : f32 to vector<8x128xf32>
    %297 = arith.subf %296, %290 : vector<8x128xf32>
    %298 = arith.mulf %297, %295 : vector<8x128xf32>
    %299 = arith.mulf %290, %236 : vector<8x128xf32>
    %300 = arith.addf %298, %299 : vector<8x128xf32>
    %c0_123 = arith.constant 0 : index
    %c0_124 = arith.constant 0 : index
    %301 = vector.load %arg7[%c0_123, %c0_124] : memref<128x512xf32, #tpu.memory_space<vmem>>, vector<128x512xf32>
    %cst_125 = arith.constant dense<0.000000e+00> : vector<8x512xf32>
    %302 = tpu.matmul %300, %301, %cst_125 {dimension_numbers = #tpu.dot_dimension_numbers<[1], [0], [0], [1], [0, 0, 1, 1], [], []>} : vector<8x128xf32>, vector<128x512xf32>, vector<8x512xf32> -> vector<8x512xf32>
    %c0_126 = arith.constant 0 : index
    %c0_127 = arith.constant 0 : index
    %303 = vector.load %arg8[%c0_126, %c0_127] : memref<128x512xf32, #tpu.memory_space<vmem>>, vector<128x512xf32>
    %cst_128 = arith.constant dense<0.000000e+00> : vector<8x512xf32>
    %304 = tpu.matmul %264, %303, %cst_128 {dimension_numbers = #tpu.dot_dimension_numbers<[1], [0], [0], [1], [0, 0, 1, 1], [], []>} : vector<8x128xf32>, vector<128x512xf32>, vector<8x512xf32> -> vector<8x512xf32>
    %305 = arith.addf %302, %304 : vector<8x512xf32>
    %c0_129 = arith.constant 0 : index
    %c0_130 = arith.constant 0 : index
    %306 = vector.load %arg9[%c0_129, %c0_130] : memref<1x512xf32, #tpu.memory_space<vmem>>, vector<1x512xf32>
    %307 = vector.broadcast %306 : vector<1x512xf32> to vector<8x512xf32>
    %308 = arith.addf %305, %307 : vector<8x512xf32>
    %309 = vector.extract_strided_slice %308 {offsets = [0, 0], sizes = [8, 256], strides = [1, 1]} : vector<8x512xf32> to vector<8x256xf32>
    %cst_131 = arith.constant 5.000000e-01 : f32
    %310 = vector.broadcast %cst_131 : f32 to vector<8x256xf32>
    %311 = arith.mulf %310, %309 : vector<8x256xf32>
    %312 = math.tanh %311 : vector<8x256xf32>
    %cst_132 = arith.constant 5.000000e-01 : f32
    %313 = vector.broadcast %cst_132 : f32 to vector<8x256xf32>
    %314 = arith.mulf %313, %312 : vector<8x256xf32>
    %cst_133 = arith.constant 5.000000e-01 : f32
    %315 = vector.broadcast %cst_133 : f32 to vector<8x256xf32>
    %316 = arith.addf %314, %315 : vector<8x256xf32>
    %317 = vector.extract_strided_slice %316 {offsets = [0, 0], sizes = [8, 128], strides = [1, 1]} : vector<8x256xf32> to vector<8x128xf32>
    %318 = vector.extract_strided_slice %316 {offsets = [0, 128], sizes = [8, 128], strides = [1, 1]} : vector<8x256xf32> to vector<8x128xf32>
    %319 = vector.extract_strided_slice %308 {offsets = [0, 256], sizes = [8, 128], strides = [1, 1]} : vector<8x512xf32> to vector<8x128xf32>
    %320 = vector.extract_strided_slice %308 {offsets = [0, 384], sizes = [8, 128], strides = [1, 1]} : vector<8x512xf32> to vector<8x128xf32>
    %321 = arith.mulf %317, %320 : vector<8x128xf32>
    %322 = arith.addf %319, %321 : vector<8x128xf32>
    %323 = math.tanh %322 : vector<8x128xf32>
    %cst_134 = arith.constant 1.000000e+00 : f32
    %324 = vector.broadcast %cst_134 : f32 to vector<8x128xf32>
    %325 = arith.subf %324, %318 : vector<8x128xf32>
    %326 = arith.mulf %325, %323 : vector<8x128xf32>
    %327 = arith.mulf %318, %264 : vector<8x128xf32>
    %328 = arith.addf %326, %327 : vector<8x128xf32>
    %329 = arith.mulf %269, %328 : vector<8x128xf32>
    %330 = arith.addf %266, %329 : vector<8x128xf32>
    %c5_i32 = arith.constant 5 : i32
    %331 = arith.index_cast %c5_i32 : i32 to index
    %c0_135 = arith.constant 0 : index
    %c0_136 = arith.constant 0 : index
    %332 = vector.load %arg2[%331, %c0_135, %c0_136] : memref<8x8x128xf32, #tpu.memory_space<vmem>>, vector<1x8x128xf32>
    %333 = vector.shape_cast %332 : vector<1x8x128xf32> to vector<8x128xf32>
    %c8_i32_137 = arith.constant 8 : i32
    %334 = arith.muli %c5_i32, %c8_i32_137 : i32
    %335 = tpu.assume_multiple %334, 8 : i32
    %336 = arith.index_cast %335 : i32 to index
    %c0_138 = arith.constant 0 : index
    %337 = vector.load %arg13[%336, %c0_138] : memref<64x384xf32, #tpu.memory_space<vmem>>, vector<8x384xf32>
    %c0_139 = arith.constant 0 : index
    %c0_140 = arith.constant 0 : index
    %338 = vector.load %arg5[%c0_139, %c0_140] : memref<128x384xf32, #tpu.memory_space<vmem>>, vector<128x384xf32>
    %cst_141 = arith.constant dense<0.000000e+00> : vector<8x384xf32>
    %339 = tpu.matmul %300, %338, %cst_141 {dimension_numbers = #tpu.dot_dimension_numbers<[1], [0], [0], [1], [0, 0, 1, 1], [], []>} : vector<8x128xf32>, vector<128x384xf32>, vector<8x384xf32> -> vector<8x384xf32>
    %c0_142 = arith.constant 0 : index
    %c0_143 = arith.constant 0 : index
    %340 = vector.load %arg6[%c0_142, %c0_143] : memref<1x384xf32, #tpu.memory_space<vmem>>, vector<1x384xf32>
    %341 = vector.broadcast %340 : vector<1x384xf32> to vector<8x384xf32>
    %342 = arith.addf %339, %341 : vector<8x384xf32>
    %343 = vector.extract_strided_slice %337 {offsets = [0, 0], sizes = [8, 256], strides = [1, 1]} : vector<8x384xf32> to vector<8x256xf32>
    %344 = vector.extract_strided_slice %342 {offsets = [0, 0], sizes = [8, 256], strides = [1, 1]} : vector<8x384xf32> to vector<8x256xf32>
    %345 = arith.addf %343, %344 : vector<8x256xf32>
    %cst_144 = arith.constant 5.000000e-01 : f32
    %346 = vector.broadcast %cst_144 : f32 to vector<8x256xf32>
    %347 = arith.mulf %346, %345 : vector<8x256xf32>
    %348 = math.tanh %347 : vector<8x256xf32>
    %cst_145 = arith.constant 5.000000e-01 : f32
    %349 = vector.broadcast %cst_145 : f32 to vector<8x256xf32>
    %350 = arith.mulf %349, %348 : vector<8x256xf32>
    %cst_146 = arith.constant 5.000000e-01 : f32
    %351 = vector.broadcast %cst_146 : f32 to vector<8x256xf32>
    %352 = arith.addf %350, %351 : vector<8x256xf32>
    %353 = vector.extract_strided_slice %352 {offsets = [0, 0], sizes = [8, 128], strides = [1, 1]} : vector<8x256xf32> to vector<8x128xf32>
    %354 = vector.extract_strided_slice %352 {offsets = [0, 128], sizes = [8, 128], strides = [1, 1]} : vector<8x256xf32> to vector<8x128xf32>
    %355 = vector.extract_strided_slice %337 {offsets = [0, 256], sizes = [8, 128], strides = [1, 1]} : vector<8x384xf32> to vector<8x128xf32>
    %356 = vector.extract_strided_slice %342 {offsets = [0, 256], sizes = [8, 128], strides = [1, 1]} : vector<8x384xf32> to vector<8x128xf32>
    %357 = arith.mulf %353, %356 : vector<8x128xf32>
    %358 = arith.addf %355, %357 : vector<8x128xf32>
    %359 = math.tanh %358 : vector<8x128xf32>
    %cst_147 = arith.constant 1.000000e+00 : f32
    %360 = vector.broadcast %cst_147 : f32 to vector<8x128xf32>
    %361 = arith.subf %360, %354 : vector<8x128xf32>
    %362 = arith.mulf %361, %359 : vector<8x128xf32>
    %363 = arith.mulf %354, %300 : vector<8x128xf32>
    %364 = arith.addf %362, %363 : vector<8x128xf32>
    %c0_148 = arith.constant 0 : index
    %c0_149 = arith.constant 0 : index
    %365 = vector.load %arg7[%c0_148, %c0_149] : memref<128x512xf32, #tpu.memory_space<vmem>>, vector<128x512xf32>
    %cst_150 = arith.constant dense<0.000000e+00> : vector<8x512xf32>
    %366 = tpu.matmul %364, %365, %cst_150 {dimension_numbers = #tpu.dot_dimension_numbers<[1], [0], [0], [1], [0, 0, 1, 1], [], []>} : vector<8x128xf32>, vector<128x512xf32>, vector<8x512xf32> -> vector<8x512xf32>
    %c0_151 = arith.constant 0 : index
    %c0_152 = arith.constant 0 : index
    %367 = vector.load %arg8[%c0_151, %c0_152] : memref<128x512xf32, #tpu.memory_space<vmem>>, vector<128x512xf32>
    %cst_153 = arith.constant dense<0.000000e+00> : vector<8x512xf32>
    %368 = tpu.matmul %328, %367, %cst_153 {dimension_numbers = #tpu.dot_dimension_numbers<[1], [0], [0], [1], [0, 0, 1, 1], [], []>} : vector<8x128xf32>, vector<128x512xf32>, vector<8x512xf32> -> vector<8x512xf32>
    %369 = arith.addf %366, %368 : vector<8x512xf32>
    %c0_154 = arith.constant 0 : index
    %c0_155 = arith.constant 0 : index
    %370 = vector.load %arg9[%c0_154, %c0_155] : memref<1x512xf32, #tpu.memory_space<vmem>>, vector<1x512xf32>
    %371 = vector.broadcast %370 : vector<1x512xf32> to vector<8x512xf32>
    %372 = arith.addf %369, %371 : vector<8x512xf32>
    %373 = vector.extract_strided_slice %372 {offsets = [0, 0], sizes = [8, 256], strides = [1, 1]} : vector<8x512xf32> to vector<8x256xf32>
    %cst_156 = arith.constant 5.000000e-01 : f32
    %374 = vector.broadcast %cst_156 : f32 to vector<8x256xf32>
    %375 = arith.mulf %374, %373 : vector<8x256xf32>
    %376 = math.tanh %375 : vector<8x256xf32>
    %cst_157 = arith.constant 5.000000e-01 : f32
    %377 = vector.broadcast %cst_157 : f32 to vector<8x256xf32>
    %378 = arith.mulf %377, %376 : vector<8x256xf32>
    %cst_158 = arith.constant 5.000000e-01 : f32
    %379 = vector.broadcast %cst_158 : f32 to vector<8x256xf32>
    %380 = arith.addf %378, %379 : vector<8x256xf32>
    %381 = vector.extract_strided_slice %380 {offsets = [0, 0], sizes = [8, 128], strides = [1, 1]} : vector<8x256xf32> to vector<8x128xf32>
    %382 = vector.extract_strided_slice %380 {offsets = [0, 128], sizes = [8, 128], strides = [1, 1]} : vector<8x256xf32> to vector<8x128xf32>
    %383 = vector.extract_strided_slice %372 {offsets = [0, 256], sizes = [8, 128], strides = [1, 1]} : vector<8x512xf32> to vector<8x128xf32>
    %384 = vector.extract_strided_slice %372 {offsets = [0, 384], sizes = [8, 128], strides = [1, 1]} : vector<8x512xf32> to vector<8x128xf32>
    %385 = arith.mulf %381, %384 : vector<8x128xf32>
    %386 = arith.addf %383, %385 : vector<8x128xf32>
    %387 = math.tanh %386 : vector<8x128xf32>
    %cst_159 = arith.constant 1.000000e+00 : f32
    %388 = vector.broadcast %cst_159 : f32 to vector<8x128xf32>
    %389 = arith.subf %388, %382 : vector<8x128xf32>
    %390 = arith.mulf %389, %387 : vector<8x128xf32>
    %391 = arith.mulf %382, %328 : vector<8x128xf32>
    %392 = arith.addf %390, %391 : vector<8x128xf32>
    %393 = arith.mulf %333, %392 : vector<8x128xf32>
    %394 = arith.addf %330, %393 : vector<8x128xf32>
    %c6_i32 = arith.constant 6 : i32
    %395 = arith.index_cast %c6_i32 : i32 to index
    %c0_160 = arith.constant 0 : index
    %c0_161 = arith.constant 0 : index
    %396 = vector.load %arg2[%395, %c0_160, %c0_161] : memref<8x8x128xf32, #tpu.memory_space<vmem>>, vector<1x8x128xf32>
    %397 = vector.shape_cast %396 : vector<1x8x128xf32> to vector<8x128xf32>
    %c8_i32_162 = arith.constant 8 : i32
    %398 = arith.muli %c6_i32, %c8_i32_162 : i32
    %399 = tpu.assume_multiple %398, 8 : i32
    %400 = arith.index_cast %399 : i32 to index
    %c0_163 = arith.constant 0 : index
    %401 = vector.load %arg13[%400, %c0_163] : memref<64x384xf32, #tpu.memory_space<vmem>>, vector<8x384xf32>
    %c0_164 = arith.constant 0 : index
    %c0_165 = arith.constant 0 : index
    %402 = vector.load %arg5[%c0_164, %c0_165] : memref<128x384xf32, #tpu.memory_space<vmem>>, vector<128x384xf32>
    %cst_166 = arith.constant dense<0.000000e+00> : vector<8x384xf32>
    %403 = tpu.matmul %364, %402, %cst_166 {dimension_numbers = #tpu.dot_dimension_numbers<[1], [0], [0], [1], [0, 0, 1, 1], [], []>} : vector<8x128xf32>, vector<128x384xf32>, vector<8x384xf32> -> vector<8x384xf32>
    %c0_167 = arith.constant 0 : index
    %c0_168 = arith.constant 0 : index
    %404 = vector.load %arg6[%c0_167, %c0_168] : memref<1x384xf32, #tpu.memory_space<vmem>>, vector<1x384xf32>
    %405 = vector.broadcast %404 : vector<1x384xf32> to vector<8x384xf32>
    %406 = arith.addf %403, %405 : vector<8x384xf32>
    %407 = vector.extract_strided_slice %401 {offsets = [0, 0], sizes = [8, 256], strides = [1, 1]} : vector<8x384xf32> to vector<8x256xf32>
    %408 = vector.extract_strided_slice %406 {offsets = [0, 0], sizes = [8, 256], strides = [1, 1]} : vector<8x384xf32> to vector<8x256xf32>
    %409 = arith.addf %407, %408 : vector<8x256xf32>
    %cst_169 = arith.constant 5.000000e-01 : f32
    %410 = vector.broadcast %cst_169 : f32 to vector<8x256xf32>
    %411 = arith.mulf %410, %409 : vector<8x256xf32>
    %412 = math.tanh %411 : vector<8x256xf32>
    %cst_170 = arith.constant 5.000000e-01 : f32
    %413 = vector.broadcast %cst_170 : f32 to vector<8x256xf32>
    %414 = arith.mulf %413, %412 : vector<8x256xf32>
    %cst_171 = arith.constant 5.000000e-01 : f32
    %415 = vector.broadcast %cst_171 : f32 to vector<8x256xf32>
    %416 = arith.addf %414, %415 : vector<8x256xf32>
    %417 = vector.extract_strided_slice %416 {offsets = [0, 0], sizes = [8, 128], strides = [1, 1]} : vector<8x256xf32> to vector<8x128xf32>
    %418 = vector.extract_strided_slice %416 {offsets = [0, 128], sizes = [8, 128], strides = [1, 1]} : vector<8x256xf32> to vector<8x128xf32>
    %419 = vector.extract_strided_slice %401 {offsets = [0, 256], sizes = [8, 128], strides = [1, 1]} : vector<8x384xf32> to vector<8x128xf32>
    %420 = vector.extract_strided_slice %406 {offsets = [0, 256], sizes = [8, 128], strides = [1, 1]} : vector<8x384xf32> to vector<8x128xf32>
    %421 = arith.mulf %417, %420 : vector<8x128xf32>
    %422 = arith.addf %419, %421 : vector<8x128xf32>
    %423 = math.tanh %422 : vector<8x128xf32>
    %cst_172 = arith.constant 1.000000e+00 : f32
    %424 = vector.broadcast %cst_172 : f32 to vector<8x128xf32>
    %425 = arith.subf %424, %418 : vector<8x128xf32>
    %426 = arith.mulf %425, %423 : vector<8x128xf32>
    %427 = arith.mulf %418, %364 : vector<8x128xf32>
    %428 = arith.addf %426, %427 : vector<8x128xf32>
    %c0_173 = arith.constant 0 : index
    %c0_174 = arith.constant 0 : index
    %429 = vector.load %arg7[%c0_173, %c0_174] : memref<128x512xf32, #tpu.memory_space<vmem>>, vector<128x512xf32>
    %cst_175 = arith.constant dense<0.000000e+00> : vector<8x512xf32>
    %430 = tpu.matmul %428, %429, %cst_175 {dimension_numbers = #tpu.dot_dimension_numbers<[1], [0], [0], [1], [0, 0, 1, 1], [], []>} : vector<8x128xf32>, vector<128x512xf32>, vector<8x512xf32> -> vector<8x512xf32>
    %c0_176 = arith.constant 0 : index
    %c0_177 = arith.constant 0 : index
    %431 = vector.load %arg8[%c0_176, %c0_177] : memref<128x512xf32, #tpu.memory_space<vmem>>, vector<128x512xf32>
    %cst_178 = arith.constant dense<0.000000e+00> : vector<8x512xf32>
    %432 = tpu.matmul %392, %431, %cst_178 {dimension_numbers = #tpu.dot_dimension_numbers<[1], [0], [0], [1], [0, 0, 1, 1], [], []>} : vector<8x128xf32>, vector<128x512xf32>, vector<8x512xf32> -> vector<8x512xf32>
    %433 = arith.addf %430, %432 : vector<8x512xf32>
    %c0_179 = arith.constant 0 : index
    %c0_180 = arith.constant 0 : index
    %434 = vector.load %arg9[%c0_179, %c0_180] : memref<1x512xf32, #tpu.memory_space<vmem>>, vector<1x512xf32>
    %435 = vector.broadcast %434 : vector<1x512xf32> to vector<8x512xf32>
    %436 = arith.addf %433, %435 : vector<8x512xf32>
    %437 = vector.extract_strided_slice %436 {offsets = [0, 0], sizes = [8, 256], strides = [1, 1]} : vector<8x512xf32> to vector<8x256xf32>
    %cst_181 = arith.constant 5.000000e-01 : f32
    %438 = vector.broadcast %cst_181 : f32 to vector<8x256xf32>
    %439 = arith.mulf %438, %437 : vector<8x256xf32>
    %440 = math.tanh %439 : vector<8x256xf32>
    %cst_182 = arith.constant 5.000000e-01 : f32
    %441 = vector.broadcast %cst_182 : f32 to vector<8x256xf32>
    %442 = arith.mulf %441, %440 : vector<8x256xf32>
    %cst_183 = arith.constant 5.000000e-01 : f32
    %443 = vector.broadcast %cst_183 : f32 to vector<8x256xf32>
    %444 = arith.addf %442, %443 : vector<8x256xf32>
    %445 = vector.extract_strided_slice %444 {offsets = [0, 0], sizes = [8, 128], strides = [1, 1]} : vector<8x256xf32> to vector<8x128xf32>
    %446 = vector.extract_strided_slice %444 {offsets = [0, 128], sizes = [8, 128], strides = [1, 1]} : vector<8x256xf32> to vector<8x128xf32>
    %447 = vector.extract_strided_slice %436 {offsets = [0, 256], sizes = [8, 128], strides = [1, 1]} : vector<8x512xf32> to vector<8x128xf32>
    %448 = vector.extract_strided_slice %436 {offsets = [0, 384], sizes = [8, 128], strides = [1, 1]} : vector<8x512xf32> to vector<8x128xf32>
    %449 = arith.mulf %445, %448 : vector<8x128xf32>
    %450 = arith.addf %447, %449 : vector<8x128xf32>
    %451 = math.tanh %450 : vector<8x128xf32>
    %cst_184 = arith.constant 1.000000e+00 : f32
    %452 = vector.broadcast %cst_184 : f32 to vector<8x128xf32>
    %453 = arith.subf %452, %446 : vector<8x128xf32>
    %454 = arith.mulf %453, %451 : vector<8x128xf32>
    %455 = arith.mulf %446, %392 : vector<8x128xf32>
    %456 = arith.addf %454, %455 : vector<8x128xf32>
    %457 = arith.mulf %397, %456 : vector<8x128xf32>
    %458 = arith.addf %394, %457 : vector<8x128xf32>
    %c7_i32 = arith.constant 7 : i32
    %459 = arith.index_cast %c7_i32 : i32 to index
    %c0_185 = arith.constant 0 : index
    %c0_186 = arith.constant 0 : index
    %460 = vector.load %arg2[%459, %c0_185, %c0_186] : memref<8x8x128xf32, #tpu.memory_space<vmem>>, vector<1x8x128xf32>
    %461 = vector.shape_cast %460 : vector<1x8x128xf32> to vector<8x128xf32>
    %c8_i32_187 = arith.constant 8 : i32
    %462 = arith.muli %c7_i32, %c8_i32_187 : i32
    %463 = tpu.assume_multiple %462, 8 : i32
    %464 = arith.index_cast %463 : i32 to index
    %c0_188 = arith.constant 0 : index
    %465 = vector.load %arg13[%464, %c0_188] : memref<64x384xf32, #tpu.memory_space<vmem>>, vector<8x384xf32>
    %c0_189 = arith.constant 0 : index
    %c0_190 = arith.constant 0 : index
    %466 = vector.load %arg5[%c0_189, %c0_190] : memref<128x384xf32, #tpu.memory_space<vmem>>, vector<128x384xf32>
    %cst_191 = arith.constant dense<0.000000e+00> : vector<8x384xf32>
    %467 = tpu.matmul %428, %466, %cst_191 {dimension_numbers = #tpu.dot_dimension_numbers<[1], [0], [0], [1], [0, 0, 1, 1], [], []>} : vector<8x128xf32>, vector<128x384xf32>, vector<8x384xf32> -> vector<8x384xf32>
    %c0_192 = arith.constant 0 : index
    %c0_193 = arith.constant 0 : index
    %468 = vector.load %arg6[%c0_192, %c0_193] : memref<1x384xf32, #tpu.memory_space<vmem>>, vector<1x384xf32>
    %469 = vector.broadcast %468 : vector<1x384xf32> to vector<8x384xf32>
    %470 = arith.addf %467, %469 : vector<8x384xf32>
    %471 = vector.extract_strided_slice %465 {offsets = [0, 0], sizes = [8, 256], strides = [1, 1]} : vector<8x384xf32> to vector<8x256xf32>
    %472 = vector.extract_strided_slice %470 {offsets = [0, 0], sizes = [8, 256], strides = [1, 1]} : vector<8x384xf32> to vector<8x256xf32>
    %473 = arith.addf %471, %472 : vector<8x256xf32>
    %cst_194 = arith.constant 5.000000e-01 : f32
    %474 = vector.broadcast %cst_194 : f32 to vector<8x256xf32>
    %475 = arith.mulf %474, %473 : vector<8x256xf32>
    %476 = math.tanh %475 : vector<8x256xf32>
    %cst_195 = arith.constant 5.000000e-01 : f32
    %477 = vector.broadcast %cst_195 : f32 to vector<8x256xf32>
    %478 = arith.mulf %477, %476 : vector<8x256xf32>
    %cst_196 = arith.constant 5.000000e-01 : f32
    %479 = vector.broadcast %cst_196 : f32 to vector<8x256xf32>
    %480 = arith.addf %478, %479 : vector<8x256xf32>
    %481 = vector.extract_strided_slice %480 {offsets = [0, 0], sizes = [8, 128], strides = [1, 1]} : vector<8x256xf32> to vector<8x128xf32>
    %482 = vector.extract_strided_slice %480 {offsets = [0, 128], sizes = [8, 128], strides = [1, 1]} : vector<8x256xf32> to vector<8x128xf32>
    %483 = vector.extract_strided_slice %465 {offsets = [0, 256], sizes = [8, 128], strides = [1, 1]} : vector<8x384xf32> to vector<8x128xf32>
    %484 = vector.extract_strided_slice %470 {offsets = [0, 256], sizes = [8, 128], strides = [1, 1]} : vector<8x384xf32> to vector<8x128xf32>
    %485 = arith.mulf %481, %484 : vector<8x128xf32>
    %486 = arith.addf %483, %485 : vector<8x128xf32>
    %487 = math.tanh %486 : vector<8x128xf32>
    %cst_197 = arith.constant 1.000000e+00 : f32
    %488 = vector.broadcast %cst_197 : f32 to vector<8x128xf32>
    %489 = arith.subf %488, %482 : vector<8x128xf32>
    %490 = arith.mulf %489, %487 : vector<8x128xf32>
    %491 = arith.mulf %482, %428 : vector<8x128xf32>
    %492 = arith.addf %490, %491 : vector<8x128xf32>
    %c0_198 = arith.constant 0 : index
    %c0_199 = arith.constant 0 : index
    %493 = vector.load %arg7[%c0_198, %c0_199] : memref<128x512xf32, #tpu.memory_space<vmem>>, vector<128x512xf32>
    %cst_200 = arith.constant dense<0.000000e+00> : vector<8x512xf32>
    %494 = tpu.matmul %492, %493, %cst_200 {dimension_numbers = #tpu.dot_dimension_numbers<[1], [0], [0], [1], [0, 0, 1, 1], [], []>} : vector<8x128xf32>, vector<128x512xf32>, vector<8x512xf32> -> vector<8x512xf32>
    %c0_201 = arith.constant 0 : index
    %c0_202 = arith.constant 0 : index
    %495 = vector.load %arg8[%c0_201, %c0_202] : memref<128x512xf32, #tpu.memory_space<vmem>>, vector<128x512xf32>
    %cst_203 = arith.constant dense<0.000000e+00> : vector<8x512xf32>
    %496 = tpu.matmul %456, %495, %cst_203 {dimension_numbers = #tpu.dot_dimension_numbers<[1], [0], [0], [1], [0, 0, 1, 1], [], []>} : vector<8x128xf32>, vector<128x512xf32>, vector<8x512xf32> -> vector<8x512xf32>
    %497 = arith.addf %494, %496 : vector<8x512xf32>
    %c0_204 = arith.constant 0 : index
    %c0_205 = arith.constant 0 : index
    %498 = vector.load %arg9[%c0_204, %c0_205] : memref<1x512xf32, #tpu.memory_space<vmem>>, vector<1x512xf32>
    %499 = vector.broadcast %498 : vector<1x512xf32> to vector<8x512xf32>
    %500 = arith.addf %497, %499 : vector<8x512xf32>
    %501 = vector.extract_strided_slice %500 {offsets = [0, 0], sizes = [8, 256], strides = [1, 1]} : vector<8x512xf32> to vector<8x256xf32>
    %cst_206 = arith.constant 5.000000e-01 : f32
    %502 = vector.broadcast %cst_206 : f32 to vector<8x256xf32>
    %503 = arith.mulf %502, %501 : vector<8x256xf32>
    %504 = math.tanh %503 : vector<8x256xf32>
    %cst_207 = arith.constant 5.000000e-01 : f32
    %505 = vector.broadcast %cst_207 : f32 to vector<8x256xf32>
    %506 = arith.mulf %505, %504 : vector<8x256xf32>
    %cst_208 = arith.constant 5.000000e-01 : f32
    %507 = vector.broadcast %cst_208 : f32 to vector<8x256xf32>
    %508 = arith.addf %506, %507 : vector<8x256xf32>
    %509 = vector.extract_strided_slice %508 {offsets = [0, 0], sizes = [8, 128], strides = [1, 1]} : vector<8x256xf32> to vector<8x128xf32>
    %510 = vector.extract_strided_slice %508 {offsets = [0, 128], sizes = [8, 128], strides = [1, 1]} : vector<8x256xf32> to vector<8x128xf32>
    %511 = vector.extract_strided_slice %500 {offsets = [0, 256], sizes = [8, 128], strides = [1, 1]} : vector<8x512xf32> to vector<8x128xf32>
    %512 = vector.extract_strided_slice %500 {offsets = [0, 384], sizes = [8, 128], strides = [1, 1]} : vector<8x512xf32> to vector<8x128xf32>
    %513 = arith.mulf %509, %512 : vector<8x128xf32>
    %514 = arith.addf %511, %513 : vector<8x128xf32>
    %515 = math.tanh %514 : vector<8x128xf32>
    %cst_209 = arith.constant 1.000000e+00 : f32
    %516 = vector.broadcast %cst_209 : f32 to vector<8x128xf32>
    %517 = arith.subf %516, %510 : vector<8x128xf32>
    %518 = arith.mulf %517, %515 : vector<8x128xf32>
    %519 = arith.mulf %510, %456 : vector<8x128xf32>
    %520 = arith.addf %518, %519 : vector<8x128xf32>
    %521 = arith.mulf %461, %520 : vector<8x128xf32>
    %522 = arith.addf %458, %521 : vector<8x128xf32>
    %c8_i32_210 = arith.constant 8 : i32
    %c0_211 = arith.constant 0 : index
    %c0_212 = arith.constant 0 : index
    %523 = vector.load %arg10[%c0_211, %c0_212] : memref<128x128xf32, #tpu.memory_space<vmem>>, vector<128x128xf32>
    %cst_213 = arith.constant dense<0.000000e+00> : vector<8x128xf32>
    %524 = tpu.matmul %522, %523, %cst_213 {dimension_numbers = #tpu.dot_dimension_numbers<[1], [0], [0], [1], [0, 0, 1, 1], [], []>} : vector<8x128xf32>, vector<128x128xf32>, vector<8x128xf32> -> vector<8x128xf32>
    %c0_214 = arith.constant 0 : index
    %c0_215 = arith.constant 0 : index
    %525 = vector.load %arg11[%c0_214, %c0_215] : memref<1x128xf32, #tpu.memory_space<vmem>>, vector<1x128xf32>
    %526 = vector.broadcast %525 : vector<1x128xf32> to vector<8x128xf32>
    %527 = arith.addf %524, %526 : vector<8x128xf32>
    %c0_216 = arith.constant 0 : index
    %c0_217 = arith.constant 0 : index
    %528 = vector.load %arg12[%c0_216, %c0_217] : memref<8x128xf32, #tpu.memory_space<vmem>>, vector<8x128xf32>
    tpu.vector_store %arg12[%c0_216, %c0_217], %527 {strides = array<i32>} : memref<8x128xf32, #tpu.memory_space<vmem>>, vector<8x128xf32>,
    return
  }
  func.func @transform_0(%arg0: i32) -> (i32, i32, i32) {
    %c0_i32 = arith.constant 0 : i32
    %c0_i32_0 = arith.constant 0 : i32
    %c0_i32_1 = arith.constant 0 : i32
    return %arg0, %c0_i32, %c0_i32_0 : i32, i32, i32
  }
  func.func @transform_1(%arg0: i32) -> (i32, i32, i32) {
    %c0_i32 = arith.constant 0 : i32
    %c0_i32_0 = arith.constant 0 : i32
    %c0_i32_1 = arith.constant 0 : i32
    return %c0_i32, %arg0, %c0_i32_0 : i32, i32, i32
  }
  func.func @transform_2(%arg0: i32) -> (i32, i32) {
    %c0_i32 = arith.constant 0 : i32
    %c0_i32_0 = arith.constant 0 : i32
    %c0_i32_1 = arith.constant 0 : i32
    return %c0_i32, %c0_i32_0 : i32, i32
  }
  func.func @transform_3(%arg0: i32) -> (i32, i32) {
    %c0_i32 = arith.constant 0 : i32
    %c0_i32_0 = arith.constant 0 : i32
    %c0_i32_1 = arith.constant 0 : i32
    return %c0_i32, %c0_i32_0 : i32, i32
  }
  func.func @transform_4(%arg0: i32) -> (i32, i32) {
    %c0_i32 = arith.constant 0 : i32
    %c0_i32_0 = arith.constant 0 : i32
    %c0_i32_1 = arith.constant 0 : i32
    return %c0_i32, %c0_i32_0 : i32, i32
  }
  func.func @transform_5(%arg0: i32) -> (i32, i32) {
    %c0_i32 = arith.constant 0 : i32
    %c0_i32_0 = arith.constant 0 : i32
    %c0_i32_1 = arith.constant 0 : i32
    return %c0_i32, %c0_i32_0 : i32, i32
  }
  func.func @transform_6(%arg0: i32) -> (i32, i32) {
    %c0_i32 = arith.constant 0 : i32
    %c0_i32_0 = arith.constant 0 : i32
    %c0_i32_1 = arith.constant 0 : i32
    return %c0_i32, %c0_i32_0 : i32, i32
  }
  func.func @transform_7(%arg0: i32) -> (i32, i32) {
    %c0_i32 = arith.constant 0 : i32
    %c0_i32_0 = arith.constant 0 : i32
    %c0_i32_1 = arith.constant 0 : i32
    return %c0_i32, %c0_i32_0 : i32, i32
  }
  func.func @transform_8(%arg0: i32) -> (i32, i32) {
    %c0_i32 = arith.constant 0 : i32
    %c0_i32_0 = arith.constant 0 : i32
    %c0_i32_1 = arith.constant 0 : i32
    return %c0_i32, %c0_i32_0 : i32, i32
  }
  func.func @transform_9(%arg0: i32) -> (i32, i32) {
    %c0_i32 = arith.constant 0 : i32
    %c0_i32_0 = arith.constant 0 : i32
    %c0_i32_1 = arith.constant 0 : i32
    return %c0_i32, %c0_i32_0 : i32, i32
  }
  func.func @transform_10(%arg0: i32) -> (i32, i32) {
    %c0_i32 = arith.constant 0 : i32
    %c0_i32_0 = arith.constant 0 : i32
    %c0_i32_1 = arith.constant 0 : i32
    return %c0_i32, %c0_i32_0 : i32, i32
  }
  func.func @transform_11(%arg0: i32) -> (i32, i32) {
    %c0_i32 = arith.constant 0 : i32
    %c0_i32_0 = arith.constant 0 : i32
    return %arg0, %c0_i32 : i32, i32
  }
}

</mosaic_0001>

<llo_original>
// kernel: ehr_rnn_forward.1
$region0: #{ehr_rnn_forward.1}
  #allocation0 [shape = 'u32[]', space=smem, size = 0x4, offset = 0x4, fixed_abs, tag = 'smem constant byte address 0x4 - core index']
  #allocation1 [shape = 'u32[144,128]{1,0:T(1,128)}', space=vmem, size = 0x12000, scoped, tag = 'internal scratch']
  #allocation2 [shape = 'f32[64,384]{1,0:T(8,128)}', space=vmem, size = 0x18000, scoped, tag = 'scratch operand']
  %s0 = inlined_call_operand.vmem [shape: f32[1,64,34], index: 0, kind: input, shape index: {}]
  %s1 = inlined_call_operand.vmem [shape: f32[8,8,128], index: 1, kind: input, shape index: {}]
  %s2 = inlined_call_operand.vmem [shape: f32[34,384], index: 2, kind: input, shape index: {}]
  %s3 = inlined_call_operand.vmem [shape: f32[1,384], index: 3, kind: input, shape index: {}]
  %s4 = inlined_call_operand.vmem [shape: f32[128,384], index: 4, kind: input, shape index: {}]
  %s5 = inlined_call_operand.vmem [shape: f32[1,384], index: 5, kind: input, shape index: {}]
  %s6 = inlined_call_operand.vmem [shape: f32[128,512], index: 6, kind: input, shape index: {}]
  %s7 = inlined_call_operand.vmem [shape: f32[128,512], index: 7, kind: input, shape index: {}]
  %s8 = inlined_call_operand.vmem [shape: f32[1,512], index: 8, kind: input, shape index: {}]
  %s9 = inlined_call_operand.vmem [shape: f32[128,128], index: 9, kind: input, shape index: {}]
  %s10 = inlined_call_operand.vmem [shape: f32[1,128], index: 10, kind: input, shape index: {}]
  %s11 = inlined_call_operand.vmem [shape: f32[8,128], index: 11, kind: output, shape index: {}]
  %s12 = sld [smem:[#allocation0]]
  $region54: #{ehr_rnn_forward.1} parent=0
    _
  %s14 = ssub.s32 1, %s12
  %s15 = scalar_select 0, %s14, %s12
  // Predicated region
  $region2: #{ehr_rnn_forward.1} parent=0 // pred_check
    _
  $region3: #{ehr_rnn_forward.1} parent=0 // pred_check_branch
    %17 = sbr.rel (0) target = $region5
  $region4: #{ehr_rnn_forward.1} parent=0 // pred_region
    _
  $region5: #{ehr_rnn_forward.1} parent=0 // pred_fallthru
    _
  // Predicated region
  $region6: #{ehr_rnn_forward.1} parent=0 // pred_check
    _
  $region7: #{ehr_rnn_forward.1} parent=0 // pred_check_branch
    %19 = sbr.rel (0) target = $region9
  $region8: #{ehr_rnn_forward.1} parent=0 // pred_region
    _
  $region9: #{ehr_rnn_forward.1} parent=0 // pred_fallthru
    _
  // Predicated region
  $region10: #{ehr_rnn_forward.1} parent=0 // pred_check
    _
  $region11: #{ehr_rnn_forward.1} parent=0 // pred_check_branch
    %21 = sbr.rel (0) target = $region13
  $region12: #{ehr_rnn_forward.1} parent=0 // pred_region
    _
  $region13: #{ehr_rnn_forward.1} parent=0 // pred_fallthru
    _
  // Predicated region
  $region14: #{ehr_rnn_forward.1} parent=0 // pred_check
    _
  $region15: #{ehr_rnn_forward.1} parent=0 // pred_check_branch
    %23 = sbr.rel (0) target = $region17
  $region16: #{ehr_rnn_forward.1} parent=0 // pred_region
    _
  $region17: #{ehr_rnn_forward.1} parent=0 // pred_fallthru
    _
  // Predicated region
  $region18: #{ehr_rnn_forward.1} parent=0 // pred_check
    _
  $region19: #{ehr_rnn_forward.1} parent=0 // pred_check_branch
    %25 = sbr.rel (0) target = $region21
  $region20: #{ehr_rnn_forward.1} parent=0 // pred_region
    _
  $region21: #{ehr_rnn_forward.1} parent=0 // pred_fallthru
    _
  // Predicated region
  $region22: #{ehr_rnn_forward.1} parent=0 // pred_check
    _
  $region23: #{ehr_rnn_forward.1} parent=0 // pred_check_branch
    %27 = sbr.rel (0) target = $region25
  $region24: #{ehr_rnn_forward.1} parent=0 // pred_region
    _
  $region25: #{ehr_rnn_forward.1} parent=0 // pred_fallthru
    _
  // Predicated region
  $region26: #{ehr_rnn_forward.1} parent=0 // pred_check
    _
  $region27: #{ehr_rnn_forward.1} parent=0 // pred_check_branch
    %29 = sbr.rel (0) target = $region29
  $region28: #{ehr_rnn_forward.1} parent=0 // pred_region
    _
  $region29: #{ehr_rnn_forward.1} parent=0 // pred_fallthru
    _
  // Predicated region
  $region30: #{ehr_rnn_forward.1} parent=0 // pred_check
    _
  $region31: #{ehr_rnn_forward.1} parent=0 // pred_check_branch
    %31 = sbr.rel (0) target = $region33
  $region32: #{ehr_rnn_forward.1} parent=0 // pred_region
    _
  $region33: #{ehr_rnn_forward.1} parent=0 // pred_fallthru
    _
  // Predicated region
  $region34: #{ehr_rnn_forward.1} parent=0 // pred_check
    _
  $region35: #{ehr_rnn_forward.1} parent=0 // pred_check_branch
    %33 = sbr.rel (0) target = $region37
  $region36: #{ehr_rnn_forward.1} parent=0 // pred_region
    _
  $region37: #{ehr_rnn_forward.1} parent=0 // pred_fallthru
    _
  // Predicated region
  $region38: #{ehr_rnn_forward.1} parent=0 // pred_check
    _
  $region39: #{ehr_rnn_forward.1} parent=0 // pred_check_branch
    %35 = sbr.rel (0) target = $region41
  $region40: #{ehr_rnn_forward.1} parent=0 // pred_region
    _
  $region41: #{ehr_rnn_forward.1} parent=0 // pred_fallthru
    _
  // Predicated region
  $region42: #{ehr_rnn_forward.1} parent=0 // pred_check
    _
  $region43: #{ehr_rnn_forward.1} parent=0 // pred_check_branch
    %37 = sbr.rel (0) target = $region45
  $region44: #{ehr_rnn_forward.1} parent=0 // pred_region
    _
  $region45: #{ehr_rnn_forward.1} parent=0 // pred_fallthru
    _
  %v38 = vld [vmem:[%s0] sm:$0xff]
  %v39 = vld [vmem:[%s0 + $0x8] sm:$0xff]
  %v40 = vld [vmem:[%s0 + $0x10] sm:$0xff]
  %v41 = vld [vmem:[%s0 + $0x18] sm:$0xff]
  %v42 = vld [vmem:[%s0 + $0x20] sm:$0xff]
  %v43 = vld [vmem:[%s0 + $0x28] sm:$0xff]
  %v44 = vld [vmem:[%s0 + $0x30] sm:$0xff]
  %v45 = vld [vmem:[%s0 + $0x38] sm:$0xff]
  %v46 = vld [vmem:[%s2] sm:$0xff]
  %v47 = vld [vmem:[%s2 + $0x8] sm:$0xff]
  %v48 = vld [vmem:[%s2 + $0x10] sm:$0xff]
  %v49 = vld [vmem:[%s2 + $0x18] sm:$0xff]
  %v50 = vld [vmem:[%s2 + $0x20] sm:$0xff]
  %v51 = vld [vmem:[%s2 + $0x28] sm:$0xff]
  %v52 = vld [vmem:[%s2 + $0x30] sm:$0xff]
  %v53 = vld [vmem:[%s2 + $0x38] sm:$0xff]
  %v54 = vld [vmem:[%s2 + $0x40] sm:$0xff]
  %v55 = vld [vmem:[%s2 + $0x48] sm:$0xff]
  %v56 = vld [vmem:[%s2 + $0x50] sm:$0xff]
  %v57 = vld [vmem:[%s2 + $0x58] sm:$0xff]
  %v58 = vld [vmem:[%s2 + $0x60] sm:$0x3]
  %v59 = vld [vmem:[%s2 + $0x68] sm:$0x3]
  %v60 = vld [vmem:[%s2 + $0x70] sm:$0x3]
  %v61 = vld [vmem:[%s3] sm:$0x7]
  %v63 = vlaneseq
  %v64 = vshrl.u32 %v63, 7
  %v65 = vsub.s32 0, %v64
  %v66 = vrot.slane %v61, %v65
  %v67 = vlaneseq
  %v68 = vshrl.u32 %v67, 7
  %v69 = vsub.s32 1, %v68
  %v70 = vrot.slane %v61, %v69
  %v71 = vlaneseq
  %v72 = vshrl.u32 %v71, 7
  %v73 = vsub.s32 2, %v72
  %v74 = vrot.slane %v61, %v73
  %vm78 = vcmask 277504
  %v80 = vsel %vm78, %v38, 0
  %v83 = vsel %vm78, %v39, 0
  %v86 = vsel %vm78, %v40, 0
  %v89 = vsel %vm78, %v41, 0
  %v92 = vsel %vm78, %v42, 0
  %v95 = vsel %vm78, %v43, 0
  %v98 = vsel %vm78, %v44, 0
  %v101 = vsel %vm78, %v45, 0
  %vm103 = vcmask 1041408
  %v105 = vsel %vm103, %v58, 0
  %v108 = vsel %vm103, %v59, 0
  %v111 = vsel %vm103, %v60, 0
  %113 = vmatprep.subr.mxu0 0.0
  %114 = vmatpush1.msra.mxu0 0.0
  %115 = vmatprep.subr.mxu0 0.0
  %116 = vmatpush1.msra.mxu0 0.0
  %117 = vmatprep.subr.mxu0 0.0
  %118 = vmatpush1.msra.mxu0 0.0
  %119 = vmatprep.subr.mxu0 0.0
  %120 = vmatpush1.msra.mxu0 0.0
  %121 = vmatprep.subr.mxu0 0.0
  %122 = vmatpush1.msra.mxu0 0.0
  %123 = vmatprep.subr.mxu0 0.0
  %124 = vmatpush1.msra.mxu0 0.0
  %125 = vmatprep.subr.mxu0 0.0
  %126 = vmatpush1.msra.mxu0 0.0
  %127 = vmatprep.subr.mxu0 0.0
  %128 = vmatpush1.msra.mxu0 0.0
  %129 = vmatprep.subr.mxu0 0.0
  %130 = vmatpush1.msra.mxu0 0.0
  %131 = vmatprep.subr.mxu0 0.0
  %132 = vmatpush1.msra.mxu0 0.0
  %133 = vmatprep.subr.mxu0 0.0
  %134 = vmatpush1.msra.mxu0 0.0
  %135 = vmatprep.subr.mxu0 %v108
  %136 = vmatpush1.msra.mxu0 %v105
  %137 = vmatprep.subr.mxu0 %v56
  %138 = vmatpush1.msra.mxu0 %v55
  %139 = vmatprep.subr.mxu0 %v53
  %140 = vmatpush1.msra.mxu0 %v52
  %141 = vmatprep.subr.mxu0 %v50
  %142 = vmatpush1.msra.mxu0 %v49
  %143 = vmatprep.subr.mxu0 %v47
  %144 = vmatpush1.msra.mxu0 %v46
  %145 = vmatprep.subr.mxu0 0.0
  %146 = vmatpush2.msra.mxu0 0.0
  %147 = vmatprep.subr.mxu0 0.0
  %148 = vmatpush2.msra.mxu0 0.0
  %149 = vmatprep.subr.mxu0 0.0
  %150 = vmatpush2.msra.mxu0 0.0
  %151 = vmatprep.subr.mxu0 0.0
  %152 = vmatpush2.msra.mxu0 0.0
  %153 = vmatprep.subr.mxu0 0.0
  %154 = vmatpush2.msra.mxu0 0.0
  %155 = vmatprep.subr.mxu0 0.0
  %156 = vmatpush2.msra.mxu0 0.0
  %157 = vmatprep.subr.mxu0 0.0
  %158 = vmatpush2.msra.mxu0 0.0
  %159 = vmatprep.subr.mxu0 0.0
  %160 = vmatpush2.msra.mxu0 0.0
  %161 = vmatprep.subr.mxu0 0.0
  %162 = vmatpush2.msra.mxu0 0.0
  %163 = vmatprep.subr.mxu0 0.0
  %164 = vmatpush2.msra.mxu0 0.0
  %165 = vmatprep.subr.mxu0 0.0
  %166 = vmatpush2.msra.mxu0 0.0
  %167 = vmatprep.subr.mxu0 0.0
  %168 = vmatpush2.msra.mxu0 0.0
  %169 = vmatprep.subr.mxu0 0.0
  %170 = vmatpush2.msra.mxu0 0.0
  %171 = vmatprep.subr.mxu0 0.0
  %172 = vmatpush2.msra.mxu0 0.0
  %173 = vmatprep.subr.mxu0 0.0
  %174 = vmatpush2.msra.mxu0 0.0
  %175 = vmatprep.subr.mxu0 0.0
  %176 = vmatpush2.msra.mxu0 0.0
  %177 = vmatprep.mubr.f32.mxu0 0.0
  %178 = vmatmul.mubr.f32.gmra.mxu0 %v80
  %v179 = vpop.f32.mrf.mxu0
  %v180 = vadd.f32 %v66, %v179
  %v181 = vpop.f32.mrf.mxu0
  %v182 = vadd.f32 %v70, %v181
  %183 = vmatprep.mubr.f32.mxu0 0.0
  %184 = vmatmul.mubr.f32.gmra.mxu0 %v83
  %v185 = vpop.f32.mrf.mxu0
  %v186 = vadd.f32 %v66, %v185
  %v187 = vpop.f32.mrf.mxu0
  %v188 = vadd.f32 %v70, %v187
  %189 = vmatprep.mubr.f32.mxu0 0.0
  %190 = vmatmul.mubr.f32.gmra.mxu0 %v86
  %v191 = vpop.f32.mrf.mxu0
  %v192 = vadd.f32 %v66, %v191
  %v193 = vpop.f32.mrf.mxu0
  %v194 = vadd.f32 %v70, %v193
  %195 = vmatprep.mubr.f32.mxu0 0.0
  %196 = vmatmul.mubr.f32.gmra.mxu0 %v89
  %v197 = vpop.f32.mrf.mxu0
  %v198 = vadd.f32 %v66, %v197
  %v199 = vpop.f32.mrf.mxu0
  %v200 = vadd.f32 %v70, %v199
  %201 = vmatprep.mubr.f32.mxu0 0.0
  %202 = vmatmul.mubr.f32.gmra.mxu0 %v92
  %v203 = vpop.f32.mrf.mxu0
  %v204 = vadd.f32 %v66, %v203
  %v205 = vpop.f32.mrf.mxu0
  %v206 = vadd.f32 %v70, %v205
  %207 = vmatprep.mubr.f32.mxu0 0.0
  %208 = vmatmul.mubr.f32.gmra.mxu0 %v95
  %v209 = vpop.f32.mrf.mxu0
  %v210 = vadd.f32 %v66, %v209
  %v211 = vpop.f32.mrf.mxu0
  %v212 = vadd.f32 %v70, %v211
  %213 = vmatprep.mubr.f32.mxu0 0.0
  %214 = vmatmul.mubr.f32.gmra.mxu0 %v98
  %v215 = vpop.f32.mrf.mxu0
  %v216 = vadd.f32 %v66, %v215
  %v217 = vpop.f32.mrf.mxu0
  %v218 = vadd.f32 %v70, %v217
  %219 = vmatprep.mubr.f32.mxu0 0.0
  %220 = vmatmul.mubr.f32.gmra.mxu0 %v101
  %v221 = vpop.f32.mrf.mxu0
  %v222 = vadd.f32 %v66, %v221
  %v223 = vpop.f32.mrf.mxu0
  %v224 = vadd.f32 %v70, %v223
  %225 = vdwg.mxu0
  %226 = vmatprep.subr.mxu0 0.0
  %227 = vmatpush1.msra.mxu0 0.0
  %228 = vmatprep.subr.mxu0 0.0
  %229 = vmatpush1.msra.mxu0 0.0
  %230 = vmatprep.subr.mxu0 0.0
  %231 = vmatpush1.msra.mxu0 0.0
  %232 = vmatprep.subr.mxu0 0.0
  %233 = vmatpush1.msra.mxu0 0.0
  %234 = vmatprep.subr.mxu0 0.0
  %235 = vmatpush1.msra.mxu0 0.0
  %236 = vmatprep.subr.mxu0 0.0
  %237 = vmatpush1.msra.mxu0 0.0
  %238 = vmatprep.subr.mxu0 0.0
  %239 = vmatpush1.msra.mxu0 0.0
  %240 = vmatprep.subr.mxu0 0.0
  %241 = vmatpush1.msra.mxu0 0.0
  %242 = vmatprep.subr.mxu0 0.0
  %243 = vmatpush1.msra.mxu0 0.0
  %244 = vmatprep.subr.mxu0 0.0
  %245 = vmatpush1.msra.mxu0 0.0
  %246 = vmatprep.subr.mxu0 0.0
  %247 = vmatpush1.msra.mxu0 0.0
  %248 = vmatprep.subr.mxu0 0.0
  %249 = vmatpush1.msra.mxu0 %v111
  %250 = vmatprep.subr.mxu0 0.0
  %251 = vmatpush1.msra.mxu0 %v57
  %252 = vmatprep.subr.mxu0 0.0
  %253 = vmatpush1.msra.mxu0 %v54
  %254 = vmatprep.subr.mxu0 0.0
  %255 = vmatpush1.msra.mxu0 %v51
  %256 = vmatprep.subr.mxu0 0.0
  %257 = vmatpush1.msra.mxu0 %v48
  %258 = vmatprep.subr.mxu0 0.0
  %259 = vmatpush2.msra.mxu0 0.0
  %260 = vmatprep.subr.mxu0 0.0
  %261 = vmatpush2.msra.mxu0 0.0
  %262 = vmatprep.subr.mxu0 0.0
  %263 = vmatpush2.msra.mxu0 0.0
  %264 = vmatprep.subr.mxu0 0.0
  %265 = vmatpush2.msra.mxu0 0.0
  %266 = vmatprep.subr.mxu0 0.0
  %267 = vmatpush2.msra.mxu0 0.0
  %268 = vmatprep.subr.mxu0 0.0
  %269 = vmatpush2.msra.mxu0 0.0
  %270 = vmatprep.subr.mxu0 0.0
  %271 = vmatpush2.msra.mxu0 0.0
  %272 = vmatprep.subr.mxu0 0.0
  %273 = vmatpush2.msra.mxu0 0.0
  %274 = vmatprep.subr.mxu0 0.0
  %275 = vmatpush2.msra.mxu0 0.0
  %276 = vmatprep.subr.mxu0 0.0
  %277 = vmatpush2.msra.mxu0 0.0
  %278 = vmatprep.subr.mxu0 0.0
  %279 = vmatpush2.msra.mxu0 0.0
  %280 = vmatprep.subr.mxu0 0.0
  %281 = vmatpush2.msra.mxu0 0.0
  %282 = vmatprep.subr.mxu0 0.0
  %283 = vmatpush2.msra.mxu0 0.0
  %284 = vmatprep.subr.mxu0 0.0
  %285 = vmatpush2.msra.mxu0 0.0
  %286 = vmatprep.subr.mxu0 0.0
  %287 = vmatpush2.msra.mxu0 0.0
  %288 = vmatprep.subr.mxu0 0.0
  %289 = vmatpush2.msra.mxu0 0.0
  %290 = vmatprep.mubr.f32.mxu0 0.0
  %291 = vmatmul.mubr.f32.gmra.mxu0 %v80
  %v292 = vpop.f32.mrf.mxu0
  %v293 = vadd.f32 %v74, %v292
  %v294 = vpop.f32.mrf.mxu0
  %295 = vmatprep.mubr.f32.mxu0 0.0
  %296 = vmatmul.mubr.f32.gmra.mxu0 %v83
  %v297 = vpop.f32.mrf.mxu0
  %v298 = vadd.f32 %v74, %v297
  %v299 = vpop.f32.mrf.mxu0
  %300 = vmatprep.mubr.f32.mxu0 0.0
  %301 = vmatmul.mubr.f32.gmra.mxu0 %v86
  %v302 = vpop.f32.mrf.mxu0
  %v303 = vadd.f32 %v74, %v302
  %v304 = vpop.f32.mrf.mxu0
  %305 = vmatprep.mubr.f32.mxu0 0.0
  %306 = vmatmul.mubr.f32.gmra.mxu0 %v89
  %v307 = vpop.f32.mrf.mxu0
  %v308 = vadd.f32 %v74, %v307
  %v309 = vpop.f32.mrf.mxu0
  %310 = vmatprep.mubr.f32.mxu0 0.0
  %311 = vmatmul.mubr.f32.gmra.mxu0 %v92
  %v312 = vpop.f32.mrf.mxu0
  %v313 = vadd.f32 %v74, %v312
  %v314 = vpop.f32.mrf.mxu0
  %315 = vmatprep.mubr.f32.mxu0 0.0
  %316 = vmatmul.mubr.f32.gmra.mxu0 %v95
  %v317 = vpop.f32.mrf.mxu0
  %v318 = vadd.f32 %v74, %v317
  %v319 = vpop.f32.mrf.mxu0
  %320 = vmatprep.mubr.f32.mxu0 0.0
  %321 = vmatmul.mubr.f32.gmra.mxu0 %v98
  %v322 = vpop.f32.mrf.mxu0
  %v323 = vadd.f32 %v74, %v322
  %v324 = vpop.f32.mrf.mxu0
  %325 = vmatprep.mubr.f32.mxu0 0.0
  %326 = vmatmul.mubr.f32.gmra.mxu0 %v101
  %v327 = vpop.f32.mrf.mxu0
  %v328 = vadd.f32 %v74, %v327
  %v329 = vpop.f32.mrf.mxu0
  %330 = vdwg.mxu0
  %331 = vst [vmem:[#allocation2] sm:$0xff] %v180
  %332 = vst [vmem:[#allocation2 + $0x8] sm:$0xff] %v182
  %333 = vst [vmem:[#allocation2 + $0x10] sm:$0xff] %v293
  %334 = vst [vmem:[#allocation2 + $0x18] sm:$0xff] %v186
  %335 = vst [vmem:[#allocation2 + $0x20] sm:$0xff] %v188
  %336 = vst [vmem:[#allocation2 + $0x28] sm:$0xff] %v298
  %337 = vst [vmem:[#allocation2 + $0x30] sm:$0xff] %v192
  %338 = vst [vmem:[#allocation2 + $0x38] sm:$0xff] %v194
  %339 = vst [vmem:[#allocation2 + $0x40] sm:$0xff] %v303
  %340 = vst [vmem:[#allocation2 + $0x48] sm:$0xff] %v198
  %341 = vst [vmem:[#allocation2 + $0x50] sm:$0xff] %v200
  %342 = vst [vmem:[#allocation2 + $0x58] sm:$0xff] %v308
  %343 = vst [vmem:[#allocation2 + $0x60] sm:$0xff] %v204
  %344 = vst [vmem:[#allocation2 + $0x68] sm:$0xff] %v206
  %345 = vst [vmem:[#allocation2 + $0x70] sm:$0xff] %v313
  %346 = vst [vmem:[#allocation2 + $0x78] sm:$0xff] %v210
  %347 = vst [vmem:[#allocation2 + $0x80] sm:$0xff] %v212
  %348 = vst [vmem:[#allocation2 + $0x88] sm:$0xff] %v318
  %349 = vst [vmem:[#allocation2 + $0x90] sm:$0xff] %v216
  %350 = vst [vmem:[#allocation2 + $0x98] sm:$0xff] %v218
  %351 = vst [vmem:[#allocation2 + $0xa0] sm:$0xff] %v323
  %352 = vst [vmem:[#allocation2 + $0xa8] sm:$0xff] %v222
  %353 = vst [vmem:[#allocation2 + $0xb0] sm:$0xff] %v224
  %354 = vst [vmem:[#allocation2 + $0xb8] sm:$0xff] %v328
  %v355 = vld [vmem:[%s1] sm:$0xff]
  %s356 = smul.u32 0, 3
  %s357 = smul.addr %s356, 8
  %s358 = scalar_lea.vmem [#allocation2], %s357
  %v359 = vld [vmem:[%s358] sm:$0xff]
  %v360 = vld [vmem:[%s358 + $0x8] sm:$0xff]
  %v361 = vld [vmem:[%s358 + $0x10] sm:$0xff]
  %v362 = vld [vmem:[%s4] sm:$0xff]
  %v363 = vld [vmem:[%s4 + $0x8] sm:$0xff]
  %v364 = vld [vmem:[%s4 + $0x10] sm:$0xff]
  %v365 = vld [vmem:[%s4 + $0x18] sm:$0xff]
  %v366 = vld [vmem:[%s4 + $0x20] sm:$0xff]
  %v367 = vld [vmem:[%s4 + $0x28] sm:$0xff]
  %v368 = vld [vmem:[%s4 + $0x30] sm:$0xff]
  %v369 = vld [vmem:[%s4 + $0x38] sm:$0xff]
  %v370 = vld [vmem:[%s4 + $0x40] sm:$0xff]
  %v371 = vld [vmem:[%s4 + $0x48] sm:$0xff]
  %v372 = vld [vmem:[%s4 + $0x50] sm:$0xff]
  %v373 = vld [vmem:[%s4 + $0x58] sm:$0xff]
  %v374 = vld [vmem:[%s4 + $0x60] sm:$0xff]
  %v375 = vld [vmem:[%s4 + $0x68] sm:$0xff]
  %v376 = vld [vmem:[%s4 + $0x70] sm:$0xff]
  %v377 = vld [vmem:[%s4 + $0x78] sm:$0xff]
  %v378 = vld [vmem:[%s4 + $0x80] sm:$0xff]
  %v379 = vld [vmem:[%s4 + $0x88] sm:$0xff]
  %v380 = vld [vmem:[%s4 + $0x90] sm:$0xff]
  %v381 = vld [vmem:[%s4 + $0x98] sm:$0xff]
  %v382 = vld [vmem:[%s4 + $0xa0] sm:$0xff]
  %v383 = vld [vmem:[%s4 + $0xa8] sm:$0xff]
  %v384 = vld [vmem:[%s4 + $0xb0] sm:$0xff]
  %v385 = vld [vmem:[%s4 + $0xb8] sm:$0xff]
  %v386 = vld [vmem:[%s4 + $0xc0] sm:$0xff]
  %v387 = vld [vmem:[%s4 + $0xc8] sm:$0xff]
  %v388 = vld [vmem:[%s4 + $0xd0] sm:$0xff]
  %v389 = vld [vmem:[%s4 + $0xd8] sm:$0xff]
  %v390 = vld [vmem:[%s4 + $0xe0] sm:$0xff]
  %v391 = vld [vmem:[%s4 + $0xe8] sm:$0xff]
  %v392 = vld [vmem:[%s4 + $0xf0] sm:$0xff]
  %v393 = vld [vmem:[%s4 + $0xf8] sm:$0xff]
  %v394 = vld [vmem:[%s4 + $0x100] sm:$0xff]
  %v395 = vld [vmem:[%s4 + $0x108] sm:$0xff]
  %v396 = vld [vmem:[%s4 + $0x110] sm:$0xff]
  %v397 = vld [vmem:[%s4 + $0x118] sm:$0xff]
  %v398 = vld [vmem:[%s4 + $0x120] sm:$0xff]
  %v399 = vld [vmem:[%s4 + $0x128] sm:$0xff]
  %v400 = vld [vmem:[%s4 + $0x130] sm:$0xff]
  %v401 = vld [vmem:[%s4 + $0x138] sm:$0xff]
  %v402 = vld [vmem:[%s4 + $0x140] sm:$0xff]
  %v403 = vld [vmem:[%s4 + $0x148] sm:$0xff]
  %v404 = vld [vmem:[%s4 + $0x150] sm:$0xff]
  %v405 = vld [vmem:[%s4 + $0x158] sm:$0xff]
  %v406 = vld [vmem:[%s4 + $0x160] sm:$0xff]
  %v407 = vld [vmem:[%s4 + $0x168] sm:$0xff]
  %v408 = vld [vmem:[%s4 + $0x170] sm:$0xff]
  %v409 = vld [vmem:[%s4 + $0x178] sm:$0xff]
  %v410 = vld [vmem:[%s5] sm:$0x7]
  %v412 = vlaneseq
  %v413 = vshrl.u32 %v412, 7
  %v414 = vsub.s32 0, %v413
  %v415 = vrot.slane %v410, %v414
  %v416 = vlaneseq
  %v417 = vshrl.u32 %v416, 7
  %v418 = vsub.s32 1, %v417
  %v419 = vrot.slane %v410, %v418
  %v420 = vlaneseq
  %v421 = vshrl.u32 %v420, 7
  %v422 = vsub.s32 2, %v421
  %v423 = vrot.slane %v410, %v422
  %427 = vmatprep.subr.mxu0 %v408
  %428 = vmatpush1.msra.mxu0 %v407
  %429 = vmatprep.subr.mxu0 %v405
  %430 = vmatpush1.msra.mxu0 %v404
  %431 = vmatprep.subr.mxu0 %v402
  %432 = vmatpush1.msra.mxu0 %v401
  %433 = vmatprep.subr.mxu0 %v399
  %434 = vmatpush1.msra.mxu0 %v398
  %435 = vmatprep.subr.mxu0 %v396
  %436 = vmatpush1.msra.mxu0 %v395
  %437 = vmatprep.subr.mxu0 %v393
  %438 = vmatpush1.msra.mxu0 %v392
  %439 = vmatprep.subr.mxu0 %v390
  %440 = vmatpush1.msra.mxu0 %v389
  %441 = vmatprep.subr.mxu0 %v387
  %442 = vmatpush1.msra.mxu0 %v386
  %443 = vmatprep.subr.mxu0 %v384
  %444 = vmatpush1.msra.mxu0 %v383
  %445 = vmatprep.subr.mxu0 %v381
  %446 = vmatpush1.msra.mxu0 %v380
  %447 = vmatprep.subr.mxu0 %v378
  %448 = vmatpush1.msra.mxu0 %v377
  %449 = vmatprep.subr.mxu0 %v375
  %450 = vmatpush1.msra.mxu0 %v374
  %451 = vmatprep.subr.mxu0 %v372
  %452 = vmatpush1.msra.mxu0 %v371
  %453 = vmatprep.subr.mxu0 %v369
  %454 = vmatpush1.msra.mxu0 %v368
  %455 = vmatprep.subr.mxu0 %v366
  %456 = vmatpush1.msra.mxu0 %v365
  %457 = vmatprep.subr.mxu0 %v363
  %458 = vmatpush1.msra.mxu0 %v362
  %459 = vmatprep.subr.mxu0 0.0
  %460 = vmatpush2.msra.mxu0 0.0
  %461 = vmatprep.subr.mxu0 0.0
  %462 = vmatpush2.msra.mxu0 0.0
  %463 = vmatprep.subr.mxu0 0.0
  %464 = vmatpush2.msra.mxu0 0.0
  %465 = vmatprep.subr.mxu0 0.0
  %466 = vmatpush2.msra.mxu0 0.0
  %467 = vmatprep.subr.mxu0 0.0
  %468 = vmatpush2.msra.mxu0 0.0
  %469 = vmatprep.subr.mxu0 0.0
  %470 = vmatpush2.msra.mxu0 0.0
  %471 = vmatprep.subr.mxu0 0.0
  %472 = vmatpush2.msra.mxu0 0.0
  %473 = vmatprep.subr.mxu0 0.0
  %474 = vmatpush2.msra.mxu0 0.0
  %475 = vmatprep.subr.mxu0 0.0
  %476 = vmatpush2.msra.mxu0 0.0
  %477 = vmatprep.subr.mxu0 0.0
  %478 = vmatpush2.msra.mxu0 0.0
  %479 = vmatprep.subr.mxu0 0.0
  %480 = vmatpush2.msra.mxu0 0.0
  %481 = vmatprep.subr.mxu0 0.0
  %482 = vmatpush2.msra.mxu0 0.0
  %483 = vmatprep.subr.mxu0 0.0
  %484 = vmatpush2.msra.mxu0 0.0
  %485 = vmatprep.subr.mxu0 0.0
  %486 = vmatpush2.msra.mxu0 0.0
  %487 = vmatprep.subr.mxu0 0.0
  %488 = vmatpush2.msra.mxu0 0.0
  %489 = vmatprep.subr.mxu0 0.0
  %490 = vmatpush2.msra.mxu0 0.0
  %491 = vmatprep.mubr.f32.mxu0 0.0
  %492 = vmatmul.mubr.f32.gmra.mxu0 0.0
  %v493 = vpop.f32.mrf.mxu0
  %v494 = vadd.f32 %v415, %v493
  %v495 = vpop.f32.mrf.mxu0
  %v496 = vadd.f32 %v419, %v495
  %497 = vdwg.mxu0
  %498 = vmatprep.subr.mxu0 0.0
  %499 = vmatpush1.msra.mxu0 %v409
  %500 = vmatprep.subr.mxu0 0.0
  %501 = vmatpush1.msra.mxu0 %v406
  %502 = vmatprep.subr.mxu0 0.0
  %503 = vmatpush1.msra.mxu0 %v403
  %504 = vmatprep.subr.mxu0 0.0
  %505 = vmatpush1.msra.mxu0 %v400
  %506 = vmatprep.subr.mxu0 0.0
  %507 = vmatpush1.msra.mxu0 %v397
  %508 = vmatprep.subr.mxu0 0.0
  %509 = vmatpush1.msra.mxu0 %v394
  %510 = vmatprep.subr.mxu0 0.0
  %511 = vmatpush1.msra.mxu0 %v391
  %512 = vmatprep.subr.mxu0 0.0
  %513 = vmatpush1.msra.mxu0 %v388
  %514 = vmatprep.subr.mxu0 0.0
  %515 = vmatpush1.msra.mxu0 %v385
  %516 = vmatprep.subr.mxu0 0.0
  %517 = vmatpush1.msra.mxu0 %v382
  %518 = vmatprep.subr.mxu0 0.0
  %519 = vmatpush1.msra.mxu0 %v379
  %520 = vmatprep.subr.mxu0 0.0
  %521 = vmatpush1.msra.mxu0 %v376
  %522 = vmatprep.subr.mxu0 0.0
  %523 = vmatpush1.msra.mxu0 %v373
  %524 = vmatprep.subr.mxu0 0.0
  %525 = vmatpush1.msra.mxu0 %v370
  %526 = vmatprep.subr.mxu0 0.0
  %527 = vmatpush1.msra.mxu0 %v367
  %528 = vmatprep.subr.mxu0 0.0
  %529 = vmatpush1.msra.mxu0 %v364
  %530 = vmatprep.subr.mxu0 0.0
  %531 = vmatpush2.msra.mxu0 0.0
  %532 = vmatprep.subr.mxu0 0.0
  %533 = vmatpush2.msra.mxu0 0.0
  %534 = vmatprep.subr.mxu0 0.0
  %535 = vmatpush2.msra.mxu0 0.0
  %536 = vmatprep.subr.mxu0 0.0
  %537 = vmatpush2.msra.mxu0 0.0
  %538 = vmatprep.subr.mxu0 0.0
  %539 = vmatpush2.msra.mxu0 0.0
  %540 = vmatprep.subr.mxu0 0.0
  %541 = vmatpush2.msra.mxu0 0.0
  %542 = vmatprep.subr.mxu0 0.0
  %543 = vmatpush2.msra.mxu0 0.0
  %544 = vmatprep.subr.mxu0 0.0
  %545 = vmatpush2.msra.mxu0 0.0
  %546 = vmatprep.subr.mxu0 0.0
  %547 = vmatpush2.msra.mxu0 0.0
  %548 = vmatprep.subr.mxu0 0.0
  %549 = vmatpush2.msra.mxu0 0.0
  %550 = vmatprep.subr.mxu0 0.0
  %551 = vmatpush2.msra.mxu0 0.0
  %552 = vmatprep.subr.mxu0 0.0
  %553 = vmatpush2.msra.mxu0 0.0
  %554 = vmatprep.subr.mxu0 0.0
  %555 = vmatpush2.msra.mxu0 0.0
  %556 = vmatprep.subr.mxu0 0.0
  %557 = vmatpush2.msra.mxu0 0.0
  %558 = vmatprep.subr.mxu0 0.0
  %559 = vmatpush2.msra.mxu0 0.0
  %560 = vmatprep.subr.mxu0 0.0
  %561 = vmatpush2.msra.mxu0 0.0
  %562 = vmatprep.mubr.f32.mxu0 0.0
  %563 = vmatmul.mubr.f32.gmra.mxu0 0.0
  %v564 = vpop.f32.mrf.mxu0
  %v565 = vadd.f32 %v423, %v564
  %v566 = vpop.f32.mrf.mxu0
  %567 = vdwg.mxu0
  %v568 = vadd.f32 %v359, %v494
  %v569 = vadd.f32 %v360, %v496
  %v570 = vmul.f32 %v568, 0.5
  %v571 = vmul.f32 %v569, 0.5
  %v572 = vtanh.pop %v570
  %v573 = vtanh.pop %v571
  %v574 = vmul.f32 %v572, 0.5
  %v575 = vmul.f32 %v573, 0.5
  %v576 = vadd.f32 %v574, 0.5
  %v577 = vadd.f32 %v575, 0.5
  %v578 = vmul.f32 %v576, %v565
  %v579 = vadd.f32 %v361, %v578
  %v580 = vtanh.pop %v579
  %v581 = vsub.f32 1.0, %v577
  %v582 = vmul.f32 %v581, %v580
  %v583 = vmul.f32 %v577, 0.0
  %v584 = vadd.f32 %v582, %v583
  %v585 = vld [vmem:[%s6] sm:$0xff]
  %v586 = vld [vmem:[%s6 + $0x8] sm:$0xff]
  %v587 = vld [vmem:[%s6 + $0x10] sm:$0xff]
  %v588 = vld [vmem:[%s6 + $0x18] sm:$0xff]
  %v589 = vld [vmem:[%s6 + $0x20] sm:$0xff]
  %v590 = vld [vmem:[%s6 + $0x28] sm:$0xff]
  %v591 = vld [vmem:[%s6 + $0x30] sm:$0xff]
  %v592 = vld [vmem:[%s6 + $0x38] sm:$0xff]
  %v593 = vld [vmem:[%s6 + $0x40] sm:$0xff]
  %v594 = vld [vmem:[%s6 + $0x48] sm:$0xff]
  %v595 = vld [vmem:[%s6 + $0x50] sm:$0xff]
  %v596 = vld [vmem:[%s6 + $0x58] sm:$0xff]
  %v597 = vld [vmem:[%s6 + $0x60] sm:$0xff]
  %v598 = vld [vmem:[%s6 + $0x68] sm:$0xff]
  %v599 = vld [vmem:[%s6 + $0x70] sm:$0xff]
  %v600 = vld [vmem:[%s6 + $0x78] sm:$0xff]
  %v601 = vld [vmem:[%s6 + $0x80] sm:$0xff]
  %v602 = vld [vmem:[%s6 + $0x88] sm:$0xff]
  %v603 = vld [vmem:[%s6 + $0x90] sm:$0xff]
  %v604 = vld [vmem:[%s6 + $0x98] sm:$0xff]
  %v605 = vld [vmem:[%s6 + $0xa0] sm:$0xff]
  %v606 = vld [vmem:[%s6 + $0xa8] sm:$0xff]
  %v607 = vld [vmem:[%s6 + $0xb0] sm:$0xff]
  %v608 = vld [vmem:[%s6 + $0xb8] sm:$0xff]
  %v609 = vld [vmem:[%s6 + $0xc0] sm:$0xff]
  %v610 = vld [vmem:[%s6 + $0xc8] sm:$0xff]
  %v611 = vld [vmem:[%s6 + $0xd0] sm:$0xff]
  %v612 = vld [vmem:[%s6 + $0xd8] sm:$0xff]
  %v613 = vld [vmem:[%s6 + $0xe0] sm:$0xff]
  %v614 = vld [vmem:[%s6 + $0xe8] sm:$0xff]
  %v615 = vld [vmem:[%s6 + $0xf0] sm:$0xff]
  %v616 = vld [vmem:[%s6 + $0xf8] sm:$0xff]
  %v617 = vld [vmem:[%s6 + $0x100] sm:$0xff]
  %v618 = vld [vmem:[%s6 + $0x108] sm:$0xff]
  %v619 = vld [vmem:[%s6 + $0x110] sm:$0xff]
  %v620 = vld [vmem:[%s6 + $0x118] sm:$0xff]
  %v621 = vld [vmem:[%s6 + $0x120] sm:$0xff]
  %v622 = vld [vmem:[%s6 + $0x128] sm:$0xff]
  %v623 = vld [vmem:[%s6 + $0x130] sm:$0xff]
  %v624 = vld [vmem:[%s6 + $0x138] sm:$0xff]
  %v625 = vld [vmem:[%s6 + $0x140] sm:$0xff]
  %v626 = vld [vmem:[%s6 + $0x148] sm:$0xff]
  %v627 = vld [vmem:[%s6 + $0x150] sm:$0xff]
  %v628 = vld [vmem:[%s6 + $0x158] sm:$0xff]
  %v629 = vld [vmem:[%s6 + $0x160] sm:$0xff]
  %v630 = vld [vmem:[%s6 + $0x168] sm:$0xff]
  %v631 = vld [vmem:[%s6 + $0x170] sm:$0xff]
  %v632 = vld [vmem:[%s6 + $0x178] sm:$0xff]
  %v633 = vld [vmem:[%s6 + $0x180] sm:$0xff]
  %v634 = vld [vmem:[%s6 + $0x188] sm:$0xff]
  %v635 = vld [vmem:[%s6 + $0x190] sm:$0xff]
  %v636 = vld [vmem:[%s6 + $0x198] sm:$0xff]
  %v637 = vld [vmem:[%s6 + $0x1a0] sm:$0xff]
  %v638 = vld [vmem:[%s6 + $0x1a8] sm:$0xff]
  %v639 = vld [vmem:[%s6 + $0x1b0] sm:$0xff]
  %v640 = vld [vmem:[%s6 + $0x1b8] sm:$0xff]
  %v641 = vld [vmem:[%s6 + $0x1c0] sm:$0xff]
  %v642 = vld [vmem:[%s6 + $0x1c8] sm:$0xff]
  %v643 = vld [vmem:[%s6 + $0x1d0] sm:$0xff]
  %v644 = vld [vmem:[%s6 + $0x1d8] sm:$0xff]
  %v645 = vld [vmem:[%s6 + $0x1e0] sm:$0xff]
  %v646 = vld [vmem:[%s6 + $0x1e8] sm:$0xff]
  %v647 = vld [vmem:[%s6 + $0x1f0] sm:$0xff]
  %v648 = vld [vmem:[%s6 + $0x1f8] sm:$0xff]
  %v649 = vld [vmem:[%s7] sm:$0xff]
  %v650 = vld [vmem:[%s7 + $0x8] sm:$0xff]
  %v651 = vld [vmem:[%s7 + $0x10] sm:$0xff]
  %v652 = vld [vmem:[%s7 + $0x18] sm:$0xff]
  %v653 = vld [vmem:[%s7 + $0x20] sm:$0xff]
  %v654 = vld [vmem:[%s7 + $0x28] sm:$0xff]
  %v655 = vld [vmem:[%s7 + $0x30] sm:$0xff]
  %v656 = vld [vmem:[%s7 + $0x38] sm:$0xff]
  %v657 = vld [vmem:[%s7 + $0x40] sm:$0xff]
  %v658 = vld [vmem:[%s7 + $0x48] sm:$0xff]
  %v659 = vld [vmem:[%s7 + $0x50] sm:$0xff]
  %v660 = vld [vmem:[%s7 + $0x58] sm:$0xff]
  %v661 = vld [vmem:[%s7 + $0x60] sm:$0xff]
  %v662 = vld [vmem:[%s7 + $0x68] sm:$0xff]
  %v663 = vld [vmem:[%s7 + $0x70] sm:$0xff]
  %v664 = vld [vmem:[%s7 + $0x78] sm:$0xff]
  %v665 = vld [vmem:[%s7 + $0x80] sm:$0xff]
  %v666 = vld [vmem:[%s7 + $0x88] sm:$0xff]
  %v667 = vld [vmem:[%s7 + $0x90] sm:$0xff]
  %v668 = vld [vmem:[%s7 + $0x98] sm:$0xff]
  %v669 = vld [vmem:[%s7 + $0xa0] sm:$0xff]
  %v670 = vld [vmem:[%s7 + $0xa8] sm:$0xff]
  %v671 = vld [vmem:[%s7 + $0xb0] sm:$0xff]
  %v672 = vld [vmem:[%s7 + $0xb8] sm:$0xff]
  %v673 = vld [vmem:[%s7 + $0xc0] sm:$0xff]
  %v674 = vld [vmem:[%s7 + $0xc8] sm:$0xff]
  %v675 = vld [vmem:[%s7 + $0xd0] sm:$0xff]
  %v676 = vld [vmem:[%s7 + $0xd8] sm:$0xff]
  %v677 = vld [vmem:[%s7 + $0xe0] sm:$0xff]
  %v678 = vld [vmem:[%s7 + $0xe8] sm:$0xff]
  %v679 = vld [vmem:[%s7 + $0xf0] sm:$0xff]
  %v680 = vld [vmem:[%s7 + $0xf8] sm:$0xff]
  %v681 = vld [vmem:[%s7 + $0x100] sm:$0xff]
  %v682 = vld [vmem:[%s7 + $0x108] sm:$0xff]
  %v683 = vld [vmem:[%s7 + $0x110] sm:$0xff]
  %v684 = vld [vmem:[%s7 + $0x118] sm:$0xff]
  %v685 = vld [vmem:[%s7 + $0x120] sm:$0xff]
  %v686 = vld [vmem:[%s7 + $0x128] sm:$0xff]
  %v687 = vld [vmem:[%s7 + $0x130] sm:$0xff]
  %v688 = vld [vmem:[%s7 + $0x138] sm:$0xff]
  %v689 = vld [vmem:[%s7 + $0x140] sm:$0xff]
  %v690 = vld [vmem:[%s7 + $0x148] sm:$0xff]
  %v691 = vld [vmem:[%s7 + $0x150] sm:$0xff]
  %v692 = vld [vmem:[%s7 + $0x158] sm:$0xff]
  %v693 = vld [vmem:[%s7 + $0x160] sm:$0xff]
  %v694 = vld [vmem:[%s7 + $0x168] sm:$0xff]
  %v695 = vld [vmem:[%s7 + $0x170] sm:$0xff]
  %v696 = vld [vmem:[%s7 + $0x178] sm:$0xff]
  %v697 = vld [vmem:[%s7 + $0x180] sm:$0xff]
  %v698 = vld [vmem:[%s7 + $0x188] sm:$0xff]
  %v699 = vld [vmem:[%s7 + $0x190] sm:$0xff]
  %v700 = vld [vmem:[%s7 + $0x198] sm:$0xff]
  %v701 = vld [vmem:[%s7 + $0x1a0] sm:$0xff]
  %v702 = vld [vmem:[%s7 + $0x1a8] sm:$0xff]
  %v703 = vld [vmem:[%s7 + $0x1b0] sm:$0xff]
  %v704 = vld [vmem:[%s7 + $0x1b8] sm:$0xff]
  %v705 = vld [vmem:[%s7 + $0x1c0] sm:$0xff]
  %v706 = vld [vmem:[%s7 + $0x1c8] sm:$0xff]
  %v707 = vld [vmem:[%s7 + $0x1d0] sm:$0xff]
  %v708 = vld [vmem:[%s7 + $0x1d8] sm:$0xff]
  %v709 = vld [vmem:[%s7 + $0x1e0] sm:$0xff]
  %v710 = vld [vmem:[%s7 + $0x1e8] sm:$0xff]
  %v711 = vld [vmem:[%s7 + $0x1f0] sm:$0xff]
  %v712 = vld [vmem:[%s7 + $0x1f8] sm:$0xff]
  %713 = vmatprep.subr.mxu0 %v710
  %714 = vmatpush1.msra.mxu0 %v709
  %715 = vmatprep.subr.mxu0 %v706
  %716 = vmatpush1.msra.mxu0 %v705
  %717 = vmatprep.subr.mxu0 %v702
  %718 = vmatpush1.msra.mxu0 %v701
  %719 = vmatprep.subr.mxu0 %v698
  %720 = vmatpush1.msra.mxu0 %v697
  %721 = vmatprep.subr.mxu0 %v694
  %722 = vmatpush1.msra.mxu0 %v693
  %723 = vmatprep.subr.mxu0 %v690
  %724 = vmatpush1.msra.mxu0 %v689
  %725 = vmatprep.subr.mxu0 %v686
  %726 = vmatpush1.msra.mxu0 %v685
  %727 = vmatprep.subr.mxu0 %v682
  %728 = vmatpush1.msra.mxu0 %v681
  %729 = vmatprep.subr.mxu0 %v678
  %730 = vmatpush1.msra.mxu0 %v677
  %731 = vmatprep.subr.mxu0 %v674
  %732 = vmatpush1.msra.mxu0 %v673
  %733 = vmatprep.subr.mxu0 %v670
  %734 = vmatpush1.msra.mxu0 %v669
  %735 = vmatprep.subr.mxu0 %v666
  %736 = vmatpush1.msra.mxu0 %v665
  %737 = vmatprep.subr.mxu0 %v662
  %738 = vmatpush1.msra.mxu0 %v661
  %739 = vmatprep.subr.mxu0 %v658
  %740 = vmatpush1.msra.mxu0 %v657
  %741 = vmatprep.subr.mxu0 %v654
  %742 = vmatpush1.msra.mxu0 %v653
  %743 = vmatprep.subr.mxu0 %v650
  %744 = vmatpush1.msra.mxu0 %v649
  %745 = vmatprep.subr.mxu0 0.0
  %746 = vmatpush2.msra.mxu0 0.0
  %747 = vmatprep.subr.mxu0 0.0
  %748 = vmatpush2.msra.mxu0 0.0
  %749 = vmatprep.subr.mxu0 0.0
  %750 = vmatpush2.msra.mxu0 0.0
  %751 = vmatprep.subr.mxu0 0.0
  %752 = vmatpush2.msra.mxu0 0.0
  %753 = vmatprep.subr.mxu0 0.0
  %754 = vmatpush2.msra.mxu0 0.0
  %755 = vmatprep.subr.mxu0 0.0
  %756 = vmatpush2.msra.mxu0 0.0
  %757 = vmatprep.subr.mxu0 0.0
  %758 = vmatpush2.msra.mxu0 0.0
  %759 = vmatprep.subr.mxu0 0.0
  %760 = vmatpush2.msra.mxu0 0.0
  %761 = vmatprep.subr.mxu0 0.0
  %762 = vmatpush2.msra.mxu0 0.0
  %763 = vmatprep.subr.mxu0 0.0
  %764 = vmatpush2.msra.mxu0 0.0
  %765 = vmatprep.subr.mxu0 0.0
  %766 = vmatpush2.msra.mxu0 0.0
  %767 = vmatprep.subr.mxu0 0.0
  %768 = vmatpush2.msra.mxu0 0.0
  %769 = vmatprep.subr.mxu0 0.0
  %770 = vmatpush2.msra.mxu0 0.0
  %771 = vmatprep.subr.mxu0 0.0
  %772 = vmatpush2.msra.mxu0 0.0
  %773 = vmatprep.subr.mxu0 0.0
  %774 = vmatpush2.msra.mxu0 0.0
  %775 = vmatprep.subr.mxu0 0.0
  %776 = vmatpush2.msra.mxu0 0.0
  %777 = vmatprep.mubr.f32.mxu0 0.0
  %778 = vmatmul.mubr.f32.gmra.mxu0 0.0
  %v779 = vpop.f32.mrf.mxu0
  %v780 = vadd.f32 0.0, %v779
  %v781 = vpop.f32.mrf.mxu0
  %v782 = vadd.f32 0.0, %v781
  %783 = vdwg.mxu0
  %784 = vmatprep.subr.mxu0 %v712
  %785 = vmatpush1.msra.mxu0 %v711
  %786 = vmatprep.subr.mxu0 %v708
  %787 = vmatpush1.msra.mxu0 %v707
  %788 = vmatprep.subr.mxu0 %v704
  %789 = vmatpush1.msra.mxu0 %v703
  %790 = vmatprep.subr.mxu0 %v700
  %791 = vmatpush1.msra.mxu0 %v699
  %792 = vmatprep.subr.mxu0 %v696
  %793 = vmatpush1.msra.mxu0 %v695
  %794 = vmatprep.subr.mxu0 %v692
  %795 = vmatpush1.msra.mxu0 %v691
  %796 = vmatprep.subr.mxu0 %v688
  %797 = vmatpush1.msra.mxu0 %v687
  %798 = vmatprep.subr.mxu0 %v684
  %799 = vmatpush1.msra.mxu0 %v683
  %800 = vmatprep.subr.mxu0 %v680
  %801 = vmatpush1.msra.mxu0 %v679
  %802 = vmatprep.subr.mxu0 %v676
  %803 = vmatpush1.msra.mxu0 %v675
  %804 = vmatprep.subr.mxu0 %v672
  %805 = vmatpush1.msra.mxu0 %v671
  %806 = vmatprep.subr.mxu0 %v668
  %807 = vmatpush1.msra.mxu0 %v667
  %808 = vmatprep.subr.mxu0 %v664
  %809 = vmatpush1.msra.mxu0 %v663
  %810 = vmatprep.subr.mxu0 %v660
  %811 = vmatpush1.msra.mxu0 %v659
  %812 = vmatprep.subr.mxu0 %v656
  %813 = vmatpush1.msra.mxu0 %v655
  %814 = vmatprep.subr.mxu0 %v652
  %815 = vmatpush1.msra.mxu0 %v651
  %816 = vmatprep.subr.mxu0 0.0
  %817 = vmatpush2.msra.mxu0 0.0
  %818 = vmatprep.subr.mxu0 0.0
  %819 = vmatpush2.msra.mxu0 0.0
  %820 = vmatprep.subr.mxu0 0.0
  %821 = vmatpush2.msra.mxu0 0.0
  %822 = vmatprep.subr.mxu0 0.0
  %823 = vmatpush2.msra.mxu0 0.0
  %824 = vmatprep.subr.mxu0 0.0
  %825 = vmatpush2.msra.mxu0 0.0
  %826 = vmatprep.subr.mxu0 0.0
  %827 = vmatpush2.msra.mxu0 0.0
  %828 = vmatprep.subr.mxu0 0.0
  %829 = vmatpush2.msra.mxu0 0.0
  %830 = vmatprep.subr.mxu0 0.0
  %831 = vmatpush2.msra.mxu0 0.0
  %832 = vmatprep.subr.mxu0 0.0
  %833 = vmatpush2.msra.mxu0 0.0
  %834 = vmatprep.subr.mxu0 0.0
  %835 = vmatpush2.msra.mxu0 0.0
  %836 = vmatprep.subr.mxu0 0.0
  %837 = vmatpush2.msra.mxu0 0.0
  %838 = vmatprep.subr.mxu0 0.0
  %839 = vmatpush2.msra.mxu0 0.0
  %840 = vmatprep.subr.mxu0 0.0
  %841 = vmatpush2.msra.mxu0 0.0
  %842 = vmatprep.subr.mxu0 0.0
  %843 = vmatpush2.msra.mxu0 0.0
  %844 = vmatprep.subr.mxu0 0.0
  %845 = vmatpush2.msra.mxu0 0.0
  %846 = vmatprep.subr.mxu0 0.0
  %847 = vmatpush2.msra.mxu0 0.0
  %848 = vmatprep.mubr.f32.mxu0 0.0
  %849 = vmatmul.mubr.f32.gmra.mxu0 0.0
  %v850 = vpop.f32.mrf.mxu0
  %v851 = vadd.f32 0.0, %v850
  %v852 = vpop.f32.mrf.mxu0
  %v853 = vadd.f32 0.0, %v852
  %854 = vdwg.mxu0
  %855 = vmatprep.subr.mxu0 %v646
  %856 = vmatpush1.msra.mxu0 %v645
  %857 = vmatprep.subr.mxu0 %v642
  %858 = vmatpush1.msra.mxu0 %v641
  %859 = vmatprep.subr.mxu0 %v638
  %860 = vmatpush1.msra.mxu0 %v637
  %861 = vmatprep.subr.mxu0 %v634
  %862 = vmatpush1.msra.mxu0 %v633
  %863 = vmatprep.subr.mxu0 %v630
  %864 = vmatpush1.msra.mxu0 %v629
  %865 = vmatprep.subr.mxu0 %v626
  %866 = vmatpush1.msra.mxu0 %v625
  %867 = vmatprep.subr.mxu0 %v622
  %868 = vmatpush1.msra.mxu0 %v621
  %869 = vmatprep.subr.mxu0 %v618
  %870 = vmatpush1.msra.mxu0 %v617
  %871 = vmatprep.subr.mxu0 %v614
  %872 = vmatpush1.msra.mxu0 %v613
  %873 = vmatprep.subr.mxu0 %v610
  %874 = vmatpush1.msra.mxu0 %v609
  %875 = vmatprep.subr.mxu0 %v606
  %876 = vmatpush1.msra.mxu0 %v605
  %877 = vmatprep.subr.mxu0 %v602
  %878 = vmatpush1.msra.mxu0 %v601
  %879 = vmatprep.subr.mxu0 %v598
  %880 = vmatpush1.msra.mxu0 %v597
  %881 = vmatprep.subr.mxu0 %v594
  %882 = vmatpush1.msra.mxu0 %v593
  %883 = vmatprep.subr.mxu0 %v590
  %884 = vmatpush1.msra.mxu0 %v589
  %885 = vmatprep.subr.mxu0 %v586
  %886 = vmatpush1.msra.mxu0 %v585
  %887 = vmatprep.subr.mxu0 0.0
  %888 = vmatpush2.msra.mxu0 0.0
  %889 = vmatprep.subr.mxu0 0.0
  %890 = vmatpush2.msra.mxu0 0.0
  %891 = vmatprep.subr.mxu0 0.0
  %892 = vmatpush2.msra.mxu0 0.0
  %893 = vmatprep.subr.mxu0 0.0
  %894 = vmatpush2.msra.mxu0 0.0
  %895 = vmatprep.subr.mxu0 0.0
  %896 = vmatpush2.msra.mxu0 0.0
  %897 = vmatprep.subr.mxu0 0.0
  %898 = vmatpush2.msra.mxu0 0.0
  %899 = vmatprep.subr.mxu0 0.0
  %900 = vmatpush2.msra.mxu0 0.0
  %901 = vmatprep.subr.mxu0 0.0
  %902 = vmatpush2.msra.mxu0 0.0
  %903 = vmatprep.subr.mxu0 0.0
  %904 = vmatpush2.msra.mxu0 0.0
  %905 = vmatprep.subr.mxu0 0.0
  %906 = vmatpush2.msra.mxu0 0.0
  %907 = vmatprep.subr.mxu0 0.0
  %908 = vmatpush2.msra.mxu0 0.0
  %909 = vmatprep.subr.mxu0 0.0
  %910 = vmatpush2.msra.mxu0 0.0
  %911 = vmatprep.subr.mxu0 0.0
  %912 = vmatpush2.msra.mxu0 0.0
  %913 = vmatprep.subr.mxu0 0.0
  %914 = vmatpush2.msra.mxu0 0.0
  %915 = vmatprep.subr.mxu0 0.0
  %916 = vmatpush2.msra.mxu0 0.0
  %917 = vmatprep.subr.mxu0 0.0
  %918 = vmatpush2.msra.mxu0 0.0
  %919 = vmatprep.mubr.f32.mxu0 0.0
  %920 = vmatmul.mubr.f32.gmra.mxu0 %v584
  %v921 = vpop.f32.mrf.mxu0
  %v922 = vadd.f32 %v780, %v921
  %v923 = vpop.f32.mrf.mxu0
  %v924 = vadd.f32 %v782, %v923
  %925 = vdwg.mxu0
  %926 = vmatprep.subr.mxu0 %v648
  %927 = vmatpush1.msra.mxu0 %v647
  %928 = vmatprep.subr.mxu0 %v644
  %929 = vmatpush1.msra.mxu0 %v643
  %930 = vmatprep.subr.mxu0 %v640
  %931 = vmatpush1.msra.mxu0 %v639
  %932 = vmatprep.subr.mxu0 %v636
  %933 = vmatpush1.msra.mxu0 %v635
  %934 = vmatprep.subr.mxu0 %v632
  %935 = vmatpush1.msra.mxu0 %v631
  %936 = vmatprep.subr.mxu0 %v628
  %937 = vmatpush1.msra.mxu0 %v627
  %938 = vmatprep.subr.mxu0 %v624
  %939 = vmatpush1.msra.mxu0 %v623
  %940 = vmatprep.subr.mxu0 %v620
  %941 = vmatpush1.msra.mxu0 %v619
  %942 = vmatprep.subr.mxu0 %v616
  %943 = vmatpush1.msra.mxu0 %v615
  %944 = vmatprep.subr.mxu0 %v612
  %945 = vmatpush1.msra.mxu0 %v611
  %946 = vmatprep.subr.mxu0 %v608
  %947 = vmatpush1.msra.mxu0 %v607
  %948 = vmatprep.subr.mxu0 %v604
  %949 = vmatpush1.msra.mxu0 %v603
  %950 = vmatprep.subr.mxu0 %v600
  %951 = vmatpush1.msra.mxu0 %v599
  %952 = vmatprep.subr.mxu0 %v596
  %953 = vmatpush1.msra.mxu0 %v595
  %954 = vmatprep.subr.mxu0 %v592
  %955 = vmatpush1.msra.mxu0 %v591
  %956 = vmatprep.subr.mxu0 %v588
  %957 = vmatpush1.msra.mxu0 %v587
  %958 = vmatprep.subr.mxu0 0.0
  %959 = vmatpush2.msra.mxu0 0.0
  %960 = vmatprep.subr.mxu0 0.0
  %961 = vmatpush2.msra.mxu0 0.0
  %962 = vmatprep.subr.mxu0 0.0
  %963 = vmatpush2.msra.mxu0 0.0
  %964 = vmatprep.subr.mxu0 0.0
  %965 = vmatpush2.msra.mxu0 0.0
  %966 = vmatprep.subr.mxu0 0.0
  %967 = vmatpush2.msra.mxu0 0.0
  %968 = vmatprep.subr.mxu0 0.0
  %969 = vmatpush2.msra.mxu0 0.0
  %970 = vmatprep.subr.mxu0 0.0
  %971 = vmatpush2.msra.mxu0 0.0
  %972 = vmatprep.subr.mxu0 0.0
  %973 = vmatpush2.msra.mxu0 0.0
  %974 = vmatprep.subr.mxu0 0.0
  %975 = vmatpush2.msra.mxu0 0.0
  %976 = vmatprep.subr.mxu0 0.0
  %977 = vmatpush2.msra.mxu0 0.0
  %978 = vmatprep.subr.mxu0 0.0
  %979 = vmatpush2.msra.mxu0 0.0
  %980 = vmatprep.subr.mxu0 0.0
  %981 = vmatpush2.msra.mxu0 0.0
  %982 = vmatprep.subr.mxu0 0.0
  %983 = vmatpush2.msra.mxu0 0.0
  %984 = vmatprep.subr.mxu0 0.0
  %985 = vmatpush2.msra.mxu0 0.0
  %986 = vmatprep.subr.mxu0 0.0
  %987 = vmatpush2.msra.mxu0 0.0
  %988 = vmatprep.subr.mxu0 0.0
  %989 = vmatpush2.msra.mxu0 0.0
  %990 = vmatprep.mubr.f32.mxu0 0.0
  %991 = vmatmul.mubr.f32.gmra.mxu0 %v584
  %v992 = vpop.f32.mrf.mxu0
  %v993 = vadd.f32 %v851, %v992
  %v994 = vpop.f32.mrf.mxu0
  %v995 = vadd.f32 %v853, %v994
  %996 = vdwg.mxu0
  %v997 = vld [vmem:[%s8] sm:$0xf]
  %v999 = vlaneseq
  %v1000 = vshrl.u32 %v999, 7
  %v1001 = vsub.s32 0, %v1000
  %v1002 = vrot.slane %v997, %v1001
  %v1003 = vlaneseq
  %v1004 = vshrl.u32 %v1003, 7
  %v1005 = vsub.s32 1, %v1004
  %v1006 = vrot.slane %v997, %v1005
  %v1007 = vlaneseq
  %v1008 = vshrl.u32 %v1007, 7
  %v1009 = vsub.s32 2, %v1008
  %v1010 = vrot.slane %v997, %v1009
  %v1011 = vlaneseq
  %v1012 = vshrl.u32 %v1011, 7
  %v1013 = vsub.s32 3, %v1012
  %v1014 = vrot.slane %v997, %v1013
  %v1019 = vadd.f32 %v922, %v1002
  %v1020 = vadd.f32 %v924, %v1006
  %v1021 = vadd.f32 %v993, %v1010
  %v1022 = vadd.f32 %v995, %v1014
  %v1023 = vmul.f32 %v1019, 0.5
  %v1024 = vmul.f32 %v1020, 0.5
  %v1025 = vtanh.pop %v1023
  %v1026 = vtanh.pop %v1024
  %v1027 = vmul.f32 %v1025, 0.5
  %v1028 = vmul.f32 %v1026, 0.5
  %v1029 = vadd.f32 %v1027, 0.5
  %v1030 = vadd.f32 %v1028, 0.5
  %v1031 = vmul.f32 %v1029, %v1022
  %v1032 = vadd.f32 %v1021, %v1031
  %v1033 = vtanh.pop %v1032
  %v1034 = vsub.f32 1.0, %v1030
  %v1035 = vmul.f32 %v1034, %v1033
  %v1036 = vmul.f32 %v1030, 0.0
  %v1037 = vadd.f32 %v1035, %v1036
  %v1038 = vmul.f32 %v355, %v1037
  %v1039 = vadd.f32 %v1038, 0.0
  %s1040 = scalar_lea.vmem %s1, 8
  %v1041 = vld [vmem:[%s1040] sm:$0xff]
  %s1042 = smul.u32 1, 3
  %s1043 = smul.addr %s1042, 8
  %s1044 = scalar_lea.vmem [#allocation2], %s1043
  %v1045 = vld [vmem:[%s1044] sm:$0xff]
  %v1046 = vld [vmem:[%s1044 + $0x8] sm:$0xff]
  %v1047 = vld [vmem:[%s1044 + $0x10] sm:$0xff]
  %1048 = vmatprep.subr.mxu0 %v408
  %1049 = vmatpush1.msra.mxu0 %v407
  %1050 = vmatprep.subr.mxu0 %v405
  %1051 = vmatpush1.msra.mxu0 %v404
  %1052 = vmatprep.subr.mxu0 %v402
  %1053 = vmatpush1.msra.mxu0 %v401
  %1054 = vmatprep.subr.mxu0 %v399
  %1055 = vmatpush1.msra.mxu0 %v398
  %1056 = vmatprep.subr.mxu0 %v396
  %1057 = vmatpush1.msra.mxu0 %v395
  %1058 = vmatprep.subr.mxu0 %v393
  %1059 = vmatpush1.msra.mxu0 %v392
  %1060 = vmatprep.subr.mxu0 %v390
  %1061 = vmatpush1.msra.mxu0 %v389
  %1062 = vmatprep.subr.mxu0 %v387
  %1063 = vmatpush1.msra.mxu0 %v386
  %1064 = vmatprep.subr.mxu0 %v384
  %1065 = vmatpush1.msra.mxu0 %v383
  %1066 = vmatprep.subr.mxu0 %v381
  %1067 = vmatpush1.msra.mxu0 %v380
  %1068 = vmatprep.subr.mxu0 %v378
  %1069 = vmatpush1.msra.mxu0 %v377
  %1070 = vmatprep.subr.mxu0 %v375
  %1071 = vmatpush1.msra.mxu0 %v374
  %1072 = vmatprep.subr.mxu0 %v372
  %1073 = vmatpush1.msra.mxu0 %v371
  %1074 = vmatprep.subr.mxu0 %v369
  %1075 = vmatpush1.msra.mxu0 %v368
  %1076 = vmatprep.subr.mxu0 %v366
  %1077 = vmatpush1.msra.mxu0 %v365
  %1078 = vmatprep.subr.mxu0 %v363
  %1079 = vmatpush1.msra.mxu0 %v362
  %1080 = vmatprep.subr.mxu0 0.0
  %1081 = vmatpush2.msra.mxu0 0.0
  %1082 = vmatprep.subr.mxu0 0.0
  %1083 = vmatpush2.msra.mxu0 0.0
  %1084 = vmatprep.subr.mxu0 0.0
  %1085 = vmatpush2.msra.mxu0 0.0
  %1086 = vmatprep.subr.mxu0 0.0
  %1087 = vmatpush2.msra.mxu0 0.0
  %1088 = vmatprep.subr.mxu0 0.0
  %1089 = vmatpush2.msra.mxu0 0.0
  %1090 = vmatprep.subr.mxu0 0.0
  %1091 = vmatpush2.msra.mxu0 0.0
  %1092 = vmatprep.subr.mxu0 0.0
  %1093 = vmatpush2.msra.mxu0 0.0
  %1094 = vmatprep.subr.mxu0 0.0
  %1095 = vmatpush2.msra.mxu0 0.0
  %1096 = vmatprep.subr.mxu0 0.0
  %1097 = vmatpush2.msra.mxu0 0.0
  %1098 = vmatprep.subr.mxu0 0.0
  %1099 = vmatpush2.msra.mxu0 0.0
  %1100 = vmatprep.subr.mxu0 0.0
  %1101 = vmatpush2.msra.mxu0 0.0
  %1102 = vmatprep.subr.mxu0 0.0
  %1103 = vmatpush2.msra.mxu0 0.0
  %1104 = vmatprep.subr.mxu0 0.0
  %1105 = vmatpush2.msra.mxu0 0.0
  %1106 = vmatprep.subr.mxu0 0.0
  %1107 = vmatpush2.msra.mxu0 0.0
  %1108 = vmatprep.subr.mxu0 0.0
  %1109 = vmatpush2.msra.mxu0 0.0
  %1110 = vmatprep.subr.mxu0 0.0
  %1111 = vmatpush2.msra.mxu0 0.0
  %1112 = vmatprep.mubr.f32.mxu0 0.0
  %1113 = vmatmul.mubr.f32.gmra.mxu0 %v584
  %v1114 = vpop.f32.mrf.mxu0
  %v1115 = vadd.f32 %v415, %v1114
  %v1116 = vpop.f32.mrf.mxu0
  %v1117 = vadd.f32 %v419, %v1116
  %1118 = vdwg.mxu0
  %1119 = vmatprep.subr.mxu0 0.0
  %1120 = vmatpush1.msra.mxu0 %v409
  %1121 = vmatprep.subr.mxu0 0.0
  %1122 = vmatpush1.msra.mxu0 %v406
  %1123 = vmatprep.subr.mxu0 0.0
  %1124 = vmatpush1.msra.mxu0 %v403
  %1125 = vmatprep.subr.mxu0 0.0
  %1126 = vmatpush1.msra.mxu0 %v400
  %1127 = vmatprep.subr.mxu0 0.0
  %1128 = vmatpush1.msra.mxu0 %v397
  %1129 = vmatprep.subr.mxu0 0.0
  %1130 = vmatpush1.msra.mxu0 %v394
  %1131 = vmatprep.subr.mxu0 0.0
  %1132 = vmatpush1.msra.mxu0 %v391
  %1133 = vmatprep.subr.mxu0 0.0
  %1134 = vmatpush1.msra.mxu0 %v388
  %1135 = vmatprep.subr.mxu0 0.0
  %1136 = vmatpush1.msra.mxu0 %v385
  %1137 = vmatprep.subr.mxu0 0.0
  %1138 = vmatpush1.msra.mxu0 %v382
  %1139 = vmatprep.subr.mxu0 0.0
  %1140 = vmatpush1.msra.mxu0 %v379
  %1141 = vmatprep.subr.mxu0 0.0
  %1142 = vmatpush1.msra.mxu0 %v376
  %1143 = vmatprep.subr.mxu0 0.0
  %1144 = vmatpush1.msra.mxu0 %v373
  %1145 = vmatprep.subr.mxu0 0.0
  %1146 = vmatpush1.msra.mxu0 %v370
  %1147 = vmatprep.subr.mxu0 0.0
  %1148 = vmatpush1.msra.mxu0 %v367
  %1149 = vmatprep.subr.mxu0 0.0
  %1150 = vmatpush1.msra.mxu0 %v364
  %1151 = vmatprep.subr.mxu0 0.0
  %1152 = vmatpush2.msra.mxu0 0.0
  %1153 = vmatprep.subr.mxu0 0.0
  %1154 = vmatpush2.msra.mxu0 0.0
  %1155 = vmatprep.subr.mxu0 0.0
  %1156 = vmatpush2.msra.mxu0 0.0
  %1157 = vmatprep.subr.mxu0 0.0
  %1158 = vmatpush2.msra.mxu0 0.0
  %1159 = vmatprep.subr.mxu0 0.0
  %1160 = vmatpush2.msra.mxu0 0.0
  %1161 = vmatprep.subr.mxu0 0.0
  %1162 = vmatpush2.msra.mxu0 0.0
  %1163 = vmatprep.subr.mxu0 0.0
  %1164 = vmatpush2.msra.mxu0 0.0
  %1165 = vmatprep.subr.mxu0 0.0
  %1166 = vmatpush2.msra.mxu0 0.0
  %1167 = vmatprep.subr.mxu0 0.0
  %1168 = vmatpush2.msra.mxu0 0.0
  %1169 = vmatprep.subr.mxu0 0.0
  %1170 = vmatpush2.msra.mxu0 0.0
  %1171 = vmatprep.subr.mxu0 0.0
  %1172 = vmatpush2.msra.mxu0 0.0
  %1173 = vmatprep.subr.mxu0 0.0
  %1174 = vmatpush2.msra.mxu0 0.0
  %1175 = vmatprep.subr.mxu0 0.0
  %1176 = vmatpush2.msra.mxu0 0.0
  %1177 = vmatprep.subr.mxu0 0.0
  %1178 = vmatpush2.msra.mxu0 0.0
  %1179 = vmatprep.subr.mxu0 0.0
  %1180 = vmatpush2.msra.mxu0 0.0
  %1181 = vmatprep.subr.mxu0 0.0
  %1182 = vmatpush2.msra.mxu0 0.0
  %1183 = vmatprep.mubr.f32.mxu0 0.0
  %1184 = vmatmul.mubr.f32.gmra.mxu0 %v584
  %v1185 = vpop.f32.mrf.mxu0
  %v1186 = vadd.f32 %v423, %v1185
  %v1187 = vpop.f32.mrf.mxu0
  %1188 = vdwg.mxu0
  %v1189 = vadd.f32 %v1045, %v1115
  %v1190 = vadd.f32 %v1046, %v1117
  %v1191 = vmul.f32 %v1189, 0.5
  %v1192 = vmul.f32 %v1190, 0.5
  %v1193 = vtanh.pop %v1191
  %v1194 = vtanh.pop %v1192
  %v1195 = vmul.f32 %v1193, 0.5
  %v1196 = vmul.f32 %v1194, 0.5
  %v1197 = vadd.f32 %v1195, 0.5
  %v1198 = vadd.f32 %v1196, 0.5
  %v1199 = vmul.f32 %v1197, %v1186
  %v1200 = vadd.f32 %v1047, %v1199
  %v1201 = vtanh.pop %v1200
  %v1202 = vsub.f32 1.0, %v1198
  %v1203 = vmul.f32 %v1202, %v1201
  %v1204 = vmul.f32 %v1198, %v584
  %v1205 = vadd.f32 %v1203, %v1204
  %1206 = vmatprep.subr.mxu0 %v710
  %1207 = vmatpush1.msra.mxu0 %v709
  %1208 = vmatprep.subr.mxu0 %v706
  %1209 = vmatpush1.msra.mxu0 %v705
  %1210 = vmatprep.subr.mxu0 %v702
  %1211 = vmatpush1.msra.mxu0 %v701
  %1212 = vmatprep.subr.mxu0 %v698
  %1213 = vmatpush1.msra.mxu0 %v697
  %1214 = vmatprep.subr.mxu0 %v694
  %1215 = vmatpush1.msra.mxu0 %v693
  %1216 = vmatprep.subr.mxu0 %v690
  %1217 = vmatpush1.msra.mxu0 %v689
  %1218 = vmatprep.subr.mxu0 %v686
  %1219 = vmatpush1.msra.mxu0 %v685
  %1220 = vmatprep.subr.mxu0 %v682
  %1221 = vmatpush1.msra.mxu0 %v681
  %1222 = vmatprep.subr.mxu0 %v678
  %1223 = vmatpush1.msra.mxu0 %v677
  %1224 = vmatprep.subr.mxu0 %v674
  %1225 = vmatpush1.msra.mxu0 %v673
  %1226 = vmatprep.subr.mxu0 %v670
  %1227 = vmatpush1.msra.mxu0 %v669
  %1228 = vmatprep.subr.mxu0 %v666
  %1229 = vmatpush1.msra.mxu0 %v665
  %1230 = vmatprep.subr.mxu0 %v662
  %1231 = vmatpush1.msra.mxu0 %v661
  %1232 = vmatprep.subr.mxu0 %v658
  %1233 = vmatpush1.msra.mxu0 %v657
  %1234 = vmatprep.subr.mxu0 %v654
  %1235 = vmatpush1.msra.mxu0 %v653
  %1236 = vmatprep.subr.mxu0 %v650
  %1237 = vmatpush1.msra.mxu0 %v649
  %1238 = vmatprep.subr.mxu0 0.0
  %1239 = vmatpush2.msra.mxu0 0.0
  %1240 = vmatprep.subr.mxu0 0.0
  %1241 = vmatpush2.msra.mxu0 0.0
  %1242 = vmatprep.subr.mxu0 0.0
  %1243 = vmatpush2.msra.mxu0 0.0
  %1244 = vmatprep.subr.mxu0 0.0
  %1245 = vmatpush2.msra.mxu0 0.0
  %1246 = vmatprep.subr.mxu0 0.0
  %1247 = vmatpush2.msra.mxu0 0.0
  %1248 = vmatprep.subr.mxu0 0.0
  %1249 = vmatpush2.msra.mxu0 0.0
  %1250 = vmatprep.subr.mxu0 0.0
  %1251 = vmatpush2.msra.mxu0 0.0
  %1252 = vmatprep.subr.mxu0 0.0
  %1253 = vmatpush2.msra.mxu0 0.0
  %1254 = vmatprep.subr.mxu0 0.0
  %1255 = vmatpush2.msra.mxu0 0.0
  %1256 = vmatprep.subr.mxu0 0.0
  %1257 = vmatpush2.msra.mxu0 0.0
  %1258 = vmatprep.subr.mxu0 0.0
  %1259 = vmatpush2.msra.mxu0 0.0
  %1260 = vmatprep.subr.mxu0 0.0
  %1261 = vmatpush2.msra.mxu0 0.0
  %1262 = vmatprep.subr.mxu0 0.0
  %1263 = vmatpush2.msra.mxu0 0.0
  %1264 = vmatprep.subr.mxu0 0.0
  %1265 = vmatpush2.msra.mxu0 0.0
  %1266 = vmatprep.subr.mxu0 0.0
  %1267 = vmatpush2.msra.mxu0 0.0
  %1268 = vmatprep.subr.mxu0 0.0
  %1269 = vmatpush2.msra.mxu0 0.0
  %1270 = vmatprep.mubr.f32.mxu0 0.0
  %1271 = vmatmul.mubr.f32.gmra.mxu0 %v1037
  %v1272 = vpop.f32.mrf.mxu0
  %v1273 = vadd.f32 0.0, %v1272
  %v1274 = vpop.f32.mrf.mxu0
  %v1275 = vadd.f32 0.0, %v1274
  %1276 = vdwg.mxu0
  %1277 = vmatprep.subr.mxu0 %v712
  %1278 = vmatpush1.msra.mxu0 %v711
  %1279 = vmatprep.subr.mxu0 %v708
  %1280 = vmatpush1.msra.mxu0 %v707
  %1281 = vmatprep.subr.mxu0 %v704
  %1282 = vmatpush1.msra.mxu0 %v703
  %1283 = vmatprep.subr.mxu0 %v700
  %1284 = vmatpush1.msra.mxu0 %v699
  %1285 = vmatprep.subr.mxu0 %v696
  %1286 = vmatpush1.msra.mxu0 %v695
  %1287 = vmatprep.subr.mxu0 %v692
  %1288 = vmatpush1.msra.mxu0 %v691
  %1289 = vmatprep.subr.mxu0 %v688
  %1290 = vmatpush1.msra.mxu0 %v687
  %1291 = vmatprep.subr.mxu0 %v684
  %1292 = vmatpush1.msra.mxu0 %v683
  %1293 = vmatprep.subr.mxu0 %v680
  %1294 = vmatpush1.msra.mxu0 %v679
  %1295 = vmatprep.subr.mxu0 %v676
  %1296 = vmatpush1.msra.mxu0 %v675
  %1297 = vmatprep.subr.mxu0 %v672
  %1298 = vmatpush1.msra.mxu0 %v671
  %1299 = vmatprep.subr.mxu0 %v668
  %1300 = vmatpush1.msra.mxu0 %v667
  %1301 = vmatprep.subr.mxu0 %v664
  %1302 = vmatpush1.msra.mxu0 %v663
  %1303 = vmatprep.subr.mxu0 %v660
  %1304 = vmatpush1.msra.mxu0 %v659
  %1305 = vmatprep.subr.mxu0 %v656
  %1306 = vmatpush1.msra.mxu0 %v655
  %1307 = vmatprep.subr.mxu0 %v652
  %1308 = vmatpush1.msra.mxu0 %v651
  %1309 = vmatprep.subr.mxu0 0.0
  %1310 = vmatpush2.msra.mxu0 0.0
  %1311 = vmatprep.subr.mxu0 0.0
  %1312 = vmatpush2.msra.mxu0 0.0
  %1313 = vmatprep.subr.mxu0 0.0
  %1314 = vmatpush2.msra.mxu0 0.0
  %1315 = vmatprep.subr.mxu0 0.0
  %1316 = vmatpush2.msra.mxu0 0.0
  %1317 = vmatprep.subr.mxu0 0.0
  %1318 = vmatpush2.msra.mxu0 0.0
  %1319 = vmatprep.subr.mxu0 0.0
  %1320 = vmatpush2.msra.mxu0 0.0
  %1321 = vmatprep.subr.mxu0 0.0
  %1322 = vmatpush2.msra.mxu0 0.0
  %1323 = vmatprep.subr.mxu0 0.0
  %1324 = vmatpush2.msra.mxu0 0.0
  %1325 = vmatprep.subr.mxu0 0.0
  %1326 = vmatpush2.msra.mxu0 0.0
  %1327 = vmatprep.subr.mxu0 0.0
  %1328 = vmatpush2.msra.mxu0 0.0
  %1329 = vmatprep.subr.mxu0 0.0
  %1330 = vmatpush2.msra.mxu0 0.0
  %1331 = vmatprep.subr.mxu0 0.0
  %1332 = vmatpush2.msra.mxu0 0.0
  %1333 = vmatprep.subr.mxu0 0.0
  %1334 = vmatpush2.msra.mxu0 0.0
  %1335 = vmatprep.subr.mxu0 0.0
  %1336 = vmatpush2.msra.mxu0 0.0
  %1337 = vmatprep.subr.mxu0 0.0
  %1338 = vmatpush2.msra.mxu0 0.0
  %1339 = vmatprep.subr.mxu0 0.0
  %1340 = vmatpush2.msra.mxu0 0.0
  %1341 = vmatprep.mubr.f32.mxu0 0.0
  %1342 = vmatmul.mubr.f32.gmra.mxu0 %v1037
  %v1343 = vpop.f32.mrf.mxu0
  %v1344 = vadd.f32 0.0, %v1343
  %v1345 = vpop.f32.mrf.mxu0
  %v1346 = vadd.f32 0.0, %v1345
  %1347 = vdwg.mxu0
  %1348 = vmatprep.subr.mxu0 %v646
  %1349 = vmatpush1.msra.mxu0 %v645
  %1350 = vmatprep.subr.mxu0 %v642
  %1351 = vmatpush1.msra.mxu0 %v641
  %1352 = vmatprep.subr.mxu0 %v638
  %1353 = vmatpush1.msra.mxu0 %v637
  %1354 = vmatprep.subr.mxu0 %v634
  %1355 = vmatpush1.msra.mxu0 %v633
  %1356 = vmatprep.subr.mxu0 %v630
  %1357 = vmatpush1.msra.mxu0 %v629
  %1358 = vmatprep.subr.mxu0 %v626
  %1359 = vmatpush1.msra.mxu0 %v625
  %1360 = vmatprep.subr.mxu0 %v622
  %1361 = vmatpush1.msra.mxu0 %v621
  %1362 = vmatprep.subr.mxu0 %v618
  %1363 = vmatpush1.msra.mxu0 %v617
  %1364 = vmatprep.subr.mxu0 %v614
  %1365 = vmatpush1.msra.mxu0 %v613
  %1366 = vmatprep.subr.mxu0 %v610
  %1367 = vmatpush1.msra.mxu0 %v609
  %1368 = vmatprep.subr.mxu0 %v606
  %1369 = vmatpush1.msra.mxu0 %v605
  %1370 = vmatprep.subr.mxu0 %v602
  %1371 = vmatpush1.msra.mxu0 %v601
  %1372 = vmatprep.subr.mxu0 %v598
  %1373 = vmatpush1.msra.mxu0 %v597
  %1374 = vmatprep.subr.mxu0 %v594
  %1375 = vmatpush1.msra.mxu0 %v593
  %1376 = vmatprep.subr.mxu0 %v590
  %1377 = vmatpush1.msra.mxu0 %v589
  %1378 = vmatprep.subr.mxu0 %v586
  %1379 = vmatpush1.msra.mxu0 %v585
  %1380 = vmatprep.subr.mxu0 0.0
  %1381 = vmatpush2.msra.mxu0 0.0
  %1382 = vmatprep.subr.mxu0 0.0
  %1383 = vmatpush2.msra.mxu0 0.0
  %1384 = vmatprep.subr.mxu0 0.0
  %1385 = vmatpush2.msra.mxu0 0.0
  %1386 = vmatprep.subr.mxu0 0.0
  %1387 = vmatpush2.msra.mxu0 0.0
  %1388 = vmatprep.subr.mxu0 0.0
  %1389 = vmatpush2.msra.mxu0 0.0
  %1390 = vmatprep.subr.mxu0 0.0
  %1391 = vmatpush2.msra.mxu0 0.0
  %1392 = vmatprep.subr.mxu0 0.0
  %1393 = vmatpush2.msra.mxu0 0.0
  %1394 = vmatprep.subr.mxu0 0.0
  %1395 = vmatpush2.msra.mxu0 0.0
  %1396 = vmatprep.subr.mxu0 0.0
  %1397 = vmatpush2.msra.mxu0 0.0
  %1398 = vmatprep.subr.mxu0 0.0
  %1399 = vmatpush2.msra.mxu0 0.0
  %1400 = vmatprep.subr.mxu0 0.0
  %1401 = vmatpush2.msra.mxu0 0.0
  %1402 = vmatprep.subr.mxu0 0.0
  %1403 = vmatpush2.msra.mxu0 0.0
  %1404 = vmatprep.subr.mxu0 0.0
  %1405 = vmatpush2.msra.mxu0 0.0
  %1406 = vmatprep.subr.mxu0 0.0
  %1407 = vmatpush2.msra.mxu0 0.0
  %1408 = vmatprep.subr.mxu0 0.0
  %1409 = vmatpush2.msra.mxu0 0.0
  %1410 = vmatprep.subr.mxu0 0.0
  %1411 = vmatpush2.msra.mxu0 0.0
  %1412 = vmatprep.mubr.f32.mxu0 0.0
  %1413 = vmatmul.mubr.f32.gmra.mxu0 %v1205
  %v1414 = vpop.f32.mrf.mxu0
  %v1415 = vadd.f32 %v1273, %v1414
  %v1416 = vpop.f32.mrf.mxu0
  %v1417 = vadd.f32 %v1275, %v1416
  %1418 = vdwg.mxu0
  %1419 = vmatprep.subr.mxu0 %v648
  %1420 = vmatpush1.msra.mxu0 %v647
  %1421 = vmatprep.subr.mxu0 %v644
  %1422 = vmatpush1.msra.mxu0 %v643
  %1423 = vmatprep.subr.mxu0 %v640
  %1424 = vmatpush1.msra.mxu0 %v639
  %1425 = vmatprep.subr.mxu0 %v636
  %1426 = vmatpush1.msra.mxu0 %v635
  %1427 = vmatprep.subr.mxu0 %v632
  %1428 = vmatpush1.msra.mxu0 %v631
  %1429 = vmatprep.subr.mxu0 %v628
  %1430 = vmatpush1.msra.mxu0 %v627
  %1431 = vmatprep.subr.mxu0 %v624
  %1432 = vmatpush1.msra.mxu0 %v623
  %1433 = vmatprep.subr.mxu0 %v620
  %1434 = vmatpush1.msra.mxu0 %v619
  %1435 = vmatprep.subr.mxu0 %v616
  %1436 = vmatpush1.msra.mxu0 %v615
  %1437 = vmatprep.subr.mxu0 %v612
  %1438 = vmatpush1.msra.mxu0 %v611
  %1439 = vmatprep.subr.mxu0 %v608
  %1440 = vmatpush1.msra.mxu0 %v607
  %1441 = vmatprep.subr.mxu0 %v604
  %1442 = vmatpush1.msra.mxu0 %v603
  %1443 = vmatprep.subr.mxu0 %v600
  %1444 = vmatpush1.msra.mxu0 %v599
  %1445 = vmatprep.subr.mxu0 %v596
  %1446 = vmatpush1.msra.mxu0 %v595
  %1447 = vmatprep.subr.mxu0 %v592
  %1448 = vmatpush1.msra.mxu0 %v591
  %1449 = vmatprep.subr.mxu0 %v588
  %1450 = vmatpush1.msra.mxu0 %v587
  %1451 = vmatprep.subr.mxu0 0.0
  %1452 = vmatpush2.msra.mxu0 0.0
  %1453 = vmatprep.subr.mxu0 0.0
  %1454 = vmatpush2.msra.mxu0 0.0
  %1455 = vmatprep.subr.mxu0 0.0
  %1456 = vmatpush2.msra.mxu0 0.0
  %1457 = vmatprep.subr.mxu0 0.0
  %1458 = vmatpush2.msra.mxu0 0.0
  %1459 = vmatprep.subr.mxu0 0.0
  %1460 = vmatpush2.msra.mxu0 0.0
  %1461 = vmatprep.subr.mxu0 0.0
  %1462 = vmatpush2.msra.mxu0 0.0
  %1463 = vmatprep.subr.mxu0 0.0
  %1464 = vmatpush2.msra.mxu0 0.0
  %1465 = vmatprep.subr.mxu0 0.0
  %1466 = vmatpush2.msra.mxu0 0.0
  %1467 = vmatprep.subr.mxu0 0.0
  %1468 = vmatpush2.msra.mxu0 0.0
  %1469 = vmatprep.subr.mxu0 0.0
  %1470 = vmatpush2.msra.mxu0 0.0
  %1471 = vmatprep.subr.mxu0 0.0
  %1472 = vmatpush2.msra.mxu0 0.0
  %1473 = vmatprep.subr.mxu0 0.0
  %1474 = vmatpush2.msra.mxu0 0.0
  %1475 = vmatprep.subr.mxu0 0.0
  %1476 = vmatpush2.msra.mxu0 0.0
  %1477 = vmatprep.subr.mxu0 0.0
  %1478 = vmatpush2.msra.mxu0 0.0
  %1479 = vmatprep.subr.mxu0 0.0
  %1480 = vmatpush2.msra.mxu0 0.0
  %1481 = vmatprep.subr.mxu0 0.0
  %1482 = vmatpush2.msra.mxu0 0.0
  %1483 = vmatprep.mubr.f32.mxu0 0.0
  %1484 = vmatmul.mubr.f32.gmra.mxu0 %v1205
  %v1485 = vpop.f32.mrf.mxu0
  %v1486 = vadd.f32 %v1344, %v1485
  %v1487 = vpop.f32.mrf.mxu0
  %v1488 = vadd.f32 %v1346, %v1487
  %1489 = vdwg.mxu0
  %v1490 = vadd.f32 %v1415, %v1002
  %v1491 = vadd.f32 %v1417, %v1006
  %v1492 = vadd.f32 %v1486, %v1010
  %v1493 = vadd.f32 %v1488, %v1014
  %v1494 = vmul.f32 %v1490, 0.5
  %v1495 = vmul.f32 %v1491, 0.5
  %v1496 = vtanh.pop %v1494
  %v1497 = vtanh.pop %v1495
  %v1498 = vmul.f32 %v1496, 0.5
  %v1499 = vmul.f32 %v1497, 0.5
  %v1500 = vadd.f32 %v1498, 0.5
  %v1501 = vadd.f32 %v1499, 0.5
  %v1502 = vmul.f32 %v1500, %v1493
  %v1503 = vadd.f32 %v1492, %v1502
  %v1504 = vtanh.pop %v1503
  %v1505 = vsub.f32 1.0, %v1501
  %v1506 = vmul.f32 %v1505, %v1504
  %v1507 = vmul.f32 %v1501, %v1037
  %v1508 = vadd.f32 %v1506, %v1507
  %v1509 = vmul.f32 %v1041, %v1508
  %v1510 = vadd.f32 %v1039, %v1509
  %s1511 = scalar_lea.vmem %s1, 16
  %v1512 = vld [vmem:[%s1511] sm:$0xff]
  %s1513 = smul.u32 2, 3
  %s1514 = smul.addr %s1513, 8
  %s1515 = scalar_lea.vmem [#allocation2], %s1514
  %v1516 = vld [vmem:[%s1515] sm:$0xff]
  %v1517 = vld [vmem:[%s1515 + $0x8] sm:$0xff]
  %v1518 = vld [vmem:[%s1515 + $0x10] sm:$0xff]
  %1519 = vmatprep.subr.mxu0 %v408
  %1520 = vmatpush1.msra.mxu0 %v407
  %1521 = vmatprep.subr.mxu0 %v405
  %1522 = vmatpush1.msra.mxu0 %v404
  %1523 = vmatprep.subr.mxu0 %v402
  %1524 = vmatpush1.msra.mxu0 %v401
  %1525 = vmatprep.subr.mxu0 %v399
  %1526 = vmatpush1.msra.mxu0 %v398
  %1527 = vmatprep.subr.mxu0 %v396
  %1528 = vmatpush1.msra.mxu0 %v395
  %1529 = vmatprep.subr.mxu0 %v393
  %1530 = vmatpush1.msra.mxu0 %v392
  %1531 = vmatprep.subr.mxu0 %v390
  %1532 = vmatpush1.msra.mxu0 %v389
  %1533 = vmatprep.subr.mxu0 %v387
  %1534 = vmatpush1.msra.mxu0 %v386
  %1535 = vmatprep.subr.mxu0 %v384
  %1536 = vmatpush1.msra.mxu0 %v383
  %1537 = vmatprep.subr.mxu0 %v381
  %1538 = vmatpush1.msra.mxu0 %v380
  %1539 = vmatprep.subr.mxu0 %v378
  %1540 = vmatpush1.msra.mxu0 %v377
  %1541 = vmatprep.subr.mxu0 %v375
  %1542 = vmatpush1.msra.mxu0 %v374
  %1543 = vmatprep.subr.mxu0 %v372
  %1544 = vmatpush1.msra.mxu0 %v371
  %1545 = vmatprep.subr.mxu0 %v369
  %1546 = vmatpush1.msra.mxu0 %v368
  %1547 = vmatprep.subr.mxu0 %v366
  %1548 = vmatpush1.msra.mxu0 %v365
  %1549 = vmatprep.subr.mxu0 %v363
  %1550 = vmatpush1.msra.mxu0 %v362
  %1551 = vmatprep.subr.mxu0 0.0
  %1552 = vmatpush2.msra.mxu0 0.0
  %1553 = vmatprep.subr.mxu0 0.0
  %1554 = vmatpush2.msra.mxu0 0.0
  %1555 = vmatprep.subr.mxu0 0.0
  %1556 = vmatpush2.msra.mxu0 0.0
  %1557 = vmatprep.subr.mxu0 0.0
  %1558 = vmatpush2.msra.mxu0 0.0
  %1559 = vmatprep.subr.mxu0 0.0
  %1560 = vmatpush2.msra.mxu0 0.0
  %1561 = vmatprep.subr.mxu0 0.0
  %1562 = vmatpush2.msra.mxu0 0.0
  %1563 = vmatprep.subr.mxu0 0.0
  %1564 = vmatpush2.msra.mxu0 0.0
  %1565 = vmatprep.subr.mxu0 0.0
  %1566 = vmatpush2.msra.mxu0 0.0
  %1567 = vmatprep.subr.mxu0 0.0
  %1568 = vmatpush2.msra.mxu0 0.0
  %1569 = vmatprep.subr.mxu0 0.0
  %1570 = vmatpush2.msra.mxu0 0.0
  %1571 = vmatprep.subr.mxu0 0.0
  %1572 = vmatpush2.msra.mxu0 0.0
  %1573 = vmatprep.subr.mxu0 0.0
  %1574 = vmatpush2.msra.mxu0 0.0
  %1575 = vmatprep.subr.mxu0 0.0
  %1576 = vmatpush2.msra.mxu0 0.0
  %1577 = vmatprep.subr.mxu0 0.0
  %1578 = vmatpush2.msra.mxu0 0.0
  %1579 = vmatprep.subr.mxu0 0.0
  %1580 = vmatpush2.msra.mxu0 0.0
  %1581 = vmatprep.subr.mxu0 0.0
  %1582 = vmatpush2.msra.mxu0 0.0
  %1583 = vmatprep.mubr.f32.mxu0 0.0
  %1584 = vmatmul.mubr.f32.gmra.mxu0 %v1205
  %v1585 = vpop.f32.mrf.mxu0
  %v1586 = vadd.f32 %v415, %v1585
  %v1587 = vpop.f32.mrf.mxu0
  %v1588 = vadd.f32 %v419, %v1587
  %1589 = vdwg.mxu0
  %1590 = vmatprep.subr.mxu0 0.0
  %1591 = vmatpush1.msra.mxu0 %v409
  %1592 = vmatprep.subr.mxu0 0.0
  %1593 = vmatpush1.msra.mxu0 %v406
  %1594 = vmatprep.subr.mxu0 0.0
  %1595 = vmatpush1.msra.mxu0 %v403
  %1596 = vmatprep.subr.mxu0 0.0
  %1597 = vmatpush1.msra.mxu0 %v400
  %1598 = vmatprep.subr.mxu0 0.0
  %1599 = vmatpush1.msra.mxu0 %v397
  %1600 = vmatprep.subr.mxu0 0.0
  %1601 = vmatpush1.msra.mxu0 %v394
  %1602 = vmatprep.subr.mxu0 0.0
  %1603 = vmatpush1.msra.mxu0 %v391
  %1604 = vmatprep.subr.mxu0 0.0
  %1605 = vmatpush1.msra.mxu0 %v388
  %1606 = vmatprep.subr.mxu0 0.0
  %1607 = vmatpush1.msra.mxu0 %v385
  %1608 = vmatprep.subr.mxu0 0.0
  %1609 = vmatpush1.msra.mxu0 %v382
  %1610 = vmatprep.subr.mxu0 0.0
  %1611 = vmatpush1.msra.mxu0 %v379
  %1612 = vmatprep.subr.mxu0 0.0
  %1613 = vmatpush1.msra.mxu0 %v376
  %1614 = vmatprep.subr.mxu0 0.0
  %1615 = vmatpush1.msra.mxu0 %v373
  %1616 = vmatprep.subr.mxu0 0.0
  %1617 = vmatpush1.msra.mxu0 %v370
  %1618 = vmatprep.subr.mxu0 0.0
  %1619 = vmatpush1.msra.mxu0 %v367
  %1620 = vmatprep.subr.mxu0 0.0
  %1621 = vmatpush1.msra.mxu0 %v364
  %1622 = vmatprep.subr.mxu0 0.0
  %1623 = vmatpush2.msra.mxu0 0.0
  %1624 = vmatprep.subr.mxu0 0.0
  %1625 = vmatpush2.msra.mxu0 0.0
  %1626 = vmatprep.subr.mxu0 0.0
  %1627 = vmatpush2.msra.mxu0 0.0
  %1628 = vmatprep.subr.mxu0 0.0
  %1629 = vmatpush2.msra.mxu0 0.0
  %1630 = vmatprep.subr.mxu0 0.0
  %1631 = vmatpush2.msra.mxu0 0.0
  %1632 = vmatprep.subr.mxu0 0.0
  %1633 = vmatpush2.msra.mxu0 0.0
  %1634 = vmatprep.subr.mxu0 0.0
  %1635 = vmatpush2.msra.mxu0 0.0
  %1636 = vmatprep.subr.mxu0 0.0
  %1637 = vmatpush2.msra.mxu0 0.0
  %1638 = vmatprep.subr.mxu0 0.0
  %1639 = vmatpush2.msra.mxu0 0.0
  %1640 = vmatprep.subr.mxu0 0.0
  %1641 = vmatpush2.msra.mxu0 0.0
  %1642 = vmatprep.subr.mxu0 0.0
  %1643 = vmatpush2.msra.mxu0 0.0
  %1644 = vmatprep.subr.mxu0 0.0
  %1645 = vmatpush2.msra.mxu0 0.0
  %1646 = vmatprep.subr.mxu0 0.0
  %1647 = vmatpush2.msra.mxu0 0.0
  %1648 = vmatprep.subr.mxu0 0.0
  %1649 = vmatpush2.msra.mxu0 0.0
  %1650 = vmatprep.subr.mxu0 0.0
  %1651 = vmatpush2.msra.mxu0 0.0
  %1652 = vmatprep.subr.mxu0 0.0
  %1653 = vmatpush2.msra.mxu0 0.0
  %1654 = vmatprep.mubr.f32.mxu0 0.0
  %1655 = vmatmul.mubr.f32.gmra.mxu0 %v1205
  %v1656 = vpop.f32.mrf.mxu0
  %v1657 = vadd.f32 %v423, %v1656
  %v1658 = vpop.f32.mrf.mxu0
  %1659 = vdwg.mxu0
  %v1660 = vadd.f32 %v1516, %v1586
  %v1661 = vadd.f32 %v1517, %v1588
  %v1662 = vmul.f32 %v1660, 0.5
  %v1663 = vmul.f32 %v1661, 0.5
  %v1664 = vtanh.pop %v1662
  %v1665 = vtanh.pop %v1663
  %v1666 = vmul.f32 %v1664, 0.5
  %v1667 = vmul.f32 %v1665, 0.5
  %v1668 = vadd.f32 %v1666, 0.5
  %v1669 = vadd.f32 %v1667, 0.5
  %v1670 = vmul.f32 %v1668, %v1657
  %v1671 = vadd.f32 %v1518, %v1670
  %v1672 = vtanh.pop %v1671
  %v1673 = vsub.f32 1.0, %v1669
  %v1674 = vmul.f32 %v1673, %v1672
  %v1675 = vmul.f32 %v1669, %v1205
  %v1676 = vadd.f32 %v1674, %v1675
  %1677 = vmatprep.subr.mxu0 %v710
  %1678 = vmatpush1.msra.mxu0 %v709
  %1679 = vmatprep.subr.mxu0 %v706
  %1680 = vmatpush1.msra.mxu0 %v705
  %1681 = vmatprep.subr.mxu0 %v702
  %1682 = vmatpush1.msra.mxu0 %v701
  %1683 = vmatprep.subr.mxu0 %v698
  %1684 = vmatpush1.msra.mxu0 %v697
  %1685 = vmatprep.subr.mxu0 %v694
  %1686 = vmatpush1.msra.mxu0 %v693
  %1687 = vmatprep.subr.mxu0 %v690
  %1688 = vmatpush1.msra.mxu0 %v689
  %1689 = vmatprep.subr.mxu0 %v686
  %1690 = vmatpush1.msra.mxu0 %v685
  %1691 = vmatprep.subr.mxu0 %v682
  %1692 = vmatpush1.msra.mxu0 %v681
  %1693 = vmatprep.subr.mxu0 %v678
  %1694 = vmatpush1.msra.mxu0 %v677
  %1695 = vmatprep.subr.mxu0 %v674
  %1696 = vmatpush1.msra.mxu0 %v673
  %1697 = vmatprep.subr.mxu0 %v670
  %1698 = vmatpush1.msra.mxu0 %v669
  %1699 = vmatprep.subr.mxu0 %v666
  %1700 = vmatpush1.msra.mxu0 %v665
  %1701 = vmatprep.subr.mxu0 %v662
  %1702 = vmatpush1.msra.mxu0 %v661
  %1703 = vmatprep.subr.mxu0 %v658
  %1704 = vmatpush1.msra.mxu0 %v657
  %1705 = vmatprep.subr.mxu0 %v654
  %1706 = vmatpush1.msra.mxu0 %v653
  %1707 = vmatprep.subr.mxu0 %v650
  %1708 = vmatpush1.msra.mxu0 %v649
  %1709 = vmatprep.subr.mxu0 0.0
  %1710 = vmatpush2.msra.mxu0 0.0
  %1711 = vmatprep.subr.mxu0 0.0
  %1712 = vmatpush2.msra.mxu0 0.0
  %1713 = vmatprep.subr.mxu0 0.0
  %1714 = vmatpush2.msra.mxu0 0.0
  %1715 = vmatprep.subr.mxu0 0.0
  %1716 = vmatpush2.msra.mxu0 0.0
  %1717 = vmatprep.subr.mxu0 0.0
  %1718 = vmatpush2.msra.mxu0 0.0
  %1719 = vmatprep.subr.mxu0 0.0
  %1720 = vmatpush2.msra.mxu0 0.0
  %1721 = vmatprep.subr.mxu0 0.0
  %1722 = vmatpush2.msra.mxu0 0.0
  %1723 = vmatprep.subr.mxu0 0.0
  %1724 = vmatpush2.msra.mxu0 0.0
  %1725 = vmatprep.subr.mxu0 0.0
  %1726 = vmatpush2.msra.mxu0 0.0
  %1727 = vmatprep.subr.mxu0 0.0
  %1728 = vmatpush2.msra.mxu0 0.0
  %1729 = vmatprep.subr.mxu0 0.0
  %1730 = vmatpush2.msra.mxu0 0.0
  %1731 = vmatprep.subr.mxu0 0.0
  %1732 = vmatpush2.msra.mxu0 0.0
  %1733 = vmatprep.subr.mxu0 0.0
  %1734 = vmatpush2.msra.mxu0 0.0
  %1735 = vmatprep.subr.mxu0 0.0
  %1736 = vmatpush2.msra.mxu0 0.0
  %1737 = vmatprep.subr.mxu0 0.0
  %1738 = vmatpush2.msra.mxu0 0.0
  %1739 = vmatprep.subr.mxu0 0.0
  %1740 = vmatpush2.msra.mxu0 0.0
  %1741 = vmatprep.mubr.f32.mxu0 0.0
  %1742 = vmatmul.mubr.f32.gmra.mxu0 %v1508
  %v1743 = vpop.f32.mrf.mxu0
  %v1744 = vadd.f32 0.0, %v1743
  %v1745 = vpop.f32.mrf.mxu0
  %v1746 = vadd.f32 0.0, %v1745
  %1747 = vdwg.mxu0
  %1748 = vmatprep.subr.mxu0 %v712
  %1749 = vmatpush1.msra.mxu0 %v711
  %1750 = vmatprep.subr.mxu0 %v708
  %1751 = vmatpush1.msra.mxu0 %v707
  %1752 = vmatprep.subr.mxu0 %v704
  %1753 = vmatpush1.msra.mxu0 %v703
  %1754 = vmatprep.subr.mxu0 %v700
  %1755 = vmatpush1.msra.mxu0 %v699
  %1756 = vmatprep.subr.mxu0 %v696
  %1757 = vmatpush1.msra.mxu0 %v695
  %1758 = vmatprep.subr.mxu0 %v692
  %1759 = vmatpush1.msra.mxu0 %v691
  %1760 = vmatprep.subr.mxu0 %v688
  %1761 = vmatpush1.msra.mxu0 %v687
  %1762 = vmatprep.subr.mxu0 %v684
  %1763 = vmatpush1.msra.mxu0 %v683
  %1764 = vmatprep.subr.mxu0 %v680
  %1765 = vmatpush1.msra.mxu0 %v679
  %1766 = vmatprep.subr.mxu0 %v676
  %1767 = vmatpush1.msra.mxu0 %v675
  %1768 = vmatprep.subr.mxu0 %v672
  %1769 = vmatpush1.msra.mxu0 %v671
  %1770 = vmatprep.subr.mxu0 %v668
  %1771 = vmatpush1.msra.mxu0 %v667
  %1772 = vmatprep.subr.mxu0 %v664
  %1773 = vmatpush1.msra.mxu0 %v663
  %1774 = vmatprep.subr.mxu0 %v660
  %1775 = vmatpush1.msra.mxu0 %v659
  %1776 = vmatprep.subr.mxu0 %v656
  %1777 = vmatpush1.msra.mxu0 %v655
  %1778 = vmatprep.subr.mxu0 %v652
  %1779 = vmatpush1.msra.mxu0 %v651
  %1780 = vmatprep.subr.mxu0 0.0
  %1781 = vmatpush2.msra.mxu0 0.0
  %1782 = vmatprep.subr.mxu0 0.0
  %1783 = vmatpush2.msra.mxu0 0.0
  %1784 = vmatprep.subr.mxu0 0.0
  %1785 = vmatpush2.msra.mxu0 0.0
  %1786 = vmatprep.subr.mxu0 0.0
  %1787 = vmatpush2.msra.mxu0 0.0
  %1788 = vmatprep.subr.mxu0 0.0
  %1789 = vmatpush2.msra.mxu0 0.0
  %1790 = vmatprep.subr.mxu0 0.0
  %1791 = vmatpush2.msra.mxu0 0.0
  %1792 = vmatprep.subr.mxu0 0.0
  %1793 = vmatpush2.msra.mxu0 0.0
  %1794 = vmatprep.subr.mxu0 0.0
  %1795 = vmatpush2.msra.mxu0 0.0
  %1796 = vmatprep.subr.mxu0 0.0
  %1797 = vmatpush2.msra.mxu0 0.0
  %1798 = vmatprep.subr.mxu0 0.0
  %1799 = vmatpush2.msra.mxu0 0.0
  %1800 = vmatprep.subr.mxu0 0.0
  %1801 = vmatpush2.msra.mxu0 0.0
  %1802 = vmatprep.subr.mxu0 0.0
  %1803 = vmatpush2.msra.mxu0 0.0
  %1804 = vmatprep.subr.mxu0 0.0
  %1805 = vmatpush2.msra.mxu0 0.0
  %1806 = vmatprep.subr.mxu0 0.0
  %1807 = vmatpush2.msra.mxu0 0.0
  %1808 = vmatprep.subr.mxu0 0.0
  %1809 = vmatpush2.msra.mxu0 0.0
  %1810 = vmatprep.subr.mxu0 0.0
  %1811 = vmatpush2.msra.mxu0 0.0
  %1812 = vmatprep.mubr.f32.mxu0 0.0
  %1813 = vmatmul.mubr.f32.gmra.mxu0 %v1508
  %v1814 = vpop.f32.mrf.mxu0
  %v1815 = vadd.f32 0.0, %v1814
  %v1816 = vpop.f32.mrf.mxu0
  %v1817 = vadd.f32 0.0, %v1816
  %1818 = vdwg.mxu0
  %1819 = vmatprep.subr.mxu0 %v646
  %1820 = vmatpush1.msra.mxu0 %v645
  %1821 = vmatprep.subr.mxu0 %v642
  %1822 = vmatpush1.msra.mxu0 %v641
  %1823 = vmatprep.subr.mxu0 %v638
  %1824 = vmatpush1.msra.mxu0 %v637
  %1825 = vmatprep.subr.mxu0 %v634
  %1826 = vmatpush1.msra.mxu0 %v633
  %1827 = vmatprep.subr.mxu0 %v630
  %1828 = vmatpush1.msra.mxu0 %v629
  %1829 = vmatprep.subr.mxu0 %v626
  %1830 = vmatpush1.msra.mxu0 %v625
  %1831 = vmatprep.subr.mxu0 %v622
  %1832 = vmatpush1.msra.mxu0 %v621
  %1833 = vmatprep.subr.mxu0 %v618
  %1834 = vmatpush1.msra.mxu0 %v617
  %1835 = vmatprep.subr.mxu0 %v614
  %1836 = vmatpush1.msra.mxu0 %v613
  %1837 = vmatprep.subr.mxu0 %v610
  %1838 = vmatpush1.msra.mxu0 %v609
  %1839 = vmatprep.subr.mxu0 %v606
  %1840 = vmatpush1.msra.mxu0 %v605
  %1841 = vmatprep.subr.mxu0 %v602
  %1842 = vmatpush1.msra.mxu0 %v601
  %1843 = vmatprep.subr.mxu0 %v598
  %1844 = vmatpush1.msra.mxu0 %v597
  %1845 = vmatprep.subr.mxu0 %v594
  %1846 = vmatpush1.msra.mxu0 %v593
  %1847 = vmatprep.subr.mxu0 %v590
  %1848 = vmatpush1.msra.mxu0 %v589
  %1849 = vmatprep.subr.mxu0 %v586
  %1850 = vmatpush1.msra.mxu0 %v585
  %1851 = vmatprep.subr.mxu0 0.0
  %1852 = vmatpush2.msra.mxu0 0.0
  %1853 = vmatprep.subr.mxu0 0.0
  %1854 = vmatpush2.msra.mxu0 0.0
  %1855 = vmatprep.subr.mxu0 0.0
  %1856 = vmatpush2.msra.mxu0 0.0
  %1857 = vmatprep.subr.mxu0 0.0
  %1858 = vmatpush2.msra.mxu0 0.0
  %1859 = vmatprep.subr.mxu0 0.0
  %1860 = vmatpush2.msra.mxu0 0.0
  %1861 = vmatprep.subr.mxu0 0.0
  %1862 = vmatpush2.msra.mxu0 0.0
  %1863 = vmatprep.subr.mxu0 0.0
  %1864 = vmatpush2.msra.mxu0 0.0
  %1865 = vmatprep.subr.mxu0 0.0
  %1866 = vmatpush2.msra.mxu0 0.0
  %1867 = vmatprep.subr.mxu0 0.0
  %1868 = vmatpush2.msra.mxu0 0.0
  %1869 = vmatprep.subr.mxu0 0.0
  %1870 = vmatpush2.msra.mxu0 0.0
  %1871 = vmatprep.subr.mxu0 0.0
  %1872 = vmatpush2.msra.mxu0 0.0
  %1873 = vmatprep.subr.mxu0 0.0
  %1874 = vmatpush2.msra.mxu0 0.0
  %1875 = vmatprep.subr.mxu0 0.0
  %1876 = vmatpush2.msra.mxu0 0.0
  %1877 = vmatprep.subr.mxu0 0.0
  %1878 = vmatpush2.msra.mxu0 0.0
  %1879 = vmatprep.subr.mxu0 0.0
  %1880 = vmatpush2.msra.mxu0 0.0
  %1881 = vmatprep.subr.mxu0 0.0
  %1882 = vmatpush2.msra.mxu0 0.0
  %1883 = vmatprep.mubr.f32.mxu0 0.0
  %1884 = vmatmul.mubr.f32.gmra.mxu0 %v1676
  %v1885 = vpop.f32.mrf.mxu0
  %v1886 = vadd.f32 %v1744, %v1885
  %v1887 = vpop.f32.mrf.mxu0
  %v1888 = vadd.f32 %v1746, %v1887
  %1889 = vdwg.mxu0
  %1890 = vmatprep.subr.mxu0 %v648
  %1891 = vmatpush1.msra.mxu0 %v647
  %1892 = vmatprep.subr.mxu0 %v644
  %1893 = vmatpush1.msra.mxu0 %v643
  %1894 = vmatprep.subr.mxu0 %v640
  %1895 = vmatpush1.msra.mxu0 %v639
  %1896 = vmatprep.subr.mxu0 %v636
  %1897 = vmatpush1.msra.mxu0 %v635
  %1898 = vmatprep.subr.mxu0 %v632
  %1899 = vmatpush1.msra.mxu0 %v631
  %1900 = vmatprep.subr.mxu0 %v628
  %1901 = vmatpush1.msra.mxu0 %v627
  %1902 = vmatprep.subr.mxu0 %v624
  %1903 = vmatpush1.msra.mxu0 %v623
  %1904 = vmatprep.subr.mxu0 %v620
  %1905 = vmatpush1.msra.mxu0 %v619
  %1906 = vmatprep.subr.mxu0 %v616
  %1907 = vmatpush1.msra.mxu0 %v615
  %1908 = vmatprep.subr.mxu0 %v612
  %1909 = vmatpush1.msra.mxu0 %v611
  %1910 = vmatprep.subr.mxu0 %v608
  %1911 = vmatpush1.msra.mxu0 %v607
  %1912 = vmatprep.subr.mxu0 %v604
  %1913 = vmatpush1.msra.mxu0 %v603
  %1914 = vmatprep.subr.mxu0 %v600
  %1915 = vmatpush1.msra.mxu0 %v599
  %1916 = vmatprep.subr.mxu0 %v596
  %1917 = vmatpush1.msra.mxu0 %v595
  %1918 = vmatprep.subr.mxu0 %v592
  %1919 = vmatpush1.msra.mxu0 %v591
  %1920 = vmatprep.subr.mxu0 %v588
  %1921 = vmatpush1.msra.mxu0 %v587
  %1922 = vmatprep.subr.mxu0 0.0
  %1923 = vmatpush2.msra.mxu0 0.0
  %1924 = vmatprep.subr.mxu0 0.0
  %1925 = vmatpush2.msra.mxu0 0.0
  %1926 = vmatprep.subr.mxu0 0.0
  %1927 = vmatpush2.msra.mxu0 0.0
  %1928 = vmatprep.subr.mxu0 0.0
  %1929 = vmatpush2.msra.mxu0 0.0
  %1930 = vmatprep.subr.mxu0 0.0
  %1931 = vmatpush2.msra.mxu0 0.0
  %1932 = vmatprep.subr.mxu0 0.0
  %1933 = vmatpush2.msra.mxu0 0.0
  %1934 = vmatprep.subr.mxu0 0.0
  %1935 = vmatpush2.msra.mxu0 0.0
  %1936 = vmatprep.subr.mxu0 0.0
  %1937 = vmatpush2.msra.mxu0 0.0
  %1938 = vmatprep.subr.mxu0 0.0
  %1939 = vmatpush2.msra.mxu0 0.0
  %1940 = vmatprep.subr.mxu0 0.0
  %1941 = vmatpush2.msra.mxu0 0.0
  %1942 = vmatprep.subr.mxu0 0.0
  %1943 = vmatpush2.msra.mxu0 0.0
  %1944 = vmatprep.subr.mxu0 0.0
  %1945 = vmatpush2.msra.mxu0 0.0
  %1946 = vmatprep.subr.mxu0 0.0
  %1947 = vmatpush2.msra.mxu0 0.0
  %1948 = vmatprep.subr.mxu0 0.0
  %1949 = vmatpush2.msra.mxu0 0.0
  %1950 = vmatprep.subr.mxu0 0.0
  %1951 = vmatpush2.msra.mxu0 0.0
  %1952 = vmatprep.subr.mxu0 0.0
  %1953 = vmatpush2.msra.mxu0 0.0
  %1954 = vmatprep.mubr.f32.mxu0 0.0
  %1955 = vmatmul.mubr.f32.gmra.mxu0 %v1676
  %v1956 = vpop.f32.mrf.mxu0
  %v1957 = vadd.f32 %v1815, %v1956
  %v1958 = vpop.f32.mrf.mxu0
  %v1959 = vadd.f32 %v1817, %v1958
  %1960 = vdwg.mxu0
  %v1961 = vadd.f32 %v1886, %v1002
  %v1962 = vadd.f32 %v1888, %v1006
  %v1963 = vadd.f32 %v1957, %v1010
  %v1964 = vadd.f32 %v1959, %v1014
  %v1965 = vmul.f32 %v1961, 0.5
  %v1966 = vmul.f32 %v1962, 0.5
  %v1967 = vtanh.pop %v1965
  %v1968 = vtanh.pop %v1966
  %v1969 = vmul.f32 %v1967, 0.5
  %v1970 = vmul.f32 %v1968, 0.5
  %v1971 = vadd.f32 %v1969, 0.5
  %v1972 = vadd.f32 %v1970, 0.5
  %v1973 = vmul.f32 %v1971, %v1964
  %v1974 = vadd.f32 %v1963, %v1973
  %v1975 = vtanh.pop %v1974
  %v1976 = vsub.f32 1.0, %v1972
  %v1977 = vmul.f32 %v1976, %v1975
  %v1978 = vmul.f32 %v1972, %v1508
  %v1979 = vadd.f32 %v1977, %v1978
  %v1980 = vmul.f32 %v1512, %v1979
  %v1981 = vadd.f32 %v1510, %v1980
  %s1982 = scalar_lea.vmem %s1, 24
  %v1983 = vld [vmem:[%s1982] sm:$0xff]
  %s1984 = smul.u32 3, 3
  %s1985 = smul.addr %s1984, 8
  %s1986 = scalar_lea.vmem [#allocation2], %s1985
  %v1987 = vld [vmem:[%s1986] sm:$0xff]
  %v1988 = vld [vmem:[%s1986 + $0x8] sm:$0xff]
  %v1989 = vld [vmem:[%s1986 + $0x10] sm:$0xff]
  %1990 = vmatprep.subr.mxu0 %v408
  %1991 = vmatpush1.msra.mxu0 %v407
  %1992 = vmatprep.subr.mxu0 %v405
  %1993 = vmatpush1.msra.mxu0 %v404
  %1994 = vmatprep.subr.mxu0 %v402
  %1995 = vmatpush1.msra.mxu0 %v401
  %1996 = vmatprep.subr.mxu0 %v399
  %1997 = vmatpush1.msra.mxu0 %v398
  %1998 = vmatprep.subr.mxu0 %v396
  %1999 = vmatpush1.msra.mxu0 %v395
  %2000 = vmatprep.subr.mxu0 %v393
  %2001 = vmatpush1.msra.mxu0 %v392
  %2002 = vmatprep.subr.mxu0 %v390
  %2003 = vmatpush1.msra.mxu0 %v389
  %2004 = vmatprep.subr.mxu0 %v387
  %2005 = vmatpush1.msra.mxu0 %v386
  %2006 = vmatprep.subr.mxu0 %v384
  %2007 = vmatpush1.msra.mxu0 %v383
  %2008 = vmatprep.subr.mxu0 %v381
  %2009 = vmatpush1.msra.mxu0 %v380
  %2010 = vmatprep.subr.mxu0 %v378
  %2011 = vmatpush1.msra.mxu0 %v377
  %2012 = vmatprep.subr.mxu0 %v375
  %2013 = vmatpush1.msra.mxu0 %v374
  %2014 = vmatprep.subr.mxu0 %v372
  %2015 = vmatpush1.msra.mxu0 %v371
  %2016 = vmatprep.subr.mxu0 %v369
  %2017 = vmatpush1.msra.mxu0 %v368
  %2018 = vmatprep.subr.mxu0 %v366
  %2019 = vmatpush1.msra.mxu0 %v365
  %2020 = vmatprep.subr.mxu0 %v363
  %2021 = vmatpush1.msra.mxu0 %v362
  %2022 = vmatprep.subr.mxu0 0.0
  %2023 = vmatpush2.msra.mxu0 0.0
  %2024 = vmatprep.subr.mxu0 0.0
  %2025 = vmatpush2.msra.mxu0 0.0
  %2026 = vmatprep.subr.mxu0 0.0
  %2027 = vmatpush2.msra.mxu0 0.0
  %2028 = vmatprep.subr.mxu0 0.0
  %2029 = vmatpush2.msra.mxu0 0.0
  %2030 = vmatprep.subr.mxu0 0.0
  %2031 = vmatpush2.msra.mxu0 0.0
  %2032 = vmatprep.subr.mxu0 0.0
  %2033 = vmatpush2.msra.mxu0 0.0
  %2034 = vmatprep.subr.mxu0 0.0
  %2035 = vmatpush2.msra.mxu0 0.0
  %2036 = vmatprep.subr.mxu0 0.0
  %2037 = vmatpush2.msra.mxu0 0.0
  %2038 = vmatprep.subr.mxu0 0.0
  %2039 = vmatpush2.msra.mxu0 0.0
  %2040 = vmatprep.subr.mxu0 0.0
  %2041 = vmatpush2.msra.mxu0 0.0
  %2042 = vmatprep.subr.mxu0 0.0
  %2043 = vmatpush2.msra.mxu0 0.0
  %2044 = vmatprep.subr.mxu0 0.0
  %2045 = vmatpush2.msra.mxu0 0.0
  %2046 = vmatprep.subr.mxu0 0.0
  %2047 = vmatpush2.msra.mxu0 0.0
  %2048 = vmatprep.subr.mxu0 0.0
  %2049 = vmatpush2.msra.mxu0 0.0
  %2050 = vmatprep.subr.mxu0 0.0
  %2051 = vmatpush2.msra.mxu0 0.0
  %2052 = vmatprep.subr.mxu0 0.0
  %2053 = vmatpush2.msra.mxu0 0.0
  %2054 = vmatprep.mubr.f32.mxu0 0.0
  %2055 = vmatmul.mubr.f32.gmra.mxu0 %v1676
  %v2056 = vpop.f32.mrf.mxu0
  %v2057 = vadd.f32 %v415, %v2056
  %v2058 = vpop.f32.mrf.mxu0
  %v2059 = vadd.f32 %v419, %v2058
  %2060 = vdwg.mxu0
  %2061 = vmatprep.subr.mxu0 0.0
  %2062 = vmatpush1.msra.mxu0 %v409
  %2063 = vmatprep.subr.mxu0 0.0
  %2064 = vmatpush1.msra.mxu0 %v406
  %2065 = vmatprep.subr.mxu0 0.0
  %2066 = vmatpush1.msra.mxu0 %v403
  %2067 = vmatprep.subr.mxu0 0.0
  %2068 = vmatpush1.msra.mxu0 %v400
  %2069 = vmatprep.subr.mxu0 0.0
  %2070 = vmatpush1.msra.mxu0 %v397
  %2071 = vmatprep.subr.mxu0 0.0
  %2072 = vmatpush1.msra.mxu0 %v394
  %2073 = vmatprep.subr.mxu0 0.0
  %2074 = vmatpush1.msra.mxu0 %v391
  %2075 = vmatprep.subr.mxu0 0.0
  %2076 = vmatpush1.msra.mxu0 %v388
  %2077 = vmatprep.subr.mxu0 0.0
  %2078 = vmatpush1.msra.mxu0 %v385
  %2079 = vmatprep.subr.mxu0 0.0
  %2080 = vmatpush1.msra.mxu0 %v382
  %2081 = vmatprep.subr.mxu0 0.0
  %2082 = vmatpush1.msra.mxu0 %v379
  %2083 = vmatprep.subr.mxu0 0.0
  %2084 = vmatpush1.msra.mxu0 %v376
  %2085 = vmatprep.subr.mxu0 0.0
  %2086 = vmatpush1.msra.mxu0 %v373
  %2087 = vmatprep.subr.mxu0 0.0
  %2088 = vmatpush1.msra.mxu0 %v370
  %2089 = vmatprep.subr.mxu0 0.0
  %2090 = vmatpush1.msra.mxu0 %v367
  %2091 = vmatprep.subr.mxu0 0.0
  %2092 = vmatpush1.msra.mxu0 %v364
  %2093 = vmatprep.subr.mxu0 0.0
  %2094 = vmatpush2.msra.mxu0 0.0
  %2095 = vmatprep.subr.mxu0 0.0
  %2096 = vmatpush2.msra.mxu0 0.0
  %2097 = vmatprep.subr.mxu0 0.0
  %2098 = vmatpush2.msra.mxu0 0.0
  %2099 = vmatprep.subr.mxu0 0.0
  %2100 = vmatpush2.msra.mxu0 0.0
  %2101 = vmatprep.subr.mxu0 0.0
  %2102 = vmatpush2.msra.mxu0 0.0
  %2103 = vmatprep.subr.mxu0 0.0
  %2104 = vmatpush2.msra.mxu0 0.0
  %2105 = vmatprep.subr.mxu0 0.0
  %2106 = vmatpush2.msra.mxu0 0.0
  %2107 = vmatprep.subr.mxu0 0.0
  %2108 = vmatpush2.msra.mxu0 0.0
  %2109 = vmatprep.subr.mxu0 0.0
  %2110 = vmatpush2.msra.mxu0 0.0
  %2111 = vmatprep.subr.mxu0 0.0
  %2112 = vmatpush2.msra.mxu0 0.0
  %2113 = vmatprep.subr.mxu0 0.0
  %2114 = vmatpush2.msra.mxu0 0.0
  %2115 = vmatprep.subr.mxu0 0.0
  %2116 = vmatpush2.msra.mxu0 0.0
  %2117 = vmatprep.subr.mxu0 0.0
  %2118 = vmatpush2.msra.mxu0 0.0
  %2119 = vmatprep.subr.mxu0 0.0
  %2120 = vmatpush2.msra.mxu0 0.0
  %2121 = vmatprep.subr.mxu0 0.0
  %2122 = vmatpush2.msra.mxu0 0.0
  %2123 = vmatprep.subr.mxu0 0.0
  %2124 = vmatpush2.msra.mxu0 0.0
  %2125 = vmatprep.mubr.f32.mxu0 0.0
  %2126 = vmatmul.mubr.f32.gmra.mxu0 %v1676
  %v2127 = vpop.f32.mrf.mxu0
  %v2128 = vadd.f32 %v423, %v2127
  %v2129 = vpop.f32.mrf.mxu0
  %2130 = vdwg.mxu0
  %v2131 = vadd.f32 %v1987, %v2057
  %v2132 = vadd.f32 %v1988, %v2059
  %v2133 = vmul.f32 %v2131, 0.5
  %v2134 = vmul.f32 %v2132, 0.5
  %v2135 = vtanh.pop %v2133
  %v2136 = vtanh.pop %v2134
  %v2137 = vmul.f32 %v2135, 0.5
  %v2138 = vmul.f32 %v2136, 0.5
  %v2139 = vadd.f32 %v2137, 0.5
  %v2140 = vadd.f32 %v2138, 0.5
  %v2141 = vmul.f32 %v2139, %v2128
  %v2142 = vadd.f32 %v1989, %v2141
  %v2143 = vtanh.pop %v2142
  %v2144 = vsub.f32 1.0, %v2140
  %v2145 = vmul.f32 %v2144, %v2143
  %v2146 = vmul.f32 %v2140, %v1676
  %v2147 = vadd.f32 %v2145, %v2146
  %2148 = vmatprep.subr.mxu0 %v710
  %2149 = vmatpush1.msra.mxu0 %v709
  %2150 = vmatprep.subr.mxu0 %v706
  %2151 = vmatpush1.msra.mxu0 %v705
  %2152 = vmatprep.subr.mxu0 %v702
  %2153 = vmatpush1.msra.mxu0 %v701
  %2154 = vmatprep.subr.mxu0 %v698
  %2155 = vmatpush1.msra.mxu0 %v697
  %2156 = vmatprep.subr.mxu0 %v694
  %2157 = vmatpush1.msra.mxu0 %v693
  %2158 = vmatprep.subr.mxu0 %v690
  %2159 = vmatpush1.msra.mxu0 %v689
  %2160 = vmatprep.subr.mxu0 %v686
  %2161 = vmatpush1.msra.mxu0 %v685
  %2162 = vmatprep.subr.mxu0 %v682
  %2163 = vmatpush1.msra.mxu0 %v681
  %2164 = vmatprep.subr.mxu0 %v678
  %2165 = vmatpush1.msra.mxu0 %v677
  %2166 = vmatprep.subr.mxu0 %v674
  %2167 = vmatpush1.msra.mxu0 %v673
  %2168 = vmatprep.subr.mxu0 %v670
  %2169 = vmatpush1.msra.mxu0 %v669
  %2170 = vmatprep.subr.mxu0 %v666
  %2171 = vmatpush1.msra.mxu0 %v665
  %2172 = vmatprep.subr.mxu0 %v662
  %2173 = vmatpush1.msra.mxu0 %v661
  %2174 = vmatprep.subr.mxu0 %v658
  %2175 = vmatpush1.msra.mxu0 %v657
  %2176 = vmatprep.subr.mxu0 %v654
  %2177 = vmatpush1.msra.mxu0 %v653
  %2178 = vmatprep.subr.mxu0 %v650
  %2179 = vmatpush1.msra.mxu0 %v649
  %2180 = vmatprep.subr.mxu0 0.0
  %2181 = vmatpush2.msra.mxu0 0.0
  %2182 = vmatprep.subr.mxu0 0.0
  %2183 = vmatpush2.msra.mxu0 0.0
  %2184 = vmatprep.subr.mxu0 0.0
  %2185 = vmatpush2.msra.mxu0 0.0
  %2186 = vmatprep.subr.mxu0 0.0
  %2187 = vmatpush2.msra.mxu0 0.0
  %2188 = vmatprep.subr.mxu0 0.0
  %2189 = vmatpush2.msra.mxu0 0.0
  %2190 = vmatprep.subr.mxu0 0.0
  %2191 = vmatpush2.msra.mxu0 0.0
  %2192 = vmatprep.subr.mxu0 0.0
  %2193 = vmatpush2.msra.mxu0 0.0
  %2194 = vmatprep.subr.mxu0 0.0
  %2195 = vmatpush2.msra.mxu0 0.0
  %2196 = vmatprep.subr.mxu0 0.0
  %2197 = vmatpush2.msra.mxu0 0.0
  %2198 = vmatprep.subr.mxu0 0.0
  %2199 = vmatpush2.msra.mxu0 0.0
  %2200 = vmatprep.subr.mxu0 0.0
  %2201 = vmatpush2.msra.mxu0 0.0
  %2202 = vmatprep.subr.mxu0 0.0
  %2203 = vmatpush2.msra.mxu0 0.0
  %2204 = vmatprep.subr.mxu0 0.0
  %2205 = vmatpush2.msra.mxu0 0.0
  %2206 = vmatprep.subr.mxu0 0.0
  %2207 = vmatpush2.msra.mxu0 0.0
  %2208 = vmatprep.subr.mxu0 0.0
  %2209 = vmatpush2.msra.mxu0 0.0
  %2210 = vmatprep.subr.mxu0 0.0
  %2211 = vmatpush2.msra.mxu0 0.0
  %2212 = vmatprep.mubr.f32.mxu0 0.0
  %2213 = vmatmul.mubr.f32.gmra.mxu0 %v1979
  %v2214 = vpop.f32.mrf.mxu0
  %v2215 = vadd.f32 0.0, %v2214
  %v2216 = vpop.f32.mrf.mxu0
  %v2217 = vadd.f32 0.0, %v2216
  %2218 = vdwg.mxu0
  %2219 = vmatprep.subr.mxu0 %v712
  %2220 = vmatpush1.msra.mxu0 %v711
  %2221 = vmatprep.subr.mxu0 %v708
  %2222 = vmatpush1.msra.mxu0 %v707
  %2223 = vmatprep.subr.mxu0 %v704
  %2224 = vmatpush1.msra.mxu0 %v703
  %2225 = vmatprep.subr.mxu0 %v700
  %2226 = vmatpush1.msra.mxu0 %v699
  %2227 = vmatprep.subr.mxu0 %v696
  %2228 = vmatpush1.msra.mxu0 %v695
  %2229 = vmatprep.subr.mxu0 %v692
  %2230 = vmatpush1.msra.mxu0 %v691
  %2231 = vmatprep.subr.mxu0 %v688
  %2232 = vmatpush1.msra.mxu0 %v687
  %2233 = vmatprep.subr.mxu0 %v684
  %2234 = vmatpush1.msra.mxu0 %v683
  %2235 = vmatprep.subr.mxu0 %v680
  %2236 = vmatpush1.msra.mxu0 %v679
  %2237 = vmatprep.subr.mxu0 %v676
  %2238 = vmatpush1.msra.mxu0 %v675
  %2239 = vmatprep.subr.mxu0 %v672
  %2240 = vmatpush1.msra.mxu0 %v671
  %2241 = vmatprep.subr.mxu0 %v668
  %2242 = vmatpush1.msra.mxu0 %v667
  %2243 = vmatprep.subr.mxu0 %v664
  %2244 = vmatpush1.msra.mxu0 %v663
  %2245 = vmatprep.subr.mxu0 %v660
  %2246 = vmatpush1.msra.mxu0 %v659
  %2247 = vmatprep.subr.mxu0 %v656
  %2248 = vmatpush1.msra.mxu0 %v655
  %2249 = vmatprep.subr.mxu0 %v652
  %2250 = vmatpush1.msra.mxu0 %v651
  %2251 = vmatprep.subr.mxu0 0.0
  %2252 = vmatpush2.msra.mxu0 0.0
  %2253 = vmatprep.subr.mxu0 0.0
  %2254 = vmatpush2.msra.mxu0 0.0
  %2255 = vmatprep.subr.mxu0 0.0
  %2256 = vmatpush2.msra.mxu0 0.0
  %2257 = vmatprep.subr.mxu0 0.0
  %2258 = vmatpush2.msra.mxu0 0.0
  %2259 = vmatprep.subr.mxu0 0.0
  %2260 = vmatpush2.msra.mxu0 0.0
  %2261 = vmatprep.subr.mxu0 0.0
  %2262 = vmatpush2.msra.mxu0 0.0
  %2263 = vmatprep.subr.mxu0 0.0
  %2264 = vmatpush2.msra.mxu0 0.0
  %2265 = vmatprep.subr.mxu0 0.0
  %2266 = vmatpush2.msra.mxu0 0.0
  %2267 = vmatprep.subr.mxu0 0.0
  %2268 = vmatpush2.msra.mxu0 0.0
  %2269 = vmatprep.subr.mxu0 0.0
  %2270 = vmatpush2.msra.mxu0 0.0
  %2271 = vmatprep.subr.mxu0 0.0
  %2272 = vmatpush2.msra.mxu0 0.0
  %2273 = vmatprep.subr.mxu0 0.0
  %2274 = vmatpush2.msra.mxu0 0.0
  %2275 = vmatprep.subr.mxu0 0.0
  %2276 = vmatpush2.msra.mxu0 0.0
  %2277 = vmatprep.subr.mxu0 0.0
  %2278 = vmatpush2.msra.mxu0 0.0
  %2279 = vmatprep.subr.mxu0 0.0
  %2280 = vmatpush2.msra.mxu0 0.0
  %2281 = vmatprep.subr.mxu0 0.0
  %2282 = vmatpush2.msra.mxu0 0.0
  %2283 = vmatprep.mubr.f32.mxu0 0.0
  %2284 = vmatmul.mubr.f32.gmra.mxu0 %v1979
  %v2285 = vpop.f32.mrf.mxu0
  %v2286 = vadd.f32 0.0, %v2285
  %v2287 = vpop.f32.mrf.mxu0
  %v2288 = vadd.f32 0.0, %v2287
  %2289 = vdwg.mxu0
  %2290 = vmatprep.subr.mxu0 %v646
  %2291 = vmatpush1.msra.mxu0 %v645
  %2292 = vmatprep.subr.mxu0 %v642
  %2293 = vmatpush1.msra.mxu0 %v641
  %2294 = vmatprep.subr.mxu0 %v638
  %2295 = vmatpush1.msra.mxu0 %v637
  %2296 = vmatprep.subr.mxu0 %v634
  %2297 = vmatpush1.msra.mxu0 %v633
  %2298 = vmatprep.subr.mxu0 %v630
  %2299 = vmatpush1.msra.mxu0 %v629
  %2300 = vmatprep.subr.mxu0 %v626
  %2301 = vmatpush1.msra.mxu0 %v625
  %2302 = vmatprep.subr.mxu0 %v622
  %2303 = vmatpush1.msra.mxu0 %v621
  %2304 = vmatprep.subr.mxu0 %v618
  %2305 = vmatpush1.msra.mxu0 %v617
  %2306 = vmatprep.subr.mxu0 %v614
  %2307 = vmatpush1.msra.mxu0 %v613
  %2308 = vmatprep.subr.mxu0 %v610
  %2309 = vmatpush1.msra.mxu0 %v609
  %2310 = vmatprep.subr.mxu0 %v606
  %2311 = vmatpush1.msra.mxu0 %v605
  %2312 = vmatprep.subr.mxu0 %v602
  %2313 = vmatpush1.msra.mxu0 %v601
  %2314 = vmatprep.subr.mxu0 %v598
  %2315 = vmatpush1.msra.mxu0 %v597
  %2316 = vmatprep.subr.mxu0 %v594
  %2317 = vmatpush1.msra.mxu0 %v593
  %2318 = vmatprep.subr.mxu0 %v590
  %2319 = vmatpush1.msra.mxu0 %v589
  %2320 = vmatprep.subr.mxu0 %v586
  %2321 = vmatpush1.msra.mxu0 %v585
  %2322 = vmatprep.subr.mxu0 0.0
  %2323 = vmatpush2.msra.mxu0 0.0
  %2324 = vmatprep.subr.mxu0 0.0
  %2325 = vmatpush2.msra.mxu0 0.0
  %2326 = vmatprep.subr.mxu0 0.0
  %2327 = vmatpush2.msra.mxu0 0.0
  %2328 = vmatprep.subr.mxu0 0.0
  %2329 = vmatpush2.msra.mxu0 0.0
  %2330 = vmatprep.subr.mxu0 0.0
  %2331 = vmatpush2.msra.mxu0 0.0
  %2332 = vmatprep.subr.mxu0 0.0
  %2333 = vmatpush2.msra.mxu0 0.0
  %2334 = vmatprep.subr.mxu0 0.0
  %2335 = vmatpush2.msra.mxu0 0.0
  %2336 = vmatprep.subr.mxu0 0.0
  %2337 = vmatpush2.msra.mxu0 0.0
  %2338 = vmatprep.subr.mxu0 0.0
  %2339 = vmatpush2.msra.mxu0 0.0
  %2340 = vmatprep.subr.mxu0 0.0
  %2341 = vmatpush2.msra.mxu0 0.0
  %2342 = vmatprep.subr.mxu0 0.0
  %2343 = vmatpush2.msra.mxu0 0.0
  %2344 = vmatprep.subr.mxu0 0.0
  %2345 = vmatpush2.msra.mxu0 0.0
  %2346 = vmatprep.subr.mxu0 0.0
  %2347 = vmatpush2.msra.mxu0 0.0
  %2348 = vmatprep.subr.mxu0 0.0
  %2349 = vmatpush2.msra.mxu0 0.0
  %2350 = vmatprep.subr.mxu0 0.0
  %2351 = vmatpush2.msra.mxu0 0.0
  %2352 = vmatprep.subr.mxu0 0.0
  %2353 = vmatpush2.msra.mxu0 0.0
  %2354 = vmatprep.mubr.f32.mxu0 0.0
  %2355 = vmatmul.mubr.f32.gmra.mxu0 %v2147
  %v2356 = vpop.f32.mrf.mxu0
  %v2357 = vadd.f32 %v2215, %v2356
  %v2358 = vpop.f32.mrf.mxu0
  %v2359 = vadd.f32 %v2217, %v2358
  %2360 = vdwg.mxu0
  %2361 = vmatprep.subr.mxu0 %v648
  %2362 = vmatpush1.msra.mxu0 %v647
  %2363 = vmatprep.subr.mxu0 %v644
  %2364 = vmatpush1.msra.mxu0 %v643
  %2365 = vmatprep.subr.mxu0 %v640
  %2366 = vmatpush1.msra.mxu0 %v639
  %2367 = vmatprep.subr.mxu0 %v636
  %2368 = vmatpush1.msra.mxu0 %v635
  %2369 = vmatprep.subr.mxu0 %v632
  %2370 = vmatpush1.msra.mxu0 %v631
  %2371 = vmatprep.subr.mxu0 %v628
  %2372 = vmatpush1.msra.mxu0 %v627
  %2373 = vmatprep.subr.mxu0 %v624
  %2374 = vmatpush1.msra.mxu0 %v623
  %2375 = vmatprep.subr.mxu0 %v620
  %2376 = vmatpush1.msra.mxu0 %v619
  %2377 = vmatprep.subr.mxu0 %v616
  %2378 = vmatpush1.msra.mxu0 %v615
  %2379 = vmatprep.subr.mxu0 %v612
  %2380 = vmatpush1.msra.mxu0 %v611
  %2381 = vmatprep.subr.mxu0 %v608
  %2382 = vmatpush1.msra.mxu0 %v607
  %2383 = vmatprep.subr.mxu0 %v604
  %2384 = vmatpush1.msra.mxu0 %v603
  %2385 = vmatprep.subr.mxu0 %v600
  %2386 = vmatpush1.msra.mxu0 %v599
  %2387 = vmatprep.subr.mxu0 %v596
  %2388 = vmatpush1.msra.mxu0 %v595
  %2389 = vmatprep.subr.mxu0 %v592
  %2390 = vmatpush1.msra.mxu0 %v591
  %2391 = vmatprep.subr.mxu0 %v588
  %2392 = vmatpush1.msra.mxu0 %v587
  %2393 = vmatprep.subr.mxu0 0.0
  %2394 = vmatpush2.msra.mxu0 0.0
  %2395 = vmatprep.subr.mxu0 0.0
  %2396 = vmatpush2.msra.mxu0 0.0
  %2397 = vmatprep.subr.mxu0 0.0
  %2398 = vmatpush2.msra.mxu0 0.0
  %2399 = vmatprep.subr.mxu0 0.0
  %2400 = vmatpush2.msra.mxu0 0.0
  %2401 = vmatprep.subr.mxu0 0.0
  %2402 = vmatpush2.msra.mxu0 0.0
  %2403 = vmatprep.subr.mxu0 0.0
  %2404 = vmatpush2.msra.mxu0 0.0
  %2405 = vmatprep.subr.mxu0 0.0
  %2406 = vmatpush2.msra.mxu0 0.0
  %2407 = vmatprep.subr.mxu0 0.0
  %2408 = vmatpush2.msra.mxu0 0.0
  %2409 = vmatprep.subr.mxu0 0.0
  %2410 = vmatpush2.msra.mxu0 0.0
  %2411 = vmatprep.subr.mxu0 0.0
  %2412 = vmatpush2.msra.mxu0 0.0
  %2413 = vmatprep.subr.mxu0 0.0
  %2414 = vmatpush2.msra.mxu0 0.0
  %2415 = vmatprep.subr.mxu0 0.0
  %2416 = vmatpush2.msra.mxu0 0.0
  %2417 = vmatprep.subr.mxu0 0.0
  %2418 = vmatpush2.msra.mxu0 0.0
  %2419 = vmatprep.subr.mxu0 0.0
  %2420 = vmatpush2.msra.mxu0 0.0
  %2421 = vmatprep.subr.mxu0 0.0
  %2422 = vmatpush2.msra.mxu0 0.0
  %2423 = vmatprep.subr.mxu0 0.0
  %2424 = vmatpush2.msra.mxu0 0.0
  %2425 = vmatprep.mubr.f32.mxu0 0.0
  %2426 = vmatmul.mubr.f32.gmra.mxu0 %v2147
  %v2427 = vpop.f32.mrf.mxu0
  %v2428 = vadd.f32 %v2286, %v2427
  %v2429 = vpop.f32.mrf.mxu0
  %v2430 = vadd.f32 %v2288, %v2429
  %2431 = vdwg.mxu0
  %v2432 = vadd.f32 %v2357, %v1002
  %v2433 = vadd.f32 %v2359, %v1006
  %v2434 = vadd.f32 %v2428, %v1010
  %v2435 = vadd.f32 %v2430, %v1014
  %v2436 = vmul.f32 %v2432, 0.5
  %v2437 = vmul.f32 %v2433, 0.5
  %v2438 = vtanh.pop %v2436
  %v2439 = vtanh.pop %v2437
  %v2440 = vmul.f32 %v2438, 0.5
  %v2441 = vmul.f32 %v2439, 0.5
  %v2442 = vadd.f32 %v2440, 0.5
  %v2443 = vadd.f32 %v2441, 0.5
  %v2444 = vmul.f32 %v2442, %v2435
  %v2445 = vadd.f32 %v2434, %v2444
  %v2446 = vtanh.pop %v2445
  %v2447 = vsub.f32 1.0, %v2443
  %v2448 = vmul.f32 %v2447, %v2446
  %v2449 = vmul.f32 %v2443, %v1979
  %v2450 = vadd.f32 %v2448, %v2449
  %v2451 = vmul.f32 %v1983, %v2450
  %v2452 = vadd.f32 %v1981, %v2451
  %s2453 = scalar_lea.vmem %s1, 32
  %v2454 = vld [vmem:[%s2453] sm:$0xff]
  %s2455 = smul.u32 4, 3
  %s2456 = smul.addr %s2455, 8
  %s2457 = scalar_lea.vmem [#allocation2], %s2456
  %v2458 = vld [vmem:[%s2457] sm:$0xff]
  %v2459 = vld [vmem:[%s2457 + $0x8] sm:$0xff]
  %v2460 = vld [vmem:[%s2457 + $0x10] sm:$0xff]
  %2461 = vmatprep.subr.mxu0 %v408
  %2462 = vmatpush1.msra.mxu0 %v407
  %2463 = vmatprep.subr.mxu0 %v405
  %2464 = vmatpush1.msra.mxu0 %v404
  %2465 = vmatprep.subr.mxu0 %v402
  %2466 = vmatpush1.msra.mxu0 %v401
  %2467 = vmatprep.subr.mxu0 %v399
  %2468 = vmatpush1.msra.mxu0 %v398
  %2469 = vmatprep.subr.mxu0 %v396
  %2470 = vmatpush1.msra.mxu0 %v395
  %2471 = vmatprep.subr.mxu0 %v393
  %2472 = vmatpush1.msra.mxu0 %v392
  %2473 = vmatprep.subr.mxu0 %v390
  %2474 = vmatpush1.msra.mxu0 %v389
  %2475 = vmatprep.subr.mxu0 %v387
  %2476 = vmatpush1.msra.mxu0 %v386
  %2477 = vmatprep.subr.mxu0 %v384
  %2478 = vmatpush1.msra.mxu0 %v383
  %2479 = vmatprep.subr.mxu0 %v381
  %2480 = vmatpush1.msra.mxu0 %v380
  %2481 = vmatprep.subr.mxu0 %v378
  %2482 = vmatpush1.msra.mxu0 %v377
  %2483 = vmatprep.subr.mxu0 %v375
  %2484 = vmatpush1.msra.mxu0 %v374
  %2485 = vmatprep.subr.mxu0 %v372
  %2486 = vmatpush1.msra.mxu0 %v371
  %2487 = vmatprep.subr.mxu0 %v369
  %2488 = vmatpush1.msra.mxu0 %v368
  %2489 = vmatprep.subr.mxu0 %v366
  %2490 = vmatpush1.msra.mxu0 %v365
  %2491 = vmatprep.subr.mxu0 %v363
  %2492 = vmatpush1.msra.mxu0 %v362
  %2493 = vmatprep.subr.mxu0 0.0
  %2494 = vmatpush2.msra.mxu0 0.0
  %2495 = vmatprep.subr.mxu0 0.0
  %2496 = vmatpush2.msra.mxu0 0.0
  %2497 = vmatprep.subr.mxu0 0.0
  %2498 = vmatpush2.msra.mxu0 0.0
  %2499 = vmatprep.subr.mxu0 0.0
  %2500 = vmatpush2.msra.mxu0 0.0
  %2501 = vmatprep.subr.mxu0 0.0
  %2502 = vmatpush2.msra.mxu0 0.0
  %2503 = vmatprep.subr.mxu0 0.0
  %2504 = vmatpush2.msra.mxu0 0.0
  %2505 = vmatprep.subr.mxu0 0.0
  %2506 = vmatpush2.msra.mxu0 0.0
  %2507 = vmatprep.subr.mxu0 0.0
  %2508 = vmatpush2.msra.mxu0 0.0
  %2509 = vmatprep.subr.mxu0 0.0
  %2510 = vmatpush2.msra.mxu0 0.0
  %2511 = vmatprep.subr.mxu0 0.0
  %2512 = vmatpush2.msra.mxu0 0.0
  %2513 = vmatprep.subr.mxu0 0.0
  %2514 = vmatpush2.msra.mxu0 0.0
  %2515 = vmatprep.subr.mxu0 0.0
  %2516 = vmatpush2.msra.mxu0 0.0
  %2517 = vmatprep.subr.mxu0 0.0
  %2518 = vmatpush2.msra.mxu0 0.0
  %2519 = vmatprep.subr.mxu0 0.0
  %2520 = vmatpush2.msra.mxu0 0.0
  %2521 = vmatprep.subr.mxu0 0.0
  %2522 = vmatpush2.msra.mxu0 0.0
  %2523 = vmatprep.subr.mxu0 0.0
  %2524 = vmatpush2.msra.mxu0 0.0
  %2525 = vmatprep.mubr.f32.mxu0 0.0
  %2526 = vmatmul.mubr.f32.gmra.mxu0 %v2147
  %v2527 = vpop.f32.mrf.mxu0
  %v2528 = vadd.f32 %v415, %v2527
  %v2529 = vpop.f32.mrf.mxu0
  %v2530 = vadd.f32 %v419, %v2529
  %2531 = vdwg.mxu0
  %2532 = vmatprep.subr.mxu0 0.0
  %2533 = vmatpush1.msra.mxu0 %v409
  %2534 = vmatprep.subr.mxu0 0.0
  %2535 = vmatpush1.msra.mxu0 %v406
  %2536 = vmatprep.subr.mxu0 0.0
  %2537 = vmatpush1.msra.mxu0 %v403
  %2538 = vmatprep.subr.mxu0 0.0
  %2539 = vmatpush1.msra.mxu0 %v400
  %2540 = vmatprep.subr.mxu0 0.0
  %2541 = vmatpush1.msra.mxu0 %v397
  %2542 = vmatprep.subr.mxu0 0.0
  %2543 = vmatpush1.msra.mxu0 %v394
  %2544 = vmatprep.subr.mxu0 0.0
  %2545 = vmatpush1.msra.mxu0 %v391
  %2546 = vmatprep.subr.mxu0 0.0
  %2547 = vmatpush1.msra.mxu0 %v388
  %2548 = vmatprep.subr.mxu0 0.0
  %2549 = vmatpush1.msra.mxu0 %v385
  %2550 = vmatprep.subr.mxu0 0.0
  %2551 = vmatpush1.msra.mxu0 %v382
  %2552 = vmatprep.subr.mxu0 0.0
  %2553 = vmatpush1.msra.mxu0 %v379
  %2554 = vmatprep.subr.mxu0 0.0
  %2555 = vmatpush1.msra.mxu0 %v376
  %2556 = vmatprep.subr.mxu0 0.0
  %2557 = vmatpush1.msra.mxu0 %v373
  %2558 = vmatprep.subr.mxu0 0.0
  %2559 = vmatpush1.msra.mxu0 %v370
  %2560 = vmatprep.subr.mxu0 0.0
  %2561 = vmatpush1.msra.mxu0 %v367
  %2562 = vmatprep.subr.mxu0 0.0
  %2563 = vmatpush1.msra.mxu0 %v364
  %2564 = vmatprep.subr.mxu0 0.0
  %2565 = vmatpush2.msra.mxu0 0.0
  %2566 = vmatprep.subr.mxu0 0.0
  %2567 = vmatpush2.msra.mxu0 0.0
  %2568 = vmatprep.subr.mxu0 0.0
  %2569 = vmatpush2.msra.mxu0 0.0
  %2570 = vmatprep.subr.mxu0 0.0
  %2571 = vmatpush2.msra.mxu0 0.0
  %2572 = vmatprep.subr.mxu0 0.0
  %2573 = vmatpush2.msra.mxu0 0.0
  %2574 = vmatprep.subr.mxu0 0.0
  %2575 = vmatpush2.msra.mxu0 0.0
  %2576 = vmatprep.subr.mxu0 0.0
  %2577 = vmatpush2.msra.mxu0 0.0
  %2578 = vmatprep.subr.mxu0 0.0
  %2579 = vmatpush2.msra.mxu0 0.0
  %2580 = vmatprep.subr.mxu0 0.0
  %2581 = vmatpush2.msra.mxu0 0.0
  %2582 = vmatprep.subr.mxu0 0.0
  %2583 = vmatpush2.msra.mxu0 0.0
  %2584 = vmatprep.subr.mxu0 0.0
  %2585 = vmatpush2.msra.mxu0 0.0
  %2586 = vmatprep.subr.mxu0 0.0
  %2587 = vmatpush2.msra.mxu0 0.0
  %2588 = vmatprep.subr.mxu0 0.0
  %2589 = vmatpush2.msra.mxu0 0.0
  %2590 = vmatprep.subr.mxu0 0.0
  %2591 = vmatpush2.msra.mxu0 0.0
  %2592 = vmatprep.subr.mxu0 0.0
  %2593 = vmatpush2.msra.mxu0 0.0
  %2594 = vmatprep.subr.mxu0 0.0
  %2595 = vmatpush2.msra.mxu0 0.0
  %2596 = vmatprep.mubr.f32.mxu0 0.0
  %2597 = vmatmul.mubr.f32.gmra.mxu0 %v2147
  %v2598 = vpop.f32.mrf.mxu0
  %v2599 = vadd.f32 %v423, %v2598
  %v2600 = vpop.f32.mrf.mxu0
  %2601 = vdwg.mxu0
  %v2602 = vadd.f32 %v2458, %v2528
  %v2603 = vadd.f32 %v2459, %v2530
  %v2604 = vmul.f32 %v2602, 0.5
  %v2605 = vmul.f32 %v2603, 0.5
  %v2606 = vtanh.pop %v2604
  %v2607 = vtanh.pop %v2605
  %v2608 = vmul.f32 %v2606, 0.5
  %v2609 = vmul.f32 %v2607, 0.5
  %v2610 = vadd.f32 %v2608, 0.5
  %v2611 = vadd.f32 %v2609, 0.5
  %v2612 = vmul.f32 %v2610, %v2599
  %v2613 = vadd.f32 %v2460, %v2612
  %v2614 = vtanh.pop %v2613
  %v2615 = vsub.f32 1.0, %v2611
  %v2616 = vmul.f32 %v2615, %v2614
  %v2617 = vmul.f32 %v2611, %v2147
  %v2618 = vadd.f32 %v2616, %v2617
  %2619 = vmatprep.subr.mxu0 %v710
  %2620 = vmatpush1.msra.mxu0 %v709
  %2621 = vmatprep.subr.mxu0 %v706
  %2622 = vmatpush1.msra.mxu0 %v705
  %2623 = vmatprep.subr.mxu0 %v702
  %2624 = vmatpush1.msra.mxu0 %v701
  %2625 = vmatprep.subr.mxu0 %v698
  %2626 = vmatpush1.msra.mxu0 %v697
  %2627 = vmatprep.subr.mxu0 %v694
  %2628 = vmatpush1.msra.mxu0 %v693
  %2629 = vmatprep.subr.mxu0 %v690
  %2630 = vmatpush1.msra.mxu0 %v689
  %2631 = vmatprep.subr.mxu0 %v686
  %2632 = vmatpush1.msra.mxu0 %v685
  %2633 = vmatprep.subr.mxu0 %v682
  %2634 = vmatpush1.msra.mxu0 %v681
  %2635 = vmatprep.subr.mxu0 %v678
  %2636 = vmatpush1.msra.mxu0 %v677
  %2637 = vmatprep.subr.mxu0 %v674
  %2638 = vmatpush1.msra.mxu0 %v673
  %2639 = vmatprep.subr.mxu0 %v670
  %2640 = vmatpush1.msra.mxu0 %v669
  %2641 = vmatprep.subr.mxu0 %v666
  %2642 = vmatpush1.msra.mxu0 %v665
  %2643 = vmatprep.subr.mxu0 %v662
  %2644 = vmatpush1.msra.mxu0 %v661
  %2645 = vmatprep.subr.mxu0 %v658
  %2646 = vmatpush1.msra.mxu0 %v657
  %2647 = vmatprep.subr.mxu0 %v654
  %2648 = vmatpush1.msra.mxu0 %v653
  %2649 = vmatprep.subr.mxu0 %v650
  %2650 = vmatpush1.msra.mxu0 %v649
  %2651 = vmatprep.subr.mxu0 0.0
  %2652 = vmatpush2.msra.mxu0 0.0
  %2653 = vmatprep.subr.mxu0 0.0
  %2654 = vmatpush2.msra.mxu0 0.0
  %2655 = vmatprep.subr.mxu0 0.0
  %2656 = vmatpush2.msra.mxu0 0.0
  %2657 = vmatprep.subr.mxu0 0.0
  %2658 = vmatpush2.msra.mxu0 0.0
  %2659 = vmatprep.subr.mxu0 0.0
  %2660 = vmatpush2.msra.mxu0 0.0
  %2661 = vmatprep.subr.mxu0 0.0
  %2662 = vmatpush2.msra.mxu0 0.0
  %2663 = vmatprep.subr.mxu0 0.0
  %2664 = vmatpush2.msra.mxu0 0.0
  %2665 = vmatprep.subr.mxu0 0.0
  %2666 = vmatpush2.msra.mxu0 0.0
  %2667 = vmatprep.subr.mxu0 0.0
  %2668 = vmatpush2.msra.mxu0 0.0
  %2669 = vmatprep.subr.mxu0 0.0
  %2670 = vmatpush2.msra.mxu0 0.0
  %2671 = vmatprep.subr.mxu0 0.0
  %2672 = vmatpush2.msra.mxu0 0.0
  %2673 = vmatprep.subr.mxu0 0.0
  %2674 = vmatpush2.msra.mxu0 0.0
  %2675 = vmatprep.subr.mxu0 0.0
  %2676 = vmatpush2.msra.mxu0 0.0
  %2677 = vmatprep.subr.mxu0 0.0
  %2678 = vmatpush2.msra.mxu0 0.0
  %2679 = vmatprep.subr.mxu0 0.0
  %2680 = vmatpush2.msra.mxu0 0.0
  %2681 = vmatprep.subr.mxu0 0.0
  %2682 = vmatpush2.msra.mxu0 0.0
  %2683 = vmatprep.mubr.f32.mxu0 0.0
  %2684 = vmatmul.mubr.f32.gmra.mxu0 %v2450
  %v2685 = vpop.f32.mrf.mxu0
  %v2686 = vadd.f32 0.0, %v2685
  %v2687 = vpop.f32.mrf.mxu0
  %v2688 = vadd.f32 0.0, %v2687
  %2689 = vdwg.mxu0
  %2690 = vmatprep.subr.mxu0 %v712
  %2691 = vmatpush1.msra.mxu0 %v711
  %2692 = vmatprep.subr.mxu0 %v708
  %2693 = vmatpush1.msra.mxu0 %v707
  %2694 = vmatprep.subr.mxu0 %v704
  %2695 = vmatpush1.msra.mxu0 %v703
  %2696 = vmatprep.subr.mxu0 %v700
  %2697 = vmatpush1.msra.mxu0 %v699
  %2698 = vmatprep.subr.mxu0 %v696
  %2699 = vmatpush1.msra.mxu0 %v695
  %2700 = vmatprep.subr.mxu0 %v692
  %2701 = vmatpush1.msra.mxu0 %v691
  %2702 = vmatprep.subr.mxu0 %v688
  %2703 = vmatpush1.msra.mxu0 %v687
  %2704 = vmatprep.subr.mxu0 %v684
  %2705 = vmatpush1.msra.mxu0 %v683
  %2706 = vmatprep.subr.mxu0 %v680
  %2707 = vmatpush1.msra.mxu0 %v679
  %2708 = vmatprep.subr.mxu0 %v676
  %2709 = vmatpush1.msra.mxu0 %v675
  %2710 = vmatprep.subr.mxu0 %v672
  %2711 = vmatpush1.msra.mxu0 %v671
  %2712 = vmatprep.subr.mxu0 %v668
  %2713 = vmatpush1.msra.mxu0 %v667
  %2714 = vmatprep.subr.mxu0 %v664
  %2715 = vmatpush1.msra.mxu0 %v663
  %2716 = vmatprep.subr.mxu0 %v660
  %2717 = vmatpush1.msra.mxu0 %v659
  %2718 = vmatprep.subr.mxu0 %v656
  %2719 = vmatpush1.msra.mxu0 %v655
  %2720 = vmatprep.subr.mxu0 %v652
  %2721 = vmatpush1.msra.mxu0 %v651
  %2722 = vmatprep.subr.mxu0 0.0
  %2723 = vmatpush2.msra.mxu0 0.0
  %2724 = vmatprep.subr.mxu0 0.0
  %2725 = vmatpush2.msra.mxu0 0.0
  %2726 = vmatprep.subr.mxu0 0.0
  %2727 = vmatpush2.msra.mxu0 0.0
  %2728 = vmatprep.subr.mxu0 0.0
  %2729 = vmatpush2.msra.mxu0 0.0
  %2730 = vmatprep.subr.mxu0 0.0
  %2731 = vmatpush2.msra.mxu0 0.0
  %2732 = vmatprep.subr.mxu0 0.0
  %2733 = vmatpush2.msra.mxu0 0.0
  %2734 = vmatprep.subr.mxu0 0.0
  %2735 = vmatpush2.msra.mxu0 0.0
  %2736 = vmatprep.subr.mxu0 0.0
  %2737 = vmatpush2.msra.mxu0 0.0
  %2738 = vmatprep.subr.mxu0 0.0
  %2739 = vmatpush2.msra.mxu0 0.0
  %2740 = vmatprep.subr.mxu0 0.0
  %2741 = vmatpush2.msra.mxu0 0.0
  %2742 = vmatprep.subr.mxu0 0.0
  %2743 = vmatpush2.msra.mxu0 0.0
  %2744 = vmatprep.subr.mxu0 0.0
  %2745 = vmatpush2.msra.mxu0 0.0
  %2746 = vmatprep.subr.mxu0 0.0
  %2747 = vmatpush2.msra.mxu0 0.0
  %2748 = vmatprep.subr.mxu0 0.0
  %2749 = vmatpush2.msra.mxu0 0.0
  %2750 = vmatprep.subr.mxu0 0.0
  %2751 = vmatpush2.msra.mxu0 0.0
  %2752 = vmatprep.subr.mxu0 0.0
  %2753 = vmatpush2.msra.mxu0 0.0
  %2754 = vmatprep.mubr.f32.mxu0 0.0
  %2755 = vmatmul.mubr.f32.gmra.mxu0 %v2450
  %v2756 = vpop.f32.mrf.mxu0
  %v2757 = vadd.f32 0.0, %v2756
  %v2758 = vpop.f32.mrf.mxu0
  %v2759 = vadd.f32 0.0, %v2758
  %2760 = vdwg.mxu0
  %2761 = vmatprep.subr.mxu0 %v646
  %2762 = vmatpush1.msra.mxu0 %v645
  %2763 = vmatprep.subr.mxu0 %v642
  %2764 = vmatpush1.msra.mxu0 %v641
  %2765 = vmatprep.subr.mxu0 %v638
  %2766 = vmatpush1.msra.mxu0 %v637
  %2767 = vmatprep.subr.mxu0 %v634
  %2768 = vmatpush1.msra.mxu0 %v633
  %2769 = vmatprep.subr.mxu0 %v630
  %2770 = vmatpush1.msra.mxu0 %v629
  %2771 = vmatprep.subr.mxu0 %v626
  %2772 = vmatpush1.msra.mxu0 %v625
  %2773 = vmatprep.subr.mxu0 %v622
  %2774 = vmatpush1.msra.mxu0 %v621
  %2775 = vmatprep.subr.mxu0 %v618
  %2776 = vmatpush1.msra.mxu0 %v617
  %2777 = vmatprep.subr.mxu0 %v614
  %2778 = vmatpush1.msra.mxu0 %v613
  %2779 = vmatprep.subr.mxu0 %v610
  %2780 = vmatpush1.msra.mxu0 %v609
  %2781 = vmatprep.subr.mxu0 %v606
  %2782 = vmatpush1.msra.mxu0 %v605
  %2783 = vmatprep.subr.mxu0 %v602
  %2784 = vmatpush1.msra.mxu0 %v601
  %2785 = vmatprep.subr.mxu0 %v598
  %2786 = vmatpush1.msra.mxu0 %v597
  %2787 = vmatprep.subr.mxu0 %v594
  %2788 = vmatpush1.msra.mxu0 %v593
  %2789 = vmatprep.subr.mxu0 %v590
  %2790 = vmatpush1.msra.mxu0 %v589
  %2791 = vmatprep.subr.mxu0 %v586
  %2792 = vmatpush1.msra.mxu0 %v585
  %2793 = vmatprep.subr.mxu0 0.0
  %2794 = vmatpush2.msra.mxu0 0.0
  %2795 = vmatprep.subr.mxu0 0.0
  %2796 = vmatpush2.msra.mxu0 0.0
  %2797 = vmatprep.subr.mxu0 0.0
  %2798 = vmatpush2.msra.mxu0 0.0
  %2799 = vmatprep.subr.mxu0 0.0
  %2800 = vmatpush2.msra.mxu0 0.0
  %2801 = vmatprep.subr.mxu0 0.0
  %2802 = vmatpush2.msra.mxu0 0.0
  %2803 = vmatprep.subr.mxu0 0.0
  %2804 = vmatpush2.msra.mxu0 0.0
  %2805 = vmatprep.subr.mxu0 0.0
  %2806 = vmatpush2.msra.mxu0 0.0
  %2807 = vmatprep.subr.mxu0 0.0
  %2808 = vmatpush2.msra.mxu0 0.0
  %2809 = vmatprep.subr.mxu0 0.0
  %2810 = vmatpush2.msra.mxu0 0.0
  %2811 = vmatprep.subr.mxu0 0.0
  %2812 = vmatpush2.msra.mxu0 0.0
  %2813 = vmatprep.subr.mxu0 0.0
  %2814 = vmatpush2.msra.mxu0 0.0
  %2815 = vmatprep.subr.mxu0 0.0
  %2816 = vmatpush2.msra.mxu0 0.0
  %2817 = vmatprep.subr.mxu0 0.0
  %2818 = vmatpush2.msra.mxu0 0.0
  %2819 = vmatprep.subr.mxu0 0.0
  %2820 = vmatpush2.msra.mxu0 0.0
  %2821 = vmatprep.subr.mxu0 0.0
  %2822 = vmatpush2.msra.mxu0 0.0
  %2823 = vmatprep.subr.mxu0 0.0
  %2824 = vmatpush2.msra.mxu0 0.0
  %2825 = vmatprep.mubr.f32.mxu0 0.0
  %2826 = vmatmul.mubr.f32.gmra.mxu0 %v2618
  %v2827 = vpop.f32.mrf.mxu0
  %v2828 = vadd.f32 %v2686, %v2827
  %v2829 = vpop.f32.mrf.mxu0
  %v2830 = vadd.f32 %v2688, %v2829
  %2831 = vdwg.mxu0
  %2832 = vmatprep.subr.mxu0 %v648
  %2833 = vmatpush1.msra.mxu0 %v647
  %2834 = vmatprep.subr.mxu0 %v644
  %2835 = vmatpush1.msra.mxu0 %v643
  %2836 = vmatprep.subr.mxu0 %v640
  %2837 = vmatpush1.msra.mxu0 %v639
  %2838 = vmatprep.subr.mxu0 %v636
  %2839 = vmatpush1.msra.mxu0 %v635
  %2840 = vmatprep.subr.mxu0 %v632
  %2841 = vmatpush1.msra.mxu0 %v631
  %2842 = vmatprep.subr.mxu0 %v628
  %2843 = vmatpush1.msra.mxu0 %v627
  %2844 = vmatprep.subr.mxu0 %v624
  %2845 = vmatpush1.msra.mxu0 %v623
  %2846 = vmatprep.subr.mxu0 %v620
  %2847 = vmatpush1.msra.mxu0 %v619
  %2848 = vmatprep.subr.mxu0 %v616
  %2849 = vmatpush1.msra.mxu0 %v615
  %2850 = vmatprep.subr.mxu0 %v612
  %2851 = vmatpush1.msra.mxu0 %v611
  %2852 = vmatprep.subr.mxu0 %v608
  %2853 = vmatpush1.msra.mxu0 %v607
  %2854 = vmatprep.subr.mxu0 %v604
  %2855 = vmatpush1.msra.mxu0 %v603
  %2856 = vmatprep.subr.mxu0 %v600
  %2857 = vmatpush1.msra.mxu0 %v599
  %2858 = vmatprep.subr.mxu0 %v596
  %2859 = vmatpush1.msra.mxu0 %v595
  %2860 = vmatprep.subr.mxu0 %v592
  %2861 = vmatpush1.msra.mxu0 %v591
  %2862 = vmatprep.subr.mxu0 %v588
  %2863 = vmatpush1.msra.mxu0 %v587
  %2864 = vmatprep.subr.mxu0 0.0
  %2865 = vmatpush2.msra.mxu0 0.0
  %2866 = vmatprep.subr.mxu0 0.0
  %2867 = vmatpush2.msra.mxu0 0.0
  %2868 = vmatprep.subr.mxu0 0.0
  %2869 = vmatpush2.msra.mxu0 0.0
  %2870 = vmatprep.subr.mxu0 0.0
  %2871 = vmatpush2.msra.mxu0 0.0
  %2872 = vmatprep.subr.mxu0 0.0
  %2873 = vmatpush2.msra.mxu0 0.0
  %2874 = vmatprep.subr.mxu0 0.0
  %2875 = vmatpush2.msra.mxu0 0.0
  %2876 = vmatprep.subr.mxu0 0.0
  %2877 = vmatpush2.msra.mxu0 0.0
  %2878 = vmatprep.subr.mxu0 0.0
  %2879 = vmatpush2.msra.mxu0 0.0
  %2880 = vmatprep.subr.mxu0 0.0
  %2881 = vmatpush2.msra.mxu0 0.0
  %2882 = vmatprep.subr.mxu0 0.0
  %2883 = vmatpush2.msra.mxu0 0.0
  %2884 = vmatprep.subr.mxu0 0.0
  %2885 = vmatpush2.msra.mxu0 0.0
  %2886 = vmatprep.subr.mxu0 0.0
  %2887 = vmatpush2.msra.mxu0 0.0
  %2888 = vmatprep.subr.mxu0 0.0
  %2889 = vmatpush2.msra.mxu0 0.0
  %2890 = vmatprep.subr.mxu0 0.0
  %2891 = vmatpush2.msra.mxu0 0.0
  %2892 = vmatprep.subr.mxu0 0.0
  %2893 = vmatpush2.msra.mxu0 0.0
  %2894 = vmatprep.subr.mxu0 0.0
  %2895 = vmatpush2.msra.mxu0 0.0
  %2896 = vmatprep.mubr.f32.mxu0 0.0
  %2897 = vmatmul.mubr.f32.gmra.mxu0 %v2618
  %v2898 = vpop.f32.mrf.mxu0
  %v2899 = vadd.f32 %v2757, %v2898
  %v2900 = vpop.f32.mrf.mxu0
  %v2901 = vadd.f32 %v2759, %v2900
  %2902 = vdwg.mxu0
  %v2903 = vadd.f32 %v2828, %v1002
  %v2904 = vadd.f32 %v2830, %v1006
  %v2905 = vadd.f32 %v2899, %v1010
  %v2906 = vadd.f32 %v2901, %v1014
  %v2907 = vmul.f32 %v2903, 0.5
  %v2908 = vmul.f32 %v2904, 0.5
  %v2909 = vtanh.pop %v2907
  %v2910 = vtanh.pop %v2908
  %v2911 = vmul.f32 %v2909, 0.5
  %v2912 = vmul.f32 %v2910, 0.5
  %v2913 = vadd.f32 %v2911, 0.5
  %v2914 = vadd.f32 %v2912, 0.5
  %v2915 = vmul.f32 %v2913, %v2906
  %v2916 = vadd.f32 %v2905, %v2915
  %v2917 = vtanh.pop %v2916
  %v2918 = vsub.f32 1.0, %v2914
  %v2919 = vmul.f32 %v2918, %v2917
  %v2920 = vmul.f32 %v2914, %v2450
  %v2921 = vadd.f32 %v2919, %v2920
  %v2922 = vmul.f32 %v2454, %v2921
  %v2923 = vadd.f32 %v2452, %v2922
  %s2924 = scalar_lea.vmem %s1, 40
  %v2925 = vld [vmem:[%s2924] sm:$0xff]
  %s2926 = smul.u32 5, 3
  %s2927 = smul.addr %s2926, 8
  %s2928 = scalar_lea.vmem [#allocation2], %s2927
  %v2929 = vld [vmem:[%s2928] sm:$0xff]
  %v2930 = vld [vmem:[%s2928 + $0x8] sm:$0xff]
  %v2931 = vld [vmem:[%s2928 + $0x10] sm:$0xff]
  %2932 = vmatprep.subr.mxu0 %v408
  %2933 = vmatpush1.msra.mxu0 %v407
  %2934 = vmatprep.subr.mxu0 %v405
  %2935 = vmatpush1.msra.mxu0 %v404
  %2936 = vmatprep.subr.mxu0 %v402
  %2937 = vmatpush1.msra.mxu0 %v401
  %2938 = vmatprep.subr.mxu0 %v399
  %2939 = vmatpush1.msra.mxu0 %v398
  %2940 = vmatprep.subr.mxu0 %v396
  %2941 = vmatpush1.msra.mxu0 %v395
  %2942 = vmatprep.subr.mxu0 %v393
  %2943 = vmatpush1.msra.mxu0 %v392
  %2944 = vmatprep.subr.mxu0 %v390
  %2945 = vmatpush1.msra.mxu0 %v389
  %2946 = vmatprep.subr.mxu0 %v387
  %2947 = vmatpush1.msra.mxu0 %v386
  %2948 = vmatprep.subr.mxu0 %v384
  %2949 = vmatpush1.msra.mxu0 %v383
  %2950 = vmatprep.subr.mxu0 %v381
  %2951 = vmatpush1.msra.mxu0 %v380
  %2952 = vmatprep.subr.mxu0 %v378
  %2953 = vmatpush1.msra.mxu0 %v377
  %2954 = vmatprep.subr.mxu0 %v375
  %2955 = vmatpush1.msra.mxu0 %v374
  %2956 = vmatprep.subr.mxu0 %v372
  %2957 = vmatpush1.msra.mxu0 %v371
  %2958 = vmatprep.subr.mxu0 %v369
  %2959 = vmatpush1.msra.mxu0 %v368
  %2960 = vmatprep.subr.mxu0 %v366
  %2961 = vmatpush1.msra.mxu0 %v365
  %2962 = vmatprep.subr.mxu0 %v363
  %2963 = vmatpush1.msra.mxu0 %v362
  %2964 = vmatprep.subr.mxu0 0.0
  %2965 = vmatpush2.msra.mxu0 0.0
  %2966 = vmatprep.subr.mxu0 0.0
  %2967 = vmatpush2.msra.mxu0 0.0
  %2968 = vmatprep.subr.mxu0 0.0
  %2969 = vmatpush2.msra.mxu0 0.0
  %2970 = vmatprep.subr.mxu0 0.0
  %2971 = vmatpush2.msra.mxu0 0.0
  %2972 = vmatprep.subr.mxu0 0.0
  %2973 = vmatpush2.msra.mxu0 0.0
  %2974 = vmatprep.subr.mxu0 0.0
  %2975 = vmatpush2.msra.mxu0 0.0
  %2976 = vmatprep.subr.mxu0 0.0
  %2977 = vmatpush2.msra.mxu0 0.0
  %2978 = vmatprep.subr.mxu0 0.0
  %2979 = vmatpush2.msra.mxu0 0.0
  %2980 = vmatprep.subr.mxu0 0.0
  %2981 = vmatpush2.msra.mxu0 0.0
  %2982 = vmatprep.subr.mxu0 0.0
  %2983 = vmatpush2.msra.mxu0 0.0
  %2984 = vmatprep.subr.mxu0 0.0
  %2985 = vmatpush2.msra.mxu0 0.0
  %2986 = vmatprep.subr.mxu0 0.0
  %2987 = vmatpush2.msra.mxu0 0.0
  %2988 = vmatprep.subr.mxu0 0.0
  %2989 = vmatpush2.msra.mxu0 0.0
  %2990 = vmatprep.subr.mxu0 0.0
  %2991 = vmatpush2.msra.mxu0 0.0
  %2992 = vmatprep.subr.mxu0 0.0
  %2993 = vmatpush2.msra.mxu0 0.0
  %2994 = vmatprep.subr.mxu0 0.0
  %2995 = vmatpush2.msra.mxu0 0.0
  %2996 = vmatprep.mubr.f32.mxu0 0.0
  %2997 = vmatmul.mubr.f32.gmra.mxu0 %v2618
  %v2998 = vpop.f32.mrf.mxu0
  %v2999 = vadd.f32 %v415, %v2998
  %v3000 = vpop.f32.mrf.mxu0
  %v3001 = vadd.f32 %v419, %v3000
  %3002 = vdwg.mxu0
  %3003 = vmatprep.subr.mxu0 0.0
  %3004 = vmatpush1.msra.mxu0 %v409
  %3005 = vmatprep.subr.mxu0 0.0
  %3006 = vmatpush1.msra.mxu0 %v406
  %3007 = vmatprep.subr.mxu0 0.0
  %3008 = vmatpush1.msra.mxu0 %v403
  %3009 = vmatprep.subr.mxu0 0.0
  %3010 = vmatpush1.msra.mxu0 %v400
  %3011 = vmatprep.subr.mxu0 0.0
  %3012 = vmatpush1.msra.mxu0 %v397
  %3013 = vmatprep.subr.mxu0 0.0
  %3014 = vmatpush1.msra.mxu0 %v394
  %3015 = vmatprep.subr.mxu0 0.0
  %3016 = vmatpush1.msra.mxu0 %v391
  %3017 = vmatprep.subr.mxu0 0.0
  %3018 = vmatpush1.msra.mxu0 %v388
  %3019 = vmatprep.subr.mxu0 0.0
  %3020 = vmatpush1.msra.mxu0 %v385
  %3021 = vmatprep.subr.mxu0 0.0
  %3022 = vmatpush1.msra.mxu0 %v382
  %3023 = vmatprep.subr.mxu0 0.0
  %3024 = vmatpush1.msra.mxu0 %v379
  %3025 = vmatprep.subr.mxu0 0.0
  %3026 = vmatpush1.msra.mxu0 %v376
  %3027 = vmatprep.subr.mxu0 0.0
  %3028 = vmatpush1.msra.mxu0 %v373
  %3029 = vmatprep.subr.mxu0 0.0
  %3030 = vmatpush1.msra.mxu0 %v370
  %3031 = vmatprep.subr.mxu0 0.0
  %3032 = vmatpush1.msra.mxu0 %v367
  %3033 = vmatprep.subr.mxu0 0.0
  %3034 = vmatpush1.msra.mxu0 %v364
  %3035 = vmatprep.subr.mxu0 0.0
  %3036 = vmatpush2.msra.mxu0 0.0
  %3037 = vmatprep.subr.mxu0 0.0
  %3038 = vmatpush2.msra.mxu0 0.0
  %3039 = vmatprep.subr.mxu0 0.0
  %3040 = vmatpush2.msra.mxu0 0.0
  %3041 = vmatprep.subr.mxu0 0.0
  %3042 = vmatpush2.msra.mxu0 0.0
  %3043 = vmatprep.subr.mxu0 0.0
  %3044 = vmatpush2.msra.mxu0 0.0
  %3045 = vmatprep.subr.mxu0 0.0
  %3046 = vmatpush2.msra.mxu0 0.0
  %3047 = vmatprep.subr.mxu0 0.0
  %3048 = vmatpush2.msra.mxu0 0.0
  %3049 = vmatprep.subr.mxu0 0.0
  %3050 = vmatpush2.msra.mxu0 0.0
  %3051 = vmatprep.subr.mxu0 0.0
  %3052 = vmatpush2.msra.mxu0 0.0
  %3053 = vmatprep.subr.mxu0 0.0
  %3054 = vmatpush2.msra.mxu0 0.0
  %3055 = vmatprep.subr.mxu0 0.0
  %3056 = vmatpush2.msra.mxu0 0.0
  %3057 = vmatprep.subr.mxu0 0.0
  %3058 = vmatpush2.msra.mxu0 0.0
  %3059 = vmatprep.subr.mxu0 0.0
  %3060 = vmatpush2.msra.mxu0 0.0
  %3061 = vmatprep.subr.mxu0 0.0
  %3062 = vmatpush2.msra.mxu0 0.0
  %3063 = vmatprep.subr.mxu0 0.0
  %3064 = vmatpush2.msra.mxu0 0.0
  %3065 = vmatprep.subr.mxu0 0.0
  %3066 = vmatpush2.msra.mxu0 0.0
  %3067 = vmatprep.mubr.f32.mxu0 0.0
  %3068 = vmatmul.mubr.f32.gmra.mxu0 %v2618
  %v3069 = vpop.f32.mrf.mxu0
  %v3070 = vadd.f32 %v423, %v3069
  %v3071 = vpop.f32.mrf.mxu0
  %3072 = vdwg.mxu0
  %v3073 = vadd.f32 %v2929, %v2999
  %v3074 = vadd.f32 %v2930, %v3001
  %v3075 = vmul.f32 %v3073, 0.5
  %v3076 = vmul.f32 %v3074, 0.5
  %v3077 = vtanh.pop %v3075
  %v3078 = vtanh.pop %v3076
  %v3079 = vmul.f32 %v3077, 0.5
  %v3080 = vmul.f32 %v3078, 0.5
  %v3081 = vadd.f32 %v3079, 0.5
  %v3082 = vadd.f32 %v3080, 0.5
  %v3083 = vmul.f32 %v3081, %v3070
  %v3084 = vadd.f32 %v2931, %v3083
  %v3085 = vtanh.pop %v3084
  %v3086 = vsub.f32 1.0, %v3082
  %v3087 = vmul.f32 %v3086, %v3085
  %v3088 = vmul.f32 %v3082, %v2618
  %v3089 = vadd.f32 %v3087, %v3088
  %3090 = vmatprep.subr.mxu0 %v710
  %3091 = vmatpush1.msra.mxu0 %v709
  %3092 = vmatprep.subr.mxu0 %v706
  %3093 = vmatpush1.msra.mxu0 %v705
  %3094 = vmatprep.subr.mxu0 %v702
  %3095 = vmatpush1.msra.mxu0 %v701
  %3096 = vmatprep.subr.mxu0 %v698
  %3097 = vmatpush1.msra.mxu0 %v697
  %3098 = vmatprep.subr.mxu0 %v694
  %3099 = vmatpush1.msra.mxu0 %v693
  %3100 = vmatprep.subr.mxu0 %v690
  %3101 = vmatpush1.msra.mxu0 %v689
  %3102 = vmatprep.subr.mxu0 %v686
  %3103 = vmatpush1.msra.mxu0 %v685
  %3104 = vmatprep.subr.mxu0 %v682
  %3105 = vmatpush1.msra.mxu0 %v681
  %3106 = vmatprep.subr.mxu0 %v678
  %3107 = vmatpush1.msra.mxu0 %v677
  %3108 = vmatprep.subr.mxu0 %v674
  %3109 = vmatpush1.msra.mxu0 %v673
  %3110 = vmatprep.subr.mxu0 %v670
  %3111 = vmatpush1.msra.mxu0 %v669
  %3112 = vmatprep.subr.mxu0 %v666
  %3113 = vmatpush1.msra.mxu0 %v665
  %3114 = vmatprep.subr.mxu0 %v662
  %3115 = vmatpush1.msra.mxu0 %v661
  %3116 = vmatprep.subr.mxu0 %v658
  %3117 = vmatpush1.msra.mxu0 %v657
  %3118 = vmatprep.subr.mxu0 %v654
  %3119 = vmatpush1.msra.mxu0 %v653
  %3120 = vmatprep.subr.mxu0 %v650
  %3121 = vmatpush1.msra.mxu0 %v649
  %3122 = vmatprep.subr.mxu0 0.0
  %3123 = vmatpush2.msra.mxu0 0.0
  %3124 = vmatprep.subr.mxu0 0.0
  %3125 = vmatpush2.msra.mxu0 0.0
  %3126 = vmatprep.subr.mxu0 0.0
  %3127 = vmatpush2.msra.mxu0 0.0
  %3128 = vmatprep.subr.mxu0 0.0
  %3129 = vmatpush2.msra.mxu0 0.0
  %3130 = vmatprep.subr.mxu0 0.0
  %3131 = vmatpush2.msra.mxu0 0.0
  %3132 = vmatprep.subr.mxu0 0.0
  %3133 = vmatpush2.msra.mxu0 0.0
  %3134 = vmatprep.subr.mxu0 0.0
  %3135 = vmatpush2.msra.mxu0 0.0
  %3136 = vmatprep.subr.mxu0 0.0
  %3137 = vmatpush2.msra.mxu0 0.0
  %3138 = vmatprep.subr.mxu0 0.0
  %3139 = vmatpush2.msra.mxu0 0.0
  %3140 = vmatprep.subr.mxu0 0.0
  %3141 = vmatpush2.msra.mxu0 0.0
  %3142 = vmatprep.subr.mxu0 0.0
  %3143 = vmatpush2.msra.mxu0 0.0
  %3144 = vmatprep.subr.mxu0 0.0
  %3145 = vmatpush2.msra.mxu0 0.0
  %3146 = vmatprep.subr.mxu0 0.0
  %3147 = vmatpush2.msra.mxu0 0.0
  %3148 = vmatprep.subr.mxu0 0.0
  %3149 = vmatpush2.msra.mxu0 0.0
  %3150 = vmatprep.subr.mxu0 0.0
  %3151 = vmatpush2.msra.mxu0 0.0
  %3152 = vmatprep.subr.mxu0 0.0
  %3153 = vmatpush2.msra.mxu0 0.0
  %3154 = vmatprep.mubr.f32.mxu0 0.0
  %3155 = vmatmul.mubr.f32.gmra.mxu0 %v2921
  %v3156 = vpop.f32.mrf.mxu0
  %v3157 = vadd.f32 0.0, %v3156
  %v3158 = vpop.f32.mrf.mxu0
  %v3159 = vadd.f32 0.0, %v3158
  %3160 = vdwg.mxu0
  %3161 = vmatprep.subr.mxu0 %v712
  %3162 = vmatpush1.msra.mxu0 %v711
  %3163 = vmatprep.subr.mxu0 %v708
  %3164 = vmatpush1.msra.mxu0 %v707
  %3165 = vmatprep.subr.mxu0 %v704
  %3166 = vmatpush1.msra.mxu0 %v703
  %3167 = vmatprep.subr.mxu0 %v700
  %3168 = vmatpush1.msra.mxu0 %v699
  %3169 = vmatprep.subr.mxu0 %v696
  %3170 = vmatpush1.msra.mxu0 %v695
  %3171 = vmatprep.subr.mxu0 %v692
  %3172 = vmatpush1.msra.mxu0 %v691
  %3173 = vmatprep.subr.mxu0 %v688
  %3174 = vmatpush1.msra.mxu0 %v687
  %3175 = vmatprep.subr.mxu0 %v684
  %3176 = vmatpush1.msra.mxu0 %v683
  %3177 = vmatprep.subr.mxu0 %v680
  %3178 = vmatpush1.msra.mxu0 %v679
  %3179 = vmatprep.subr.mxu0 %v676
  %3180 = vmatpush1.msra.mxu0 %v675
  %3181 = vmatprep.subr.mxu0 %v672
  %3182 = vmatpush1.msra.mxu0 %v671
  %3183 = vmatprep.subr.mxu0 %v668
  %3184 = vmatpush1.msra.mxu0 %v667
  %3185 = vmatprep.subr.mxu0 %v664
  %3186 = vmatpush1.msra.mxu0 %v663
  %3187 = vmatprep.subr.mxu0 %v660
  %3188 = vmatpush1.msra.mxu0 %v659
  %3189 = vmatprep.subr.mxu0 %v656
  %3190 = vmatpush1.msra.mxu0 %v655
  %3191 = vmatprep.subr.mxu0 %v652
  %3192 = vmatpush1.msra.mxu0 %v651
  %3193 = vmatprep.subr.mxu0 0.0
  %3194 = vmatpush2.msra.mxu0 0.0
  %3195 = vmatprep.subr.mxu0 0.0
  %3196 = vmatpush2.msra.mxu0 0.0
  %3197 = vmatprep.subr.mxu0 0.0
  %3198 = vmatpush2.msra.mxu0 0.0
  %3199 = vmatprep.subr.mxu0 0.0
  %3200 = vmatpush2.msra.mxu0 0.0
  %3201 = vmatprep.subr.mxu0 0.0
  %3202 = vmatpush2.msra.mxu0 0.0
  %3203 = vmatprep.subr.mxu0 0.0
  %3204 = vmatpush2.msra.mxu0 0.0
  %3205 = vmatprep.subr.mxu0 0.0
  %3206 = vmatpush2.msra.mxu0 0.0
  %3207 = vmatprep.subr.mxu0 0.0
  %3208 = vmatpush2.msra.mxu0 0.0
  %3209 = vmatprep.subr.mxu0 0.0
  %3210 = vmatpush2.msra.mxu0 0.0
  %3211 = vmatprep.subr.mxu0 0.0
  %3212 = vmatpush2.msra.mxu0 0.0
  %3213 = vmatprep.subr.mxu0 0.0
  %3214 = vmatpush2.msra.mxu0 0.0
  %3215 = vmatprep.subr.mxu0 0.0
  %3216 = vmatpush2.msra.mxu0 0.0
  %3217 = vmatprep.subr.mxu0 0.0
  %3218 = vmatpush2.msra.mxu0 0.0
  %3219 = vmatprep.subr.mxu0 0.0
  %3220 = vmatpush2.msra.mxu0 0.0
  %3221 = vmatprep.subr.mxu0 0.0
  %3222 = vmatpush2.msra.mxu0 0.0
  %3223 = vmatprep.subr.mxu0 0.0
  %3224 = vmatpush2.msra.mxu0 0.0
  %3225 = vmatprep.mubr.f32.mxu0 0.0
  %3226 = vmatmul.mubr.f32.gmra.mxu0 %v2921
  %v3227 = vpop.f32.mrf.mxu0
  %v3228 = vadd.f32 0.0, %v3227
  %v3229 = vpop.f32.mrf.mxu0
  %v3230 = vadd.f32 0.0, %v3229
  %3231 = vdwg.mxu0
  %3232 = vmatprep.subr.mxu0 %v646
  %3233 = vmatpush1.msra.mxu0 %v645
  %3234 = vmatprep.subr.mxu0 %v642
  %3235 = vmatpush1.msra.mxu0 %v641
  %3236 = vmatprep.subr.mxu0 %v638
  %3237 = vmatpush1.msra.mxu0 %v637
  %3238 = vmatprep.subr.mxu0 %v634
  %3239 = vmatpush1.msra.mxu0 %v633
  %3240 = vmatprep.subr.mxu0 %v630
  %3241 = vmatpush1.msra.mxu0 %v629
  %3242 = vmatprep.subr.mxu0 %v626
  %3243 = vmatpush1.msra.mxu0 %v625
  %3244 = vmatprep.subr.mxu0 %v622
  %3245 = vmatpush1.msra.mxu0 %v621
  %3246 = vmatprep.subr.mxu0 %v618
  %3247 = vmatpush1.msra.mxu0 %v617
  %3248 = vmatprep.subr.mxu0 %v614
  %3249 = vmatpush1.msra.mxu0 %v613
  %3250 = vmatprep.subr.mxu0 %v610
  %3251 = vmatpush1.msra.mxu0 %v609
  %3252 = vmatprep.subr.mxu0 %v606
  %3253 = vmatpush1.msra.mxu0 %v605
  %3254 = vmatprep.subr.mxu0 %v602
  %3255 = vmatpush1.msra.mxu0 %v601
  %3256 = vmatprep.subr.mxu0 %v598
  %3257 = vmatpush1.msra.mxu0 %v597
  %3258 = vmatprep.subr.mxu0 %v594
  %3259 = vmatpush1.msra.mxu0 %v593
  %3260 = vmatprep.subr.mxu0 %v590
  %3261 = vmatpush1.msra.mxu0 %v589
  %3262 = vmatprep.subr.mxu0 %v586
  %3263 = vmatpush1.msra.mxu0 %v585
  %3264 = vmatprep.subr.mxu0 0.0
  %3265 = vmatpush2.msra.mxu0 0.0
  %3266 = vmatprep.subr.mxu0 0.0
  %3267 = vmatpush2.msra.mxu0 0.0
  %3268 = vmatprep.subr.mxu0 0.0
  %3269 = vmatpush2.msra.mxu0 0.0
  %3270 = vmatprep.subr.mxu0 0.0
  %3271 = vmatpush2.msra.mxu0 0.0
  %3272 = vmatprep.subr.mxu0 0.0
  %3273 = vmatpush2.msra.mxu0 0.0
  %3274 = vmatprep.subr.mxu0 0.0
  %3275 = vmatpush2.msra.mxu0 0.0
  %3276 = vmatprep.subr.mxu0 0.0
  %3277 = vmatpush2.msra.mxu0 0.0
  %3278 = vmatprep.subr.mxu0 0.0
  %3279 = vmatpush2.msra.mxu0 0.0
  %3280 = vmatprep.subr.mxu0 0.0
  %3281 = vmatpush2.msra.mxu0 0.0
  %3282 = vmatprep.subr.mxu0 0.0
  %3283 = vmatpush2.msra.mxu0 0.0
  %3284 = vmatprep.subr.mxu0 0.0
  %3285 = vmatpush2.msra.mxu0 0.0
  %3286 = vmatprep.subr.mxu0 0.0
  %3287 = vmatpush2.msra.mxu0 0.0
  %3288 = vmatprep.subr.mxu0 0.0
  %3289 = vmatpush2.msra.mxu0 0.0
  %3290 = vmatprep.subr.mxu0 0.0
  %3291 = vmatpush2.msra.mxu0 0.0
  %3292 = vmatprep.subr.mxu0 0.0
  %3293 = vmatpush2.msra.mxu0 0.0
  %3294 = vmatprep.subr.mxu0 0.0
  %3295 = vmatpush2.msra.mxu0 0.0
  %3296 = vmatprep.mubr.f32.mxu0 0.0
  %3297 = vmatmul.mubr.f32.gmra.mxu0 %v3089
  %v3298 = vpop.f32.mrf.mxu0
  %v3299 = vadd.f32 %v3157, %v3298
  %v3300 = vpop.f32.mrf.mxu0
  %v3301 = vadd.f32 %v3159, %v3300
  %3302 = vdwg.mxu0
  %3303 = vmatprep.subr.mxu0 %v648
  %3304 = vmatpush1.msra.mxu0 %v647
  %3305 = vmatprep.subr.mxu0 %v644
  %3306 = vmatpush1.msra.mxu0 %v643
  %3307 = vmatprep.subr.mxu0 %v640
  %3308 = vmatpush1.msra.mxu0 %v639
  %3309 = vmatprep.subr.mxu0 %v636
  %3310 = vmatpush1.msra.mxu0 %v635
  %3311 = vmatprep.subr.mxu0 %v632
  %3312 = vmatpush1.msra.mxu0 %v631
  %3313 = vmatprep.subr.mxu0 %v628
  %3314 = vmatpush1.msra.mxu0 %v627
  %3315 = vmatprep.subr.mxu0 %v624
  %3316 = vmatpush1.msra.mxu0 %v623
  %3317 = vmatprep.subr.mxu0 %v620
  %3318 = vmatpush1.msra.mxu0 %v619
  %3319 = vmatprep.subr.mxu0 %v616
  %3320 = vmatpush1.msra.mxu0 %v615
  %3321 = vmatprep.subr.mxu0 %v612
  %3322 = vmatpush1.msra.mxu0 %v611
  %3323 = vmatprep.subr.mxu0 %v608
  %3324 = vmatpush1.msra.mxu0 %v607
  %3325 = vmatprep.subr.mxu0 %v604
  %3326 = vmatpush1.msra.mxu0 %v603
  %3327 = vmatprep.subr.mxu0 %v600
  %3328 = vmatpush1.msra.mxu0 %v599
  %3329 = vmatprep.subr.mxu0 %v596
  %3330 = vmatpush1.msra.mxu0 %v595
  %3331 = vmatprep.subr.mxu0 %v592
  %3332 = vmatpush1.msra.mxu0 %v591
  %3333 = vmatprep.subr.mxu0 %v588
  %3334 = vmatpush1.msra.mxu0 %v587
  %3335 = vmatprep.subr.mxu0 0.0
  %3336 = vmatpush2.msra.mxu0 0.0
  %3337 = vmatprep.subr.mxu0 0.0
  %3338 = vmatpush2.msra.mxu0 0.0
  %3339 = vmatprep.subr.mxu0 0.0
  %3340 = vmatpush2.msra.mxu0 0.0
  %3341 = vmatprep.subr.mxu0 0.0
  %3342 = vmatpush2.msra.mxu0 0.0
  %3343 = vmatprep.subr.mxu0 0.0
  %3344 = vmatpush2.msra.mxu0 0.0
  %3345 = vmatprep.subr.mxu0 0.0
  %3346 = vmatpush2.msra.mxu0 0.0
  %3347 = vmatprep.subr.mxu0 0.0
  %3348 = vmatpush2.msra.mxu0 0.0
  %3349 = vmatprep.subr.mxu0 0.0
  %3350 = vmatpush2.msra.mxu0 0.0
  %3351 = vmatprep.subr.mxu0 0.0
  %3352 = vmatpush2.msra.mxu0 0.0
  %3353 = vmatprep.subr.mxu0 0.0
  %3354 = vmatpush2.msra.mxu0 0.0
  %3355 = vmatprep.subr.mxu0 0.0
  %3356 = vmatpush2.msra.mxu0 0.0
  %3357 = vmatprep.subr.mxu0 0.0
  %3358 = vmatpush2.msra.mxu0 0.0
  %3359 = vmatprep.subr.mxu0 0.0
  %3360 = vmatpush2.msra.mxu0 0.0
  %3361 = vmatprep.subr.mxu0 0.0
  %3362 = vmatpush2.msra.mxu0 0.0
  %3363 = vmatprep.subr.mxu0 0.0
  %3364 = vmatpush2.msra.mxu0 0.0
  %3365 = vmatprep.subr.mxu0 0.0
  %3366 = vmatpush2.msra.mxu0 0.0
  %3367 = vmatprep.mubr.f32.mxu0 0.0
  %3368 = vmatmul.mubr.f32.gmra.mxu0 %v3089
  %v3369 = vpop.f32.mrf.mxu0
  %v3370 = vadd.f32 %v3228, %v3369
  %v3371 = vpop.f32.mrf.mxu0
  %v3372 = vadd.f32 %v3230, %v3371
  %3373 = vdwg.mxu0
  %v3374 = vadd.f32 %v3299, %v1002
  %v3375 = vadd.f32 %v3301, %v1006
  %v3376 = vadd.f32 %v3370, %v1010
  %v3377 = vadd.f32 %v3372, %v1014
  %v3378 = vmul.f32 %v3374, 0.5
  %v3379 = vmul.f32 %v3375, 0.5
  %v3380 = vtanh.pop %v3378
  %v3381 = vtanh.pop %v3379
  %v3382 = vmul.f32 %v3380, 0.5
  %v3383 = vmul.f32 %v3381, 0.5
  %v3384 = vadd.f32 %v3382, 0.5
  %v3385 = vadd.f32 %v3383, 0.5
  %v3386 = vmul.f32 %v3384, %v3377
  %v3387 = vadd.f32 %v3376, %v3386
  %v3388 = vtanh.pop %v3387
  %v3389 = vsub.f32 1.0, %v3385
  %v3390 = vmul.f32 %v3389, %v3388
  %v3391 = vmul.f32 %v3385, %v2921
  %v3392 = vadd.f32 %v3390, %v3391
  %v3393 = vmul.f32 %v2925, %v3392
  %v3394 = vadd.f32 %v2923, %v3393
  %s3395 = scalar_lea.vmem %s1, 48
  %v3396 = vld [vmem:[%s3395] sm:$0xff]
  %s3397 = smul.u32 6, 3
  %s3398 = smul.addr %s3397, 8
  %s3399 = scalar_lea.vmem [#allocation2], %s3398
  %v3400 = vld [vmem:[%s3399] sm:$0xff]
  %v3401 = vld [vmem:[%s3399 + $0x8] sm:$0xff]
  %v3402 = vld [vmem:[%s3399 + $0x10] sm:$0xff]
  %3403 = vmatprep.subr.mxu0 %v408
  %3404 = vmatpush1.msra.mxu0 %v407
  %3405 = vmatprep.subr.mxu0 %v405
  %3406 = vmatpush1.msra.mxu0 %v404
  %3407 = vmatprep.subr.mxu0 %v402
  %3408 = vmatpush1.msra.mxu0 %v401
  %3409 = vmatprep.subr.mxu0 %v399
  %3410 = vmatpush1.msra.mxu0 %v398
  %3411 = vmatprep.subr.mxu0 %v396
  %3412 = vmatpush1.msra.mxu0 %v395
  %3413 = vmatprep.subr.mxu0 %v393
  %3414 = vmatpush1.msra.mxu0 %v392
  %3415 = vmatprep.subr.mxu0 %v390
  %3416 = vmatpush1.msra.mxu0 %v389
  %3417 = vmatprep.subr.mxu0 %v387
  %3418 = vmatpush1.msra.mxu0 %v386
  %3419 = vmatprep.subr.mxu0 %v384
  %3420 = vmatpush1.msra.mxu0 %v383
  %3421 = vmatprep.subr.mxu0 %v381
  %3422 = vmatpush1.msra.mxu0 %v380
  %3423 = vmatprep.subr.mxu0 %v378
  %3424 = vmatpush1.msra.mxu0 %v377
  %3425 = vmatprep.subr.mxu0 %v375
  %3426 = vmatpush1.msra.mxu0 %v374
  %3427 = vmatprep.subr.mxu0 %v372
  %3428 = vmatpush1.msra.mxu0 %v371
  %3429 = vmatprep.subr.mxu0 %v369
  %3430 = vmatpush1.msra.mxu0 %v368
  %3431 = vmatprep.subr.mxu0 %v366
  %3432 = vmatpush1.msra.mxu0 %v365
  %3433 = vmatprep.subr.mxu0 %v363
  %3434 = vmatpush1.msra.mxu0 %v362
  %3435 = vmatprep.subr.mxu0 0.0
  %3436 = vmatpush2.msra.mxu0 0.0
  %3437 = vmatprep.subr.mxu0 0.0
  %3438 = vmatpush2.msra.mxu0 0.0
  %3439 = vmatprep.subr.mxu0 0.0
  %3440 = vmatpush2.msra.mxu0 0.0
  %3441 = vmatprep.subr.mxu0 0.0
  %3442 = vmatpush2.msra.mxu0 0.0
  %3443 = vmatprep.subr.mxu0 0.0
  %3444 = vmatpush2.msra.mxu0 0.0
  %3445 = vmatprep.subr.mxu0 0.0
  %3446 = vmatpush2.msra.mxu0 0.0
  %3447 = vmatprep.subr.mxu0 0.0
  %3448 = vmatpush2.msra.mxu0 0.0
  %3449 = vmatprep.subr.mxu0 0.0
  %3450 = vmatpush2.msra.mxu0 0.0
  %3451 = vmatprep.subr.mxu0 0.0
  %3452 = vmatpush2.msra.mxu0 0.0
  %3453 = vmatprep.subr.mxu0 0.0
  %3454 = vmatpush2.msra.mxu0 0.0
  %3455 = vmatprep.subr.mxu0 0.0
  %3456 = vmatpush2.msra.mxu0 0.0
  %3457 = vmatprep.subr.mxu0 0.0
  %3458 = vmatpush2.msra.mxu0 0.0
  %3459 = vmatprep.subr.mxu0 0.0
  %3460 = vmatpush2.msra.mxu0 0.0
  %3461 = vmatprep.subr.mxu0 0.0
  %3462 = vmatpush2.msra.mxu0 0.0
  %3463 = vmatprep.subr.mxu0 0.0
  %3464 = vmatpush2.msra.mxu0 0.0
  %3465 = vmatprep.subr.mxu0 0.0
  %3466 = vmatpush2.msra.mxu0 0.0
  %3467 = vmatprep.mubr.f32.mxu0 0.0
  %3468 = vmatmul.mubr.f32.gmra.mxu0 %v3089
  %v3469 = vpop.f32.mrf.mxu0
  %v3470 = vadd.f32 %v415, %v3469
  %v3471 = vpop.f32.mrf.mxu0
  %v3472 = vadd.f32 %v419, %v3471
  %3473 = vdwg.mxu0
  %3474 = vmatprep.subr.mxu0 0.0
  %3475 = vmatpush1.msra.mxu0 %v409
  %3476 = vmatprep.subr.mxu0 0.0
  %3477 = vmatpush1.msra.mxu0 %v406
  %3478 = vmatprep.subr.mxu0 0.0
  %3479 = vmatpush1.msra.mxu0 %v403
  %3480 = vmatprep.subr.mxu0 0.0
  %3481 = vmatpush1.msra.mxu0 %v400
  %3482 = vmatprep.subr.mxu0 0.0
  %3483 = vmatpush1.msra.mxu0 %v397
  %3484 = vmatprep.subr.mxu0 0.0
  %3485 = vmatpush1.msra.mxu0 %v394
  %3486 = vmatprep.subr.mxu0 0.0
  %3487 = vmatpush1.msra.mxu0 %v391
  %3488 = vmatprep.subr.mxu0 0.0
  %3489 = vmatpush1.msra.mxu0 %v388
  %3490 = vmatprep.subr.mxu0 0.0
  %3491 = vmatpush1.msra.mxu0 %v385
  %3492 = vmatprep.subr.mxu0 0.0
  %3493 = vmatpush1.msra.mxu0 %v382
  %3494 = vmatprep.subr.mxu0 0.0
  %3495 = vmatpush1.msra.mxu0 %v379
  %3496 = vmatprep.subr.mxu0 0.0
  %3497 = vmatpush1.msra.mxu0 %v376
  %3498 = vmatprep.subr.mxu0 0.0
  %3499 = vmatpush1.msra.mxu0 %v373
  %3500 = vmatprep.subr.mxu0 0.0
  %3501 = vmatpush1.msra.mxu0 %v370
  %3502 = vmatprep.subr.mxu0 0.0
  %3503 = vmatpush1.msra.mxu0 %v367
  %3504 = vmatprep.subr.mxu0 0.0
  %3505 = vmatpush1.msra.mxu0 %v364
  %3506 = vmatprep.subr.mxu0 0.0
  %3507 = vmatpush2.msra.mxu0 0.0
  %3508 = vmatprep.subr.mxu0 0.0
  %3509 = vmatpush2.msra.mxu0 0.0
  %3510 = vmatprep.subr.mxu0 0.0
  %3511 = vmatpush2.msra.mxu0 0.0
  %3512 = vmatprep.subr.mxu0 0.0
  %3513 = vmatpush2.msra.mxu0 0.0
  %3514 = vmatprep.subr.mxu0 0.0
  %3515 = vmatpush2.msra.mxu0 0.0
  %3516 = vmatprep.subr.mxu0 0.0
  %3517 = vmatpush2.msra.mxu0 0.0
  %3518 = vmatprep.subr.mxu0 0.0
  %3519 = vmatpush2.msra.mxu0 0.0
  %3520 = vmatprep.subr.mxu0 0.0
  %3521 = vmatpush2.msra.mxu0 0.0
  %3522 = vmatprep.subr.mxu0 0.0
  %3523 = vmatpush2.msra.mxu0 0.0
  %3524 = vmatprep.subr.mxu0 0.0
  %3525 = vmatpush2.msra.mxu0 0.0
  %3526 = vmatprep.subr.mxu0 0.0
  %3527 = vmatpush2.msra.mxu0 0.0
  %3528 = vmatprep.subr.mxu0 0.0
  %3529 = vmatpush2.msra.mxu0 0.0
  %3530 = vmatprep.subr.mxu0 0.0
  %3531 = vmatpush2.msra.mxu0 0.0
  %3532 = vmatprep.subr.mxu0 0.0
  %3533 = vmatpush2.msra.mxu0 0.0
  %3534 = vmatprep.subr.mxu0 0.0
  %3535 = vmatpush2.msra.mxu0 0.0
  %3536 = vmatprep.subr.mxu0 0.0
  %3537 = vmatpush2.msra.mxu0 0.0
  %3538 = vmatprep.mubr.f32.mxu0 0.0
  %3539 = vmatmul.mubr.f32.gmra.mxu0 %v3089
  %v3540 = vpop.f32.mrf.mxu0
  %v3541 = vadd.f32 %v423, %v3540
  %v3542 = vpop.f32.mrf.mxu0
  %3543 = vdwg.mxu0
  %v3544 = vadd.f32 %v3400, %v3470
  %v3545 = vadd.f32 %v3401, %v3472
  %v3546 = vmul.f32 %v3544, 0.5
  %v3547 = vmul.f32 %v3545, 0.5
  %v3548 = vtanh.pop %v3546
  %v3549 = vtanh.pop %v3547
  %v3550 = vmul.f32 %v3548, 0.5
  %v3551 = vmul.f32 %v3549, 0.5
  %v3552 = vadd.f32 %v3550, 0.5
  %v3553 = vadd.f32 %v3551, 0.5
  %v3554 = vmul.f32 %v3552, %v3541
  %v3555 = vadd.f32 %v3402, %v3554
  %v3556 = vtanh.pop %v3555
  %v3557 = vsub.f32 1.0, %v3553
  %v3558 = vmul.f32 %v3557, %v3556
  %v3559 = vmul.f32 %v3553, %v3089
  %v3560 = vadd.f32 %v3558, %v3559
  %3561 = vmatprep.subr.mxu0 %v710
  %3562 = vmatpush1.msra.mxu0 %v709
  %3563 = vmatprep.subr.mxu0 %v706
  %3564 = vmatpush1.msra.mxu0 %v705
  %3565 = vmatprep.subr.mxu0 %v702
  %3566 = vmatpush1.msra.mxu0 %v701
  %3567 = vmatprep.subr.mxu0 %v698
  %3568 = vmatpush1.msra.mxu0 %v697
  %3569 = vmatprep.subr.mxu0 %v694
  %3570 = vmatpush1.msra.mxu0 %v693
  %3571 = vmatprep.subr.mxu0 %v690
  %3572 = vmatpush1.msra.mxu0 %v689
  %3573 = vmatprep.subr.mxu0 %v686
  %3574 = vmatpush1.msra.mxu0 %v685
  %3575 = vmatprep.subr.mxu0 %v682
  %3576 = vmatpush1.msra.mxu0 %v681
  %3577 = vmatprep.subr.mxu0 %v678
  %3578 = vmatpush1.msra.mxu0 %v677
  %3579 = vmatprep.subr.mxu0 %v674
  %3580 = vmatpush1.msra.mxu0 %v673
  %3581 = vmatprep.subr.mxu0 %v670
  %3582 = vmatpush1.msra.mxu0 %v669
  %3583 = vmatprep.subr.mxu0 %v666
  %3584 = vmatpush1.msra.mxu0 %v665
  %3585 = vmatprep.subr.mxu0 %v662
  %3586 = vmatpush1.msra.mxu0 %v661
  %3587 = vmatprep.subr.mxu0 %v658
  %3588 = vmatpush1.msra.mxu0 %v657
  %3589 = vmatprep.subr.mxu0 %v654
  %3590 = vmatpush1.msra.mxu0 %v653
  %3591 = vmatprep.subr.mxu0 %v650
  %3592 = vmatpush1.msra.mxu0 %v649
  %3593 = vmatprep.subr.mxu0 0.0
  %3594 = vmatpush2.msra.mxu0 0.0
  %3595 = vmatprep.subr.mxu0 0.0
  %3596 = vmatpush2.msra.mxu0 0.0
  %3597 = vmatprep.subr.mxu0 0.0
  %3598 = vmatpush2.msra.mxu0 0.0
  %3599 = vmatprep.subr.mxu0 0.0
  %3600 = vmatpush2.msra.mxu0 0.0
  %3601 = vmatprep.subr.mxu0 0.0
  %3602 = vmatpush2.msra.mxu0 0.0
  %3603 = vmatprep.subr.mxu0 0.0
  %3604 = vmatpush2.msra.mxu0 0.0
  %3605 = vmatprep.subr.mxu0 0.0
  %3606 = vmatpush2.msra.mxu0 0.0
  %3607 = vmatprep.subr.mxu0 0.0
  %3608 = vmatpush2.msra.mxu0 0.0
  %3609 = vmatprep.subr.mxu0 0.0
  %3610 = vmatpush2.msra.mxu0 0.0
  %3611 = vmatprep.subr.mxu0 0.0
  %3612 = vmatpush2.msra.mxu0 0.0
  %3613 = vmatprep.subr.mxu0 0.0
  %3614 = vmatpush2.msra.mxu0 0.0
  %3615 = vmatprep.subr.mxu0 0.0
  %3616 = vmatpush2.msra.mxu0 0.0
  %3617 = vmatprep.subr.mxu0 0.0
  %3618 = vmatpush2.msra.mxu0 0.0
  %3619 = vmatprep.subr.mxu0 0.0
  %3620 = vmatpush2.msra.mxu0 0.0
  %3621 = vmatprep.subr.mxu0 0.0
  %3622 = vmatpush2.msra.mxu0 0.0
  %3623 = vmatprep.subr.mxu0 0.0
  %3624 = vmatpush2.msra.mxu0 0.0
  %3625 = vmatprep.mubr.f32.mxu0 0.0
  %3626 = vmatmul.mubr.f32.gmra.mxu0 %v3392
  %v3627 = vpop.f32.mrf.mxu0
  %v3628 = vadd.f32 0.0, %v3627
  %v3629 = vpop.f32.mrf.mxu0
  %v3630 = vadd.f32 0.0, %v3629
  %3631 = vdwg.mxu0
  %3632 = vmatprep.subr.mxu0 %v712
  %3633 = vmatpush1.msra.mxu0 %v711
  %3634 = vmatprep.subr.mxu0 %v708
  %3635 = vmatpush1.msra.mxu0 %v707
  %3636 = vmatprep.subr.mxu0 %v704
  %3637 = vmatpush1.msra.mxu0 %v703
  %3638 = vmatprep.subr.mxu0 %v700
  %3639 = vmatpush1.msra.mxu0 %v699
  %3640 = vmatprep.subr.mxu0 %v696
  %3641 = vmatpush1.msra.mxu0 %v695
  %3642 = vmatprep.subr.mxu0 %v692
  %3643 = vmatpush1.msra.mxu0 %v691
  %3644 = vmatprep.subr.mxu0 %v688
  %3645 = vmatpush1.msra.mxu0 %v687
  %3646 = vmatprep.subr.mxu0 %v684
  %3647 = vmatpush1.msra.mxu0 %v683
  %3648 = vmatprep.subr.mxu0 %v680
  %3649 = vmatpush1.msra.mxu0 %v679
  %3650 = vmatprep.subr.mxu0 %v676
  %3651 = vmatpush1.msra.mxu0 %v675
  %3652 = vmatprep.subr.mxu0 %v672
  %3653 = vmatpush1.msra.mxu0 %v671
  %3654 = vmatprep.subr.mxu0 %v668
  %3655 = vmatpush1.msra.mxu0 %v667
  %3656 = vmatprep.subr.mxu0 %v664
  %3657 = vmatpush1.msra.mxu0 %v663
  %3658 = vmatprep.subr.mxu0 %v660
  %3659 = vmatpush1.msra.mxu0 %v659
  %3660 = vmatprep.subr.mxu0 %v656
  %3661 = vmatpush1.msra.mxu0 %v655
  %3662 = vmatprep.subr.mxu0 %v652
  %3663 = vmatpush1.msra.mxu0 %v651
  %3664 = vmatprep.subr.mxu0 0.0
  %3665 = vmatpush2.msra.mxu0 0.0
  %3666 = vmatprep.subr.mxu0 0.0
  %3667 = vmatpush2.msra.mxu0 0.0
  %3668 = vmatprep.subr.mxu0 0.0
  %3669 = vmatpush2.msra.mxu0 0.0
  %3670 = vmatprep.subr.mxu0 0.0
  %3671 = vmatpush2.msra.mxu0 0.0
  %3672 = vmatprep.subr.mxu0 0.0
  %3673 = vmatpush2.msra.mxu0 0.0
  %3674 = vmatprep.subr.mxu0 0.0
  %3675 = vmatpush2.msra.mxu0 0.0
  %3676 = vmatprep.subr.mxu0 0.0
  %3677 = vmatpush2.msra.mxu0 0.0
  %3678 = vmatprep.subr.mxu0 0.0
  %3679 = vmatpush2.msra.mxu0 0.0
  %3680 = vmatprep.subr.mxu0 0.0
  %3681 = vmatpush2.msra.mxu0 0.0
  %3682 = vmatprep.subr.mxu0 0.0
  %3683 = vmatpush2.msra.mxu0 0.0
  %3684 = vmatprep.subr.mxu0 0.0
  %3685 = vmatpush2.msra.mxu0 0.0
  %3686 = vmatprep.subr.mxu0 0.0
  %3687 = vmatpush2.msra.mxu0 0.0
  %3688 = vmatprep.subr.mxu0 0.0
  %3689 = vmatpush2.msra.mxu0 0.0
  %3690 = vmatprep.subr.mxu0 0.0
  %3691 = vmatpush2.msra.mxu0 0.0
  %3692 = vmatprep.subr.mxu0 0.0
  %3693 = vmatpush2.msra.mxu0 0.0
  %3694 = vmatprep.subr.mxu0 0.0
  %3695 = vmatpush2.msra.mxu0 0.0
  %3696 = vmatprep.mubr.f32.mxu0 0.0
  %3697 = vmatmul.mubr.f32.gmra.mxu0 %v3392
  %v3698 = vpop.f32.mrf.mxu0
  %v3699 = vadd.f32 0.0, %v3698
  %v3700 = vpop.f32.mrf.mxu0
  %v3701 = vadd.f32 0.0, %v3700
  %3702 = vdwg.mxu0
  %3703 = vmatprep.subr.mxu0 %v646
  %3704 = vmatpush1.msra.mxu0 %v645
  %3705 = vmatprep.subr.mxu0 %v642
  %3706 = vmatpush1.msra.mxu0 %v641
  %3707 = vmatprep.subr.mxu0 %v638
  %3708 = vmatpush1.msra.mxu0 %v637
  %3709 = vmatprep.subr.mxu0 %v634
  %3710 = vmatpush1.msra.mxu0 %v633
  %3711 = vmatprep.subr.mxu0 %v630
  %3712 = vmatpush1.msra.mxu0 %v629
  %3713 = vmatprep.subr.mxu0 %v626
  %3714 = vmatpush1.msra.mxu0 %v625
  %3715 = vmatprep.subr.mxu0 %v622
  %3716 = vmatpush1.msra.mxu0 %v621
  %3717 = vmatprep.subr.mxu0 %v618
  %3718 = vmatpush1.msra.mxu0 %v617
  %3719 = vmatprep.subr.mxu0 %v614
  %3720 = vmatpush1.msra.mxu0 %v613
  %3721 = vmatprep.subr.mxu0 %v610
  %3722 = vmatpush1.msra.mxu0 %v609
  %3723 = vmatprep.subr.mxu0 %v606
  %3724 = vmatpush1.msra.mxu0 %v605
  %3725 = vmatprep.subr.mxu0 %v602
  %3726 = vmatpush1.msra.mxu0 %v601
  %3727 = vmatprep.subr.mxu0 %v598
  %3728 = vmatpush1.msra.mxu0 %v597
  %3729 = vmatprep.subr.mxu0 %v594
  %3730 = vmatpush1.msra.mxu0 %v593
  %3731 = vmatprep.subr.mxu0 %v590
  %3732 = vmatpush1.msra.mxu0 %v589
  %3733 = vmatprep.subr.mxu0 %v586
  %3734 = vmatpush1.msra.mxu0 %v585
  %3735 = vmatprep.subr.mxu0 0.0
  %3736 = vmatpush2.msra.mxu0 0.0
  %3737 = vmatprep.subr.mxu0 0.0
  %3738 = vmatpush2.msra.mxu0 0.0
  %3739 = vmatprep.subr.mxu0 0.0
  %3740 = vmatpush2.msra.mxu0 0.0
  %3741 = vmatprep.subr.mxu0 0.0
  %3742 = vmatpush2.msra.mxu0 0.0
  %3743 = vmatprep.subr.mxu0 0.0
  %3744 = vmatpush2.msra.mxu0 0.0
  %3745 = vmatprep.subr.mxu0 0.0
  %3746 = vmatpush2.msra.mxu0 0.0
  %3747 = vmatprep.subr.mxu0 0.0
  %3748 = vmatpush2.msra.mxu0 0.0
  %3749 = vmatprep.subr.mxu0 0.0
  %3750 = vmatpush2.msra.mxu0 0.0
  %3751 = vmatprep.subr.mxu0 0.0
  %3752 = vmatpush2.msra.mxu0 0.0
  %3753 = vmatprep.subr.mxu0 0.0
  %3754 = vmatpush2.msra.mxu0 0.0
  %3755 = vmatprep.subr.mxu0 0.0
  %3756 = vmatpush2.msra.mxu0 0.0
  %3757 = vmatprep.subr.mxu0 0.0
  %3758 = vmatpush2.msra.mxu0 0.0
  %3759 = vmatprep.subr.mxu0 0.0
  %3760 = vmatpush2.msra.mxu0 0.0
  %3761 = vmatprep.subr.mxu0 0.0
  %3762 = vmatpush2.msra.mxu0 0.0
  %3763 = vmatprep.subr.mxu0 0.0
  %3764 = vmatpush2.msra.mxu0 0.0
  %3765 = vmatprep.subr.mxu0 0.0
  %3766 = vmatpush2.msra.mxu0 0.0
  %3767 = vmatprep.mubr.f32.mxu0 0.0
  %3768 = vmatmul.mubr.f32.gmra.mxu0 %v3560
  %v3769 = vpop.f32.mrf.mxu0
  %v3770 = vadd.f32 %v3628, %v3769
  %v3771 = vpop.f32.mrf.mxu0
  %v3772 = vadd.f32 %v3630, %v3771
  %3773 = vdwg.mxu0
  %3774 = vmatprep.subr.mxu0 %v648
  %3775 = vmatpush1.msra.mxu0 %v647
  %3776 = vmatprep.subr.mxu0 %v644
  %3777 = vmatpush1.msra.mxu0 %v643
  %3778 = vmatprep.subr.mxu0 %v640
  %3779 = vmatpush1.msra.mxu0 %v639
  %3780 = vmatprep.subr.mxu0 %v636
  %3781 = vmatpush1.msra.mxu0 %v635
  %3782 = vmatprep.subr.mxu0 %v632
  %3783 = vmatpush1.msra.mxu0 %v631
  %3784 = vmatprep.subr.mxu0 %v628
  %3785 = vmatpush1.msra.mxu0 %v627
  %3786 = vmatprep.subr.mxu0 %v624
  %3787 = vmatpush1.msra.mxu0 %v623
  %3788 = vmatprep.subr.mxu0 %v620
  %3789 = vmatpush1.msra.mxu0 %v619
  %3790 = vmatprep.subr.mxu0 %v616
  %3791 = vmatpush1.msra.mxu0 %v615
  %3792 = vmatprep.subr.mxu0 %v612
  %3793 = vmatpush1.msra.mxu0 %v611
  %3794 = vmatprep.subr.mxu0 %v608
  %3795 = vmatpush1.msra.mxu0 %v607
  %3796 = vmatprep.subr.mxu0 %v604
  %3797 = vmatpush1.msra.mxu0 %v603
  %3798 = vmatprep.subr.mxu0 %v600
  %3799 = vmatpush1.msra.mxu0 %v599
  %3800 = vmatprep.subr.mxu0 %v596
  %3801 = vmatpush1.msra.mxu0 %v595
  %3802 = vmatprep.subr.mxu0 %v592
  %3803 = vmatpush1.msra.mxu0 %v591
  %3804 = vmatprep.subr.mxu0 %v588
  %3805 = vmatpush1.msra.mxu0 %v587
  %3806 = vmatprep.subr.mxu0 0.0
  %3807 = vmatpush2.msra.mxu0 0.0
  %3808 = vmatprep.subr.mxu0 0.0
  %3809 = vmatpush2.msra.mxu0 0.0
  %3810 = vmatprep.subr.mxu0 0.0
  %3811 = vmatpush2.msra.mxu0 0.0
  %3812 = vmatprep.subr.mxu0 0.0
  %3813 = vmatpush2.msra.mxu0 0.0
  %3814 = vmatprep.subr.mxu0 0.0
  %3815 = vmatpush2.msra.mxu0 0.0
  %3816 = vmatprep.subr.mxu0 0.0
  %3817 = vmatpush2.msra.mxu0 0.0
  %3818 = vmatprep.subr.mxu0 0.0
  %3819 = vmatpush2.msra.mxu0 0.0
  %3820 = vmatprep.subr.mxu0 0.0
  %3821 = vmatpush2.msra.mxu0 0.0
  %3822 = vmatprep.subr.mxu0 0.0
  %3823 = vmatpush2.msra.mxu0 0.0
  %3824 = vmatprep.subr.mxu0 0.0
  %3825 = vmatpush2.msra.mxu0 0.0
  %3826 = vmatprep.subr.mxu0 0.0
  %3827 = vmatpush2.msra.mxu0 0.0
  %3828 = vmatprep.subr.mxu0 0.0
  %3829 = vmatpush2.msra.mxu0 0.0
  %3830 = vmatprep.subr.mxu0 0.0
  %3831 = vmatpush2.msra.mxu0 0.0
  %3832 = vmatprep.subr.mxu0 0.0
  %3833 = vmatpush2.msra.mxu0 0.0
  %3834 = vmatprep.subr.mxu0 0.0
  %3835 = vmatpush2.msra.mxu0 0.0
  %3836 = vmatprep.subr.mxu0 0.0
  %3837 = vmatpush2.msra.mxu0 0.0
  %3838 = vmatprep.mubr.f32.mxu0 0.0
  %3839 = vmatmul.mubr.f32.gmra.mxu0 %v3560
  %v3840 = vpop.f32.mrf.mxu0
  %v3841 = vadd.f32 %v3699, %v3840
  %v3842 = vpop.f32.mrf.mxu0
  %v3843 = vadd.f32 %v3701, %v3842
  %3844 = vdwg.mxu0
  %v3845 = vadd.f32 %v3770, %v1002
  %v3846 = vadd.f32 %v3772, %v1006
  %v3847 = vadd.f32 %v3841, %v1010
  %v3848 = vadd.f32 %v3843, %v1014
  %v3849 = vmul.f32 %v3845, 0.5
  %v3850 = vmul.f32 %v3846, 0.5
  %v3851 = vtanh.pop %v3849
  %v3852 = vtanh.pop %v3850
  %v3853 = vmul.f32 %v3851, 0.5
  %v3854 = vmul.f32 %v3852, 0.5
  %v3855 = vadd.f32 %v3853, 0.5
  %v3856 = vadd.f32 %v3854, 0.5
  %v3857 = vmul.f32 %v3855, %v3848
  %v3858 = vadd.f32 %v3847, %v3857
  %v3859 = vtanh.pop %v3858
  %v3860 = vsub.f32 1.0, %v3856
  %v3861 = vmul.f32 %v3860, %v3859
  %v3862 = vmul.f32 %v3856, %v3392
  %v3863 = vadd.f32 %v3861, %v3862
  %v3864 = vmul.f32 %v3396, %v3863
  %v3865 = vadd.f32 %v3394, %v3864
  %s3866 = scalar_lea.vmem %s1, 56
  %v3867 = vld [vmem:[%s3866] sm:$0xff]
  %s3868 = smul.u32 7, 3
  %s3869 = smul.addr %s3868, 8
  %s3870 = scalar_lea.vmem [#allocation2], %s3869
  %v3871 = vld [vmem:[%s3870] sm:$0xff]
  %v3872 = vld [vmem:[%s3870 + $0x8] sm:$0xff]
  %v3873 = vld [vmem:[%s3870 + $0x10] sm:$0xff]
  %3874 = vmatprep.subr.mxu0 %v408
  %3875 = vmatpush1.msra.mxu0 %v407
  %3876 = vmatprep.subr.mxu0 %v405
  %3877 = vmatpush1.msra.mxu0 %v404
  %3878 = vmatprep.subr.mxu0 %v402
  %3879 = vmatpush1.msra.mxu0 %v401
  %3880 = vmatprep.subr.mxu0 %v399
  %3881 = vmatpush1.msra.mxu0 %v398
  %3882 = vmatprep.subr.mxu0 %v396
  %3883 = vmatpush1.msra.mxu0 %v395
  %3884 = vmatprep.subr.mxu0 %v393
  %3885 = vmatpush1.msra.mxu0 %v392
  %3886 = vmatprep.subr.mxu0 %v390
  %3887 = vmatpush1.msra.mxu0 %v389
  %3888 = vmatprep.subr.mxu0 %v387
  %3889 = vmatpush1.msra.mxu0 %v386
  %3890 = vmatprep.subr.mxu0 %v384
  %3891 = vmatpush1.msra.mxu0 %v383
  %3892 = vmatprep.subr.mxu0 %v381
  %3893 = vmatpush1.msra.mxu0 %v380
  %3894 = vmatprep.subr.mxu0 %v378
  %3895 = vmatpush1.msra.mxu0 %v377
  %3896 = vmatprep.subr.mxu0 %v375
  %3897 = vmatpush1.msra.mxu0 %v374
  %3898 = vmatprep.subr.mxu0 %v372
  %3899 = vmatpush1.msra.mxu0 %v371
  %3900 = vmatprep.subr.mxu0 %v369
  %3901 = vmatpush1.msra.mxu0 %v368
  %3902 = vmatprep.subr.mxu0 %v366
  %3903 = vmatpush1.msra.mxu0 %v365
  %3904 = vmatprep.subr.mxu0 %v363
  %3905 = vmatpush1.msra.mxu0 %v362
  %3906 = vmatprep.subr.mxu0 0.0
  %3907 = vmatpush2.msra.mxu0 0.0
  %3908 = vmatprep.subr.mxu0 0.0
  %3909 = vmatpush2.msra.mxu0 0.0
  %3910 = vmatprep.subr.mxu0 0.0
  %3911 = vmatpush2.msra.mxu0 0.0
  %3912 = vmatprep.subr.mxu0 0.0
  %3913 = vmatpush2.msra.mxu0 0.0
  %3914 = vmatprep.subr.mxu0 0.0
  %3915 = vmatpush2.msra.mxu0 0.0
  %3916 = vmatprep.subr.mxu0 0.0
  %3917 = vmatpush2.msra.mxu0 0.0
  %3918 = vmatprep.subr.mxu0 0.0
  %3919 = vmatpush2.msra.mxu0 0.0
  %3920 = vmatprep.subr.mxu0 0.0
  %3921 = vmatpush2.msra.mxu0 0.0
  %3922 = vmatprep.subr.mxu0 0.0
  %3923 = vmatpush2.msra.mxu0 0.0
  %3924 = vmatprep.subr.mxu0 0.0
  %3925 = vmatpush2.msra.mxu0 0.0
  %3926 = vmatprep.subr.mxu0 0.0
  %3927 = vmatpush2.msra.mxu0 0.0
  %3928 = vmatprep.subr.mxu0 0.0
  %3929 = vmatpush2.msra.mxu0 0.0
  %3930 = vmatprep.subr.mxu0 0.0
  %3931 = vmatpush2.msra.mxu0 0.0
  %3932 = vmatprep.subr.mxu0 0.0
  %3933 = vmatpush2.msra.mxu0 0.0
  %3934 = vmatprep.subr.mxu0 0.0
  %3935 = vmatpush2.msra.mxu0 0.0
  %3936 = vmatprep.subr.mxu0 0.0
  %3937 = vmatpush2.msra.mxu0 0.0
  %3938 = vmatprep.mubr.f32.mxu0 0.0
  %3939 = vmatmul.mubr.f32.gmra.mxu0 %v3560
  %v3940 = vpop.f32.mrf.mxu0
  %v3941 = vadd.f32 %v415, %v3940
  %v3942 = vpop.f32.mrf.mxu0
  %v3943 = vadd.f32 %v419, %v3942
  %3944 = vdwg.mxu0
  %3945 = vmatprep.subr.mxu0 0.0
  %3946 = vmatpush1.msra.mxu0 %v409
  %3947 = vmatprep.subr.mxu0 0.0
  %3948 = vmatpush1.msra.mxu0 %v406
  %3949 = vmatprep.subr.mxu0 0.0
  %3950 = vmatpush1.msra.mxu0 %v403
  %3951 = vmatprep.subr.mxu0 0.0
  %3952 = vmatpush1.msra.mxu0 %v400
  %3953 = vmatprep.subr.mxu0 0.0
  %3954 = vmatpush1.msra.mxu0 %v397
  %3955 = vmatprep.subr.mxu0 0.0
  %3956 = vmatpush1.msra.mxu0 %v394
  %3957 = vmatprep.subr.mxu0 0.0
  %3958 = vmatpush1.msra.mxu0 %v391
  %3959 = vmatprep.subr.mxu0 0.0
  %3960 = vmatpush1.msra.mxu0 %v388
  %3961 = vmatprep.subr.mxu0 0.0
  %3962 = vmatpush1.msra.mxu0 %v385
  %3963 = vmatprep.subr.mxu0 0.0
  %3964 = vmatpush1.msra.mxu0 %v382
  %3965 = vmatprep.subr.mxu0 0.0
  %3966 = vmatpush1.msra.mxu0 %v379
  %3967 = vmatprep.subr.mxu0 0.0
  %3968 = vmatpush1.msra.mxu0 %v376
  %3969 = vmatprep.subr.mxu0 0.0
  %3970 = vmatpush1.msra.mxu0 %v373
  %3971 = vmatprep.subr.mxu0 0.0
  %3972 = vmatpush1.msra.mxu0 %v370
  %3973 = vmatprep.subr.mxu0 0.0
  %3974 = vmatpush1.msra.mxu0 %v367
  %3975 = vmatprep.subr.mxu0 0.0
  %3976 = vmatpush1.msra.mxu0 %v364
  %3977 = vmatprep.subr.mxu0 0.0
  %3978 = vmatpush2.msra.mxu0 0.0
  %3979 = vmatprep.subr.mxu0 0.0
  %3980 = vmatpush2.msra.mxu0 0.0
  %3981 = vmatprep.subr.mxu0 0.0
  %3982 = vmatpush2.msra.mxu0 0.0
  %3983 = vmatprep.subr.mxu0 0.0
  %3984 = vmatpush2.msra.mxu0 0.0
  %3985 = vmatprep.subr.mxu0 0.0
  %3986 = vmatpush2.msra.mxu0 0.0
  %3987 = vmatprep.subr.mxu0 0.0
  %3988 = vmatpush2.msra.mxu0 0.0
  %3989 = vmatprep.subr.mxu0 0.0
  %3990 = vmatpush2.msra.mxu0 0.0
  %3991 = vmatprep.subr.mxu0 0.0
  %3992 = vmatpush2.msra.mxu0 0.0
  %3993 = vmatprep.subr.mxu0 0.0
  %3994 = vmatpush2.msra.mxu0 0.0
  %3995 = vmatprep.subr.mxu0 0.0
  %3996 = vmatpush2.msra.mxu0 0.0
  %3997 = vmatprep.subr.mxu0 0.0
  %3998 = vmatpush2.msra.mxu0 0.0
  %3999 = vmatprep.subr.mxu0 0.0
  %4000 = vmatpush2.msra.mxu0 0.0
  %4001 = vmatprep.subr.mxu0 0.0
  %4002 = vmatpush2.msra.mxu0 0.0
  %4003 = vmatprep.subr.mxu0 0.0
  %4004 = vmatpush2.msra.mxu0 0.0
  %4005 = vmatprep.subr.mxu0 0.0
  %4006 = vmatpush2.msra.mxu0 0.0
  %4007 = vmatprep.subr.mxu0 0.0
  %4008 = vmatpush2.msra.mxu0 0.0
  %4009 = vmatprep.mubr.f32.mxu0 0.0
  %4010 = vmatmul.mubr.f32.gmra.mxu0 %v3560
  %v4011 = vpop.f32.mrf.mxu0
  %v4012 = vadd.f32 %v423, %v4011
  %v4013 = vpop.f32.mrf.mxu0
  %4014 = vdwg.mxu0
  %v4015 = vadd.f32 %v3871, %v3941
  %v4016 = vadd.f32 %v3872, %v3943
  %v4017 = vmul.f32 %v4015, 0.5
  %v4018 = vmul.f32 %v4016, 0.5
  %v4019 = vtanh.pop %v4017
  %v4020 = vtanh.pop %v4018
  %v4021 = vmul.f32 %v4019, 0.5
  %v4022 = vmul.f32 %v4020, 0.5
  %v4023 = vadd.f32 %v4021, 0.5
  %v4024 = vadd.f32 %v4022, 0.5
  %v4025 = vmul.f32 %v4023, %v4012
  %v4026 = vadd.f32 %v3873, %v4025
  %v4027 = vtanh.pop %v4026
  %v4028 = vsub.f32 1.0, %v4024
  %v4029 = vmul.f32 %v4028, %v4027
  %v4030 = vmul.f32 %v4024, %v3560
  %v4031 = vadd.f32 %v4029, %v4030
  %4032 = vmatprep.subr.mxu0 %v710
  %4033 = vmatpush1.msra.mxu0 %v709
  %4034 = vmatprep.subr.mxu0 %v706
  %4035 = vmatpush1.msra.mxu0 %v705
  %4036 = vmatprep.subr.mxu0 %v702
  %4037 = vmatpush1.msra.mxu0 %v701
  %4038 = vmatprep.subr.mxu0 %v698
  %4039 = vmatpush1.msra.mxu0 %v697
  %4040 = vmatprep.subr.mxu0 %v694
  %4041 = vmatpush1.msra.mxu0 %v693
  %4042 = vmatprep.subr.mxu0 %v690
  %4043 = vmatpush1.msra.mxu0 %v689
  %4044 = vmatprep.subr.mxu0 %v686
  %4045 = vmatpush1.msra.mxu0 %v685
  %4046 = vmatprep.subr.mxu0 %v682
  %4047 = vmatpush1.msra.mxu0 %v681
  %4048 = vmatprep.subr.mxu0 %v678
  %4049 = vmatpush1.msra.mxu0 %v677
  %4050 = vmatprep.subr.mxu0 %v674
  %4051 = vmatpush1.msra.mxu0 %v673
  %4052 = vmatprep.subr.mxu0 %v670
  %4053 = vmatpush1.msra.mxu0 %v669
  %4054 = vmatprep.subr.mxu0 %v666
  %4055 = vmatpush1.msra.mxu0 %v665
  %4056 = vmatprep.subr.mxu0 %v662
  %4057 = vmatpush1.msra.mxu0 %v661
  %4058 = vmatprep.subr.mxu0 %v658
  %4059 = vmatpush1.msra.mxu0 %v657
  %4060 = vmatprep.subr.mxu0 %v654
  %4061 = vmatpush1.msra.mxu0 %v653
  %4062 = vmatprep.subr.mxu0 %v650
  %4063 = vmatpush1.msra.mxu0 %v649
  %4064 = vmatprep.subr.mxu0 0.0
  %4065 = vmatpush2.msra.mxu0 0.0
  %4066 = vmatprep.subr.mxu0 0.0
  %4067 = vmatpush2.msra.mxu0 0.0
  %4068 = vmatprep.subr.mxu0 0.0
  %4069 = vmatpush2.msra.mxu0 0.0
  %4070 = vmatprep.subr.mxu0 0.0
  %4071 = vmatpush2.msra.mxu0 0.0
  %4072 = vmatprep.subr.mxu0 0.0
  %4073 = vmatpush2.msra.mxu0 0.0
  %4074 = vmatprep.subr.mxu0 0.0
  %4075 = vmatpush2.msra.mxu0 0.0
  %4076 = vmatprep.subr.mxu0 0.0
  %4077 = vmatpush2.msra.mxu0 0.0
  %4078 = vmatprep.subr.mxu0 0.0
  %4079 = vmatpush2.msra.mxu0 0.0
  %4080 = vmatprep.subr.mxu0 0.0
  %4081 = vmatpush2.msra.mxu0 0.0
  %4082 = vmatprep.subr.mxu0 0.0
  %4083 = vmatpush2.msra.mxu0 0.0
  %4084 = vmatprep.subr.mxu0 0.0
  %4085 = vmatpush2.msra.mxu0 0.0
  %4086 = vmatprep.subr.mxu0 0.0
  %4087 = vmatpush2.msra.mxu0 0.0
  %4088 = vmatprep.subr.mxu0 0.0
  %4089 = vmatpush2.msra.mxu0 0.0
  %4090 = vmatprep.subr.mxu0 0.0
  %4091 = vmatpush2.msra.mxu0 0.0
  %4092 = vmatprep.subr.mxu0 0.0
  %4093 = vmatpush2.msra.mxu0 0.0
  %4094 = vmatprep.subr.mxu0 0.0
  %4095 = vmatpush2.msra.mxu0 0.0
  %4096 = vmatprep.mubr.f32.mxu0 0.0
  %4097 = vmatmul.mubr.f32.gmra.mxu0 %v3863
  %v4098 = vpop.f32.mrf.mxu0
  %v4099 = vadd.f32 0.0, %v4098
  %v4100 = vpop.f32.mrf.mxu0
  %v4101 = vadd.f32 0.0, %v4100
  %4102 = vdwg.mxu0
  %4103 = vmatprep.subr.mxu0 %v712
  %4104 = vmatpush1.msra.mxu0 %v711
  %4105 = vmatprep.subr.mxu0 %v708
  %4106 = vmatpush1.msra.mxu0 %v707
  %4107 = vmatprep.subr.mxu0 %v704
  %4108 = vmatpush1.msra.mxu0 %v703
  %4109 = vmatprep.subr.mxu0 %v700
  %4110 = vmatpush1.msra.mxu0 %v699
  %4111 = vmatprep.subr.mxu0 %v696
  %4112 = vmatpush1.msra.mxu0 %v695
  %4113 = vmatprep.subr.mxu0 %v692
  %4114 = vmatpush1.msra.mxu0 %v691
  %4115 = vmatprep.subr.mxu0 %v688
  %4116 = vmatpush1.msra.mxu0 %v687
  %4117 = vmatprep.subr.mxu0 %v684
  %4118 = vmatpush1.msra.mxu0 %v683
  %4119 = vmatprep.subr.mxu0 %v680
  %4120 = vmatpush1.msra.mxu0 %v679
  %4121 = vmatprep.subr.mxu0 %v676
  %4122 = vmatpush1.msra.mxu0 %v675
  %4123 = vmatprep.subr.mxu0 %v672
  %4124 = vmatpush1.msra.mxu0 %v671
  %4125 = vmatprep.subr.mxu0 %v668
  %4126 = vmatpush1.msra.mxu0 %v667
  %4127 = vmatprep.subr.mxu0 %v664
  %4128 = vmatpush1.msra.mxu0 %v663
  %4129 = vmatprep.subr.mxu0 %v660
  %4130 = vmatpush1.msra.mxu0 %v659
  %4131 = vmatprep.subr.mxu0 %v656
  %4132 = vmatpush1.msra.mxu0 %v655
  %4133 = vmatprep.subr.mxu0 %v652
  %4134 = vmatpush1.msra.mxu0 %v651
  %4135 = vmatprep.subr.mxu0 0.0
  %4136 = vmatpush2.msra.mxu0 0.0
  %4137 = vmatprep.subr.mxu0 0.0
  %4138 = vmatpush2.msra.mxu0 0.0
  %4139 = vmatprep.subr.mxu0 0.0
  %4140 = vmatpush2.msra.mxu0 0.0
  %4141 = vmatprep.subr.mxu0 0.0
  %4142 = vmatpush2.msra.mxu0 0.0
  %4143 = vmatprep.subr.mxu0 0.0
  %4144 = vmatpush2.msra.mxu0 0.0
  %4145 = vmatprep.subr.mxu0 0.0
  %4146 = vmatpush2.msra.mxu0 0.0
  %4147 = vmatprep.subr.mxu0 0.0
  %4148 = vmatpush2.msra.mxu0 0.0
  %4149 = vmatprep.subr.mxu0 0.0
  %4150 = vmatpush2.msra.mxu0 0.0
  %4151 = vmatprep.subr.mxu0 0.0
  %4152 = vmatpush2.msra.mxu0 0.0
  %4153 = vmatprep.subr.mxu0 0.0
  %4154 = vmatpush2.msra.mxu0 0.0
  %4155 = vmatprep.subr.mxu0 0.0
  %4156 = vmatpush2.msra.mxu0 0.0
  %4157 = vmatprep.subr.mxu0 0.0
  %4158 = vmatpush2.msra.mxu0 0.0
  %4159 = vmatprep.subr.mxu0 0.0
  %4160 = vmatpush2.msra.mxu0 0.0
  %4161 = vmatprep.subr.mxu0 0.0
  %4162 = vmatpush2.msra.mxu0 0.0
  %4163 = vmatprep.subr.mxu0 0.0
  %4164 = vmatpush2.msra.mxu0 0.0
  %4165 = vmatprep.subr.mxu0 0.0
  %4166 = vmatpush2.msra.mxu0 0.0
  %4167 = vmatprep.mubr.f32.mxu0 0.0
  %4168 = vmatmul.mubr.f32.gmra.mxu0 %v3863
  %v4169 = vpop.f32.mrf.mxu0
  %v4170 = vadd.f32 0.0, %v4169
  %v4171 = vpop.f32.mrf.mxu0
  %v4172 = vadd.f32 0.0, %v4171
  %4173 = vdwg.mxu0
  %4174 = vmatprep.subr.mxu0 %v646
  %4175 = vmatpush1.msra.mxu0 %v645
  %4176 = vmatprep.subr.mxu0 %v642
  %4177 = vmatpush1.msra.mxu0 %v641
  %4178 = vmatprep.subr.mxu0 %v638
  %4179 = vmatpush1.msra.mxu0 %v637
  %4180 = vmatprep.subr.mxu0 %v634
  %4181 = vmatpush1.msra.mxu0 %v633
  %4182 = vmatprep.subr.mxu0 %v630
  %4183 = vmatpush1.msra.mxu0 %v629
  %4184 = vmatprep.subr.mxu0 %v626
  %4185 = vmatpush1.msra.mxu0 %v625
  %4186 = vmatprep.subr.mxu0 %v622
  %4187 = vmatpush1.msra.mxu0 %v621
  %4188 = vmatprep.subr.mxu0 %v618
  %4189 = vmatpush1.msra.mxu0 %v617
  %4190 = vmatprep.subr.mxu0 %v614
  %4191 = vmatpush1.msra.mxu0 %v613
  %4192 = vmatprep.subr.mxu0 %v610
  %4193 = vmatpush1.msra.mxu0 %v609
  %4194 = vmatprep.subr.mxu0 %v606
  %4195 = vmatpush1.msra.mxu0 %v605
  %4196 = vmatprep.subr.mxu0 %v602
  %4197 = vmatpush1.msra.mxu0 %v601
  %4198 = vmatprep.subr.mxu0 %v598
  %4199 = vmatpush1.msra.mxu0 %v597
  %4200 = vmatprep.subr.mxu0 %v594
  %4201 = vmatpush1.msra.mxu0 %v593
  %4202 = vmatprep.subr.mxu0 %v590
  %4203 = vmatpush1.msra.mxu0 %v589
  %4204 = vmatprep.subr.mxu0 %v586
  %4205 = vmatpush1.msra.mxu0 %v585
  %4206 = vmatprep.subr.mxu0 0.0
  %4207 = vmatpush2.msra.mxu0 0.0
  %4208 = vmatprep.subr.mxu0 0.0
  %4209 = vmatpush2.msra.mxu0 0.0
  %4210 = vmatprep.subr.mxu0 0.0
  %4211 = vmatpush2.msra.mxu0 0.0
  %4212 = vmatprep.subr.mxu0 0.0
  %4213 = vmatpush2.msra.mxu0 0.0
  %4214 = vmatprep.subr.mxu0 0.0
  %4215 = vmatpush2.msra.mxu0 0.0
  %4216 = vmatprep.subr.mxu0 0.0
  %4217 = vmatpush2.msra.mxu0 0.0
  %4218 = vmatprep.subr.mxu0 0.0
  %4219 = vmatpush2.msra.mxu0 0.0
  %4220 = vmatprep.subr.mxu0 0.0
  %4221 = vmatpush2.msra.mxu0 0.0
  %4222 = vmatprep.subr.mxu0 0.0
  %4223 = vmatpush2.msra.mxu0 0.0
  %4224 = vmatprep.subr.mxu0 0.0
  %4225 = vmatpush2.msra.mxu0 0.0
  %4226 = vmatprep.subr.mxu0 0.0
  %4227 = vmatpush2.msra.mxu0 0.0
  %4228 = vmatprep.subr.mxu0 0.0
  %4229 = vmatpush2.msra.mxu0 0.0
  %4230 = vmatprep.subr.mxu0 0.0
  %4231 = vmatpush2.msra.mxu0 0.0
  %4232 = vmatprep.subr.mxu0 0.0
  %4233 = vmatpush2.msra.mxu0 0.0
  %4234 = vmatprep.subr.mxu0 0.0
  %4235 = vmatpush2.msra.mxu0 0.0
  %4236 = vmatprep.subr.mxu0 0.0
  %4237 = vmatpush2.msra.mxu0 0.0
  %4238 = vmatprep.mubr.f32.mxu0 0.0
  %4239 = vmatmul.mubr.f32.gmra.mxu0 %v4031
  %v4240 = vpop.f32.mrf.mxu0
  %v4241 = vadd.f32 %v4099, %v4240
  %v4242 = vpop.f32.mrf.mxu0
  %v4243 = vadd.f32 %v4101, %v4242
  %4244 = vdwg.mxu0
  %4245 = vmatprep.subr.mxu0 %v648
  %4246 = vmatpush1.msra.mxu0 %v647
  %4247 = vmatprep.subr.mxu0 %v644
  %4248 = vmatpush1.msra.mxu0 %v643
  %4249 = vmatprep.subr.mxu0 %v640
  %4250 = vmatpush1.msra.mxu0 %v639
  %4251 = vmatprep.subr.mxu0 %v636
  %4252 = vmatpush1.msra.mxu0 %v635
  %4253 = vmatprep.subr.mxu0 %v632
  %4254 = vmatpush1.msra.mxu0 %v631
  %4255 = vmatprep.subr.mxu0 %v628
  %4256 = vmatpush1.msra.mxu0 %v627
  %4257 = vmatprep.subr.mxu0 %v624
  %4258 = vmatpush1.msra.mxu0 %v623
  %4259 = vmatprep.subr.mxu0 %v620
  %4260 = vmatpush1.msra.mxu0 %v619
  %4261 = vmatprep.subr.mxu0 %v616
  %4262 = vmatpush1.msra.mxu0 %v615
  %4263 = vmatprep.subr.mxu0 %v612
  %4264 = vmatpush1.msra.mxu0 %v611
  %4265 = vmatprep.subr.mxu0 %v608
  %4266 = vmatpush1.msra.mxu0 %v607
  %4267 = vmatprep.subr.mxu0 %v604
  %4268 = vmatpush1.msra.mxu0 %v603
  %4269 = vmatprep.subr.mxu0 %v600
  %4270 = vmatpush1.msra.mxu0 %v599
  %4271 = vmatprep.subr.mxu0 %v596
  %4272 = vmatpush1.msra.mxu0 %v595
  %4273 = vmatprep.subr.mxu0 %v592
  %4274 = vmatpush1.msra.mxu0 %v591
  %4275 = vmatprep.subr.mxu0 %v588
  %4276 = vmatpush1.msra.mxu0 %v587
  %4277 = vmatprep.subr.mxu0 0.0
  %4278 = vmatpush2.msra.mxu0 0.0
  %4279 = vmatprep.subr.mxu0 0.0
  %4280 = vmatpush2.msra.mxu0 0.0
  %4281 = vmatprep.subr.mxu0 0.0
  %4282 = vmatpush2.msra.mxu0 0.0
  %4283 = vmatprep.subr.mxu0 0.0
  %4284 = vmatpush2.msra.mxu0 0.0
  %4285 = vmatprep.subr.mxu0 0.0
  %4286 = vmatpush2.msra.mxu0 0.0
  %4287 = vmatprep.subr.mxu0 0.0
  %4288 = vmatpush2.msra.mxu0 0.0
  %4289 = vmatprep.subr.mxu0 0.0
  %4290 = vmatpush2.msra.mxu0 0.0
  %4291 = vmatprep.subr.mxu0 0.0
  %4292 = vmatpush2.msra.mxu0 0.0
  %4293 = vmatprep.subr.mxu0 0.0
  %4294 = vmatpush2.msra.mxu0 0.0
  %4295 = vmatprep.subr.mxu0 0.0
  %4296 = vmatpush2.msra.mxu0 0.0
  %4297 = vmatprep.subr.mxu0 0.0
  %4298 = vmatpush2.msra.mxu0 0.0
  %4299 = vmatprep.subr.mxu0 0.0
  %4300 = vmatpush2.msra.mxu0 0.0
  %4301 = vmatprep.subr.mxu0 0.0
  %4302 = vmatpush2.msra.mxu0 0.0
  %4303 = vmatprep.subr.mxu0 0.0
  %4304 = vmatpush2.msra.mxu0 0.0
  %4305 = vmatprep.subr.mxu0 0.0
  %4306 = vmatpush2.msra.mxu0 0.0
  %4307 = vmatprep.subr.mxu0 0.0
  %4308 = vmatpush2.msra.mxu0 0.0
  %4309 = vmatprep.mubr.f32.mxu0 0.0
  %4310 = vmatmul.mubr.f32.gmra.mxu0 %v4031
  %v4311 = vpop.f32.mrf.mxu0
  %v4312 = vadd.f32 %v4170, %v4311
  %v4313 = vpop.f32.mrf.mxu0
  %v4314 = vadd.f32 %v4172, %v4313
  %4315 = vdwg.mxu0
  %v4316 = vadd.f32 %v4241, %v1002
  %v4317 = vadd.f32 %v4243, %v1006
  %v4318 = vadd.f32 %v4312, %v1010
  %v4319 = vadd.f32 %v4314, %v1014
  %v4320 = vmul.f32 %v4316, 0.5
  %v4321 = vmul.f32 %v4317, 0.5
  %v4322 = vtanh.pop %v4320
  %v4323 = vtanh.pop %v4321
  %v4324 = vmul.f32 %v4322, 0.5
  %v4325 = vmul.f32 %v4323, 0.5
  %v4326 = vadd.f32 %v4324, 0.5
  %v4327 = vadd.f32 %v4325, 0.5
  %v4328 = vmul.f32 %v4326, %v4319
  %v4329 = vadd.f32 %v4318, %v4328
  %v4330 = vtanh.pop %v4329
  %v4331 = vsub.f32 1.0, %v4327
  %v4332 = vmul.f32 %v4331, %v4330
  %v4333 = vmul.f32 %v4327, %v3863
  %v4334 = vadd.f32 %v4332, %v4333
  %v4335 = vmul.f32 %v3867, %v4334
  %v4336 = vadd.f32 %v3865, %v4335
  %v4337 = vld [vmem:[%s9] sm:$0xff]
  %v4338 = vld [vmem:[%s9 + $0x8] sm:$0xff]
  %v4339 = vld [vmem:[%s9 + $0x10] sm:$0xff]
  %v4340 = vld [vmem:[%s9 + $0x18] sm:$0xff]
  %v4341 = vld [vmem:[%s9 + $0x20] sm:$0xff]
  %v4342 = vld [vmem:[%s9 + $0x28] sm:$0xff]
  %v4343 = vld [vmem:[%s9 + $0x30] sm:$0xff]
  %v4344 = vld [vmem:[%s9 + $0x38] sm:$0xff]
  %v4345 = vld [vmem:[%s9 + $0x40] sm:$0xff]
  %v4346 = vld [vmem:[%s9 + $0x48] sm:$0xff]
  %v4347 = vld [vmem:[%s9 + $0x50] sm:$0xff]
  %v4348 = vld [vmem:[%s9 + $0x58] sm:$0xff]
  %v4349 = vld [vmem:[%s9 + $0x60] sm:$0xff]
  %v4350 = vld [vmem:[%s9 + $0x68] sm:$0xff]
  %v4351 = vld [vmem:[%s9 + $0x70] sm:$0xff]
  %v4352 = vld [vmem:[%s9 + $0x78] sm:$0xff]
  %v4353 = vld [vmem:[%s10] sm:$0x1]
  %v4355 = vlaneseq
  %v4356 = vshrl.u32 %v4355, 7
  %v4357 = vsub.s32 0, %v4356
  %v4358 = vrot.slane %v4353, %v4357
  %4360 = vmatprep.subr.mxu0 0.0
  %4361 = vmatpush1.msra.mxu0 %v4352
  %4362 = vmatprep.subr.mxu0 0.0
  %4363 = vmatpush1.msra.mxu0 %v4351
  %4364 = vmatprep.subr.mxu0 0.0
  %4365 = vmatpush1.msra.mxu0 %v4350
  %4366 = vmatprep.subr.mxu0 0.0
  %4367 = vmatpush1.msra.mxu0 %v4349
  %4368 = vmatprep.subr.mxu0 0.0
  %4369 = vmatpush1.msra.mxu0 %v4348
  %4370 = vmatprep.subr.mxu0 0.0
  %4371 = vmatpush1.msra.mxu0 %v4347
  %4372 = vmatprep.subr.mxu0 0.0
  %4373 = vmatpush1.msra.mxu0 %v4346
  %4374 = vmatprep.subr.mxu0 0.0
  %4375 = vmatpush1.msra.mxu0 %v4345
  %4376 = vmatprep.subr.mxu0 0.0
  %4377 = vmatpush1.msra.mxu0 %v4344
  %4378 = vmatprep.subr.mxu0 0.0
  %4379 = vmatpush1.msra.mxu0 %v4343
  %4380 = vmatprep.subr.mxu0 0.0
  %4381 = vmatpush1.msra.mxu0 %v4342
  %4382 = vmatprep.subr.mxu0 0.0
  %4383 = vmatpush1.msra.mxu0 %v4341
  %4384 = vmatprep.subr.mxu0 0.0
  %4385 = vmatpush1.msra.mxu0 %v4340
  %4386 = vmatprep.subr.mxu0 0.0
  %4387 = vmatpush1.msra.mxu0 %v4339
  %4388 = vmatprep.subr.mxu0 0.0
  %4389 = vmatpush1.msra.mxu0 %v4338
  %4390 = vmatprep.subr.mxu0 0.0
  %4391 = vmatpush1.msra.mxu0 %v4337
  %4392 = vmatprep.subr.mxu0 0.0
  %4393 = vmatpush2.msra.mxu0 0.0
  %4394 = vmatprep.subr.mxu0 0.0
  %4395 = vmatpush2.msra.mxu0 0.0
  %4396 = vmatprep.subr.mxu0 0.0
  %4397 = vmatpush2.msra.mxu0 0.0
  %4398 = vmatprep.subr.mxu0 0.0
  %4399 = vmatpush2.msra.mxu0 0.0
  %4400 = vmatprep.subr.mxu0 0.0
  %4401 = vmatpush2.msra.mxu0 0.0
  %4402 = vmatprep.subr.mxu0 0.0
  %4403 = vmatpush2.msra.mxu0 0.0
  %4404 = vmatprep.subr.mxu0 0.0
  %4405 = vmatpush2.msra.mxu0 0.0
  %4406 = vmatprep.subr.mxu0 0.0
  %4407 = vmatpush2.msra.mxu0 0.0
  %4408 = vmatprep.subr.mxu0 0.0
  %4409 = vmatpush2.msra.mxu0 0.0
  %4410 = vmatprep.subr.mxu0 0.0
  %4411 = vmatpush2.msra.mxu0 0.0
  %4412 = vmatprep.subr.mxu0 0.0
  %4413 = vmatpush2.msra.mxu0 0.0
  %4414 = vmatprep.subr.mxu0 0.0
  %4415 = vmatpush2.msra.mxu0 0.0
  %4416 = vmatprep.subr.mxu0 0.0
  %4417 = vmatpush2.msra.mxu0 0.0
  %4418 = vmatprep.subr.mxu0 0.0
  %4419 = vmatpush2.msra.mxu0 0.0
  %4420 = vmatprep.subr.mxu0 0.0
  %4421 = vmatpush2.msra.mxu0 0.0
  %4422 = vmatprep.subr.mxu0 0.0
  %4423 = vmatpush2.msra.mxu0 0.0
  %4424 = vmatprep.mubr.f32.mxu0 0.0
  %4425 = vmatmul.mubr.f32.gmra.mxu0 %v4336
  %v4426 = vpop.f32.mrf.mxu0
  %v4427 = vadd.f32 %v4358, %v4426
  %v4428 = vpop.f32.mrf.mxu0
  %4429 = vdwg.mxu0
  %4430 = vst [vmem:[%s11] sm:$0xff] %v4427
  // Predicated region
  $region46: #{ehr_rnn_forward.1} parent=0 // pred_check
    _
  $region47: #{ehr_rnn_forward.1} parent=0 // pred_check_branch
    %4432 = sbr.rel (0) target = $region49
  $region48: #{ehr_rnn_forward.1} parent=0 // pred_region
    _
  $region49: #{ehr_rnn_forward.1} parent=0 // pred_fallthru
    _
  // Predicated region
  $region50: #{ehr_rnn_forward.1} parent=0 // pred_check
    _
  $region51: #{ehr_rnn_forward.1} parent=0 // pred_check_branch
    %4434 = sbr.rel (0) target = $region53
  $region52: #{ehr_rnn_forward.1} parent=0 // pred_region
    _
  $region53: #{ehr_rnn_forward.1} parent=0 // pred_fallthru
    _

</llo_original>
